<compile_context>
chip_gen: v7x
topology: tpu7x:2x2x1
jax: 0.10.0
libtpu: 0.0.40
codegen_flags: <defaults>
</compile_context>

<pallas_src>
import jax
import jax.numpy as jnp
from jax.experimental import pallas as pl
from jax.experimental.pallas import tpu as pltpu


def _h_kernel(v2_ref, q2_ref, att_ref, wv_ref, bv_ref, wq_ref, bq_ref, h_ref):
    """h[b,m] = sum_{i,j} relu(v Wv + bv)[b,i,m] * atten[b,i,j] * relu(q Wq + bq)[b,j,m]
    for one TB-sized sub-batch.  Final linear projections are hoisted to XLA."""
    TB, V, Q = att_ref.shape
    M = wv_ref.shape[1]

    # lin_v / lin_q: batch folded into the MXU row dim (TB*V / TB*Q rows), bf16 operands,
    # f32 accumulation, bias + ReLU fused on the VPU.
    lv = jnp.maximum(
        jnp.dot(v2_ref[...], wv_ref[...], preferred_element_type=jnp.float32) + bv_ref[...],
        0.0)                                                       # f32 [TB*V, M]
    lq = jnp.maximum(
        jnp.dot(q2_ref[...], wq_ref[...], preferred_element_type=jnp.float32) + bq_ref[...],
        0.0)                                                       # f32 [TB*Q, M]

    # Layout-preserving splits of the leading (row) dim of the f32 intermediates
    # (V, Q align with the (8,128) f32 sublane tile, so no relayout copy).
    lv3 = lv.reshape(TB, V, M)                                     # f32 [TB, V, M]
    lq3 = lq.reshape(TB, Q, M)                                     # f32 [TB, Q, M]
    att = att_ref[...]                                             # f32 [TB, V, Q]

    # t[b,v,m] = sum_q atten[b,v,q] * lq[b,q,m] as VPU broadcast-MACs, fully unrolled
    # over the tiny static Q (static slices keep every access lane/sublane-static; an
    # MXU einsum here would be TB tiny [V,Q]@[Q,M] matmuls at <7% fill).
    # TODO(synk): for production shapes with V, Q >= ~64, switch back to the MXU einsum.
    t = jnp.zeros((TB, V, M), jnp.float32)
    for qi in range(Q):
        t = t + att[:, :, qi:qi + 1] * lq3[:, qi:qi + 1, :]        # [TB,V,1]*[TB,1,M]

    # h[b,m] = sum_v lv[b,v,m] * t[b,v,m]: VPU multiply + sublane (axis=1) reduce,
    # stored as a lane-dense bf16 [TB, M] block.
    h_ref[...] = jnp.sum(lv3 * t, axis=1).astype(h_ref.dtype)


def _choose_tb(batch, v_len, *, target_rows=256, min_steps=4):
    """Largest divisor of `batch` (=> no padding pass) such that the folded MXU row dim
    TB*V stays <= target_rows (256 fills v6e/v7x; 128 is enough on v5e) and the grid keeps
    >= min_steps steps (pipeline overlap; v7x shards the parallel axis over 2 TCs)."""
    best = 1
    for d in range(1, batch + 1):
        if batch % d == 0 and batch // d >= min_steps and d * v_len <= target_rows:
            best = d
    return best


def _vmem_budget_bytes(tb, v_len, q_len, dv, dq, m):
    """Actual VMEM footprint: double-buffered batch blocks + single-buffered weights
    + live f32 intermediates, with 2x headroom, clamped to a v7x-safe ceiling."""
    bf16, f32 = 2, 4
    blocks = 2 * (tb * v_len * dv * bf16          # v block (double-buffered)
                  + tb * q_len * dq * bf16        # q block
                  + tb * v_len * q_len * f32      # atten block
                  + tb * m * bf16)                # h block
    weights = (dv + dq) * m * bf16 + 2 * m * f32          # Buffered(1): one copy each
    live = (2 * tb * v_len + tb * q_len) * m * f32        # lv, t, lq intermediates
    return int(min(max(2 * (blocks + weights + live), 16 * 1024 * 1024),
                   40 * 1024 * 1024))


def apply_single_attention(v, q, b, v_mask, q_mask, atten, logits, params, *, tb=None):
    """Returns (atten_h [B,1,M], count_h [B,1,M]) matching the PyTorch forward."""
    del b, v_mask, q_mask  # b only feeds the external Counter (surrogated); masks unused
    B, V, Dv = v.shape
    _, Q, Dq = q.shape
    M = params["wv"].shape[1]
    C = params["wc"].shape[0]                     # num_obj + 1

    TB = _choose_tb(B, V) if tb is None else tb
    assert B % TB == 0, "pick tb | B (avoids a full pad read/write pass over the inputs)"
    grid = (B // TB,)

    # Wrapper-side flatten + bf16 cast (single XLA pass); atten stays f32 (VPU operand).
    v2 = v.reshape(B * V, Dv).astype(jnp.bfloat16)
    q2 = q.reshape(B * Q, Dq).astype(jnp.bfloat16)
    att = atten.astype(jnp.float32)
    wv = params["wv"].astype(jnp.bfloat16)
    wq = params["wq"].astype(jnp.bfloat16)
    bv = params["bv"].astype(jnp.float32)
    bq = params["bq"].astype(jnp.float32)

    resident = dict(pipeline_mode=pl.Buffered(1))   # weights/biases: single VMEM buffer

    h = pl.pallas_call(
        _h_kernel,
        grid=grid,
        in_specs=[
            pl.BlockSpec((TB * V, Dv), lambda i: (i, 0)),            # v  (flattened rows)
            pl.BlockSpec((TB * Q, Dq), lambda i: (i, 0)),            # q  (flattened rows)
            pl.BlockSpec((TB, V, Q), lambda i: (i, 0, 0)),           # atten (f32)
            pl.BlockSpec((Dv, M), lambda i: (0, 0), **resident),     # Wv (resident)
            pl.BlockSpec((1, M), lambda i: (0, 0), **resident),      # bv
            pl.BlockSpec((Dq, M), lambda i: (0, 0), **resident),     # Wq (resident)
            pl.BlockSpec((1, M), lambda i: (0, 0), **resident),      # bq
        ],
        out_specs=pl.BlockSpec((TB, M), lambda i: (i, 0)),           # lane-dense [TB, M]
        out_shape=jax.ShapeDtypeStruct((B, M), jnp.bfloat16),
        compiler_params=pltpu.CompilerParams(
            dimension_semantics=("parallel",),
            vmem_limit_bytes=_vmem_budget_bytes(TB, V, Q, Dv, Dq, M),
        ),
    )(v2, q2, att, wv, bv, wq, bq)                                   # bf16 [B, M]

    # ---- hoisted projections: single dense bf16 x bf16 -> f32 matmuls over the batch ----
    # lin_atten : Linear, no ReLU
    atten_h = (jnp.dot(h, params["wa"].astype(jnp.bfloat16),
                       preferred_element_type=jnp.float32) + params["ba"])[:, None, :]

    # Counter surrogate (plain-JAX glue) + lin_count (Linear + ReLU), also hoisted.
    att_max = jnp.max(logits, axis=2)                        # logits.max(2)[0] -> [B, V]
    count_scalar = jnp.sum(jax.nn.sigmoid(att_max), axis=1)  # [B]
    bins = jnp.arange(C, dtype=jnp.float32)
    count_embed = jnp.clip(1.0 - jnp.abs(count_scalar[:, None] - bins[None, :]), 0.0, 1.0)
    count_h = jnp.maximum(
        jnp.dot(count_embed.astype(jnp.bfloat16), params["wc"].astype(jnp.bfloat16),
                preferred_element_type=jnp.float32) + params["bc"], 0.0)[:, None, :]

    return atten_h, count_h


def _reference(v, q, atten, logits, params):
    """Pure-JAX f32 reference of the same forward (for tolerance check)."""
    lv = jnp.maximum(jnp.einsum("bvd,dm->bvm", v, params["wv"]) + params["bv"], 0.0)
    lq = jnp.maximum(jnp.einsum("bqd,dm->bqm", q, params["wq"]) + params["bq"], 0.0)
    t = jnp.einsum("bvq,bqm->bvm", atten, lq)
    h = jnp.sum(lv * t, axis=1)
    atten_h = (jnp.dot(h, params["wa"]) + params["ba"])[:, None, :]
    C = params["wc"].shape[0]
    att_max = jnp.max(logits, axis=2)
    count_scalar = jnp.sum(jax.nn.sigmoid(att_max), axis=1)
    bins = jnp.arange(C, dtype=jnp.float32)
    count_embed = jnp.clip(1.0 - jnp.abs(count_scalar[:, None] - bins[None, :]), 0.0, 1.0)
    count_h = jnp.maximum(jnp.dot(count_embed, params["wc"]) + params["bc"], 0.0)[:, None, :]
    return atten_h, count_h


def init_params(key, v_features, q_features, mid_features, num_obj):
    """Deterministic synthetic init (FCNet ~= weight_norm Linear; effective dense weight)."""
    ks = jax.random.split(key, 8)

    def lin(kw, kb, din, dout):
        scale = 1.0 / jnp.sqrt(jnp.float32(din))
        w = jax.random.uniform(kw, (din, dout), jnp.float32, -scale, scale)
        bias = jax.random.uniform(kb, (1, dout), jnp.float32, -scale, scale)
        return w, bias

    wv, bv = lin(ks[0], ks[1], v_features, mid_features)
    wq, bq = lin(ks[2], ks[3], q_features, mid_features)
    wa, ba = lin(ks[4], ks[5], mid_features, mid_features)
    wc, bc = lin(ks[6], ks[7], num_obj + 1, mid_features)
    return dict(wv=wv, bv=bv, wq=wq, bq=bq, wa=wa, ba=ba, wc=wc, bc=bc)


if __name__ == "__main__":
    # Small, MXU/lane-friendly shapes: M a multiple of 128; B chosen so _choose_tb yields
    # TB=32 -> TB*V = 256 folded MXU rows and an even 8-step grid (>= 4 steps per v7x TC).
    B, V, Q = 256, 8, 8
    v_features, q_features, mid_features = 32, 32, 128
    num_obj = V

    key = jax.random.PRNGKey(0)
    k_v, k_q, k_b, k_at, k_lg, k_p = jax.random.split(key, 6)

    v = jax.random.normal(k_v, (B, V, v_features), jnp.float32)
    q = jax.random.normal(k_q, (B, Q, q_features), jnp.float32)
    boxes = jax.random.uniform(k_b, (B, 4, V), jnp.float32)
    v_mask = jnp.ones((B, V), jnp.float32)
    q_mask = jnp.ones((B, Q), jnp.float32)
    atten = jax.random.normal(k_at, (B, V, Q), jnp.float32)
    logits = jax.random.normal(k_lg, (B, V, Q), jnp.float32)

    params = init_params(k_p, v_features, q_features, mid_features, num_obj)

    atten_h, count_h = apply_single_attention(v, q, boxes, v_mask, q_mask, atten, logits,
                                              params)
    jax.block_until_ready((atten_h, count_h))

    assert atten_h.shape == (B, 1, mid_features)
    assert count_h.shape == (B, 1, mid_features)

    # Elementwise rtol/atol check vs the pure-f32 reference (kernel matmuls run
    # bf16 x bf16 -> f32 acc; atol scaled to the output magnitude for bf16 paths).
    ref_ah, ref_ch = _reference(v, q, atten, logits, params)

    def assert_close(name, got, want, rtol=5e-2):
        atol = 5e-2 * float(jnp.max(jnp.abs(want))) + 1e-6
        worst = float(jnp.max(jnp.abs(got - want) - (atol + rtol * jnp.abs(want))))
        assert worst <= 0.0, f"{name}: elementwise tolerance exceeded by {worst}"

    assert_close("atten_h", atten_h, ref_ah)
    assert_close("count_h", count_h, ref_ch)

    print("KERNEL_OK")
</pallas_src>

<mosaic_0001>
module attributes {stable_mosaic.version = 11 : i64} {
  func.func @_h_kernel(%arg0: i32, %arg1: memref<256x32xbf16, #tpu.memory_space<vmem>>, %arg2: memref<256x32xbf16, #tpu.memory_space<vmem>>, %arg3: memref<32x8x8xf32, #tpu.memory_space<vmem>>, %arg4: memref<32x128xbf16, #tpu.memory_space<vmem>>, %arg5: memref<1x128xf32, #tpu.memory_space<vmem>>, %arg6: memref<32x128xbf16, #tpu.memory_space<vmem>>, %arg7: memref<1x128xf32, #tpu.memory_space<vmem>>, %arg8: memref<32x128xbf16, #tpu.memory_space<vmem>>) attributes {dimension_semantics = [#tpu.dimension_semantics<parallel>], iteration_bounds = array<i64: 8>, scalar_prefetch = 0 : i64, scratch_operands = 0 : i64, tpu.core_type = #tpu.core_type<tc>, window_params = [{transform_indices = @transform_0, window_bounds = array<i64: 256, 32>}, {transform_indices = @transform_1, window_bounds = array<i64: 256, 32>}, {transform_indices = @transform_2, window_bounds = array<i64: 32, 8, 8>}, {pipeline_mode = #tpu.pipeline_mode<synchronous>, transform_indices = @transform_3, window_bounds = array<i64: 32, 128>}, {pipeline_mode = #tpu.pipeline_mode<synchronous>, transform_indices = @transform_4, window_bounds = array<i64: 1, 128>}, {pipeline_mode = #tpu.pipeline_mode<synchronous>, transform_indices = @transform_5, window_bounds = array<i64: 32, 128>}, {pipeline_mode = #tpu.pipeline_mode<synchronous>, transform_indices = @transform_6, window_bounds = array<i64: 1, 128>}, {transform_indices = @transform_7, window_bounds = array<i64: 32, 128>}]} {
    %c0 = arith.constant 0 : index
    %c0_0 = arith.constant 0 : index
    %0 = vector.load %arg1[%c0, %c0_0] : memref<256x32xbf16, #tpu.memory_space<vmem>>, vector<256x32xbf16>
    %c0_1 = arith.constant 0 : index
    %c0_2 = arith.constant 0 : index
    %1 = vector.load %arg4[%c0_1, %c0_2] : memref<32x128xbf16, #tpu.memory_space<vmem>>, vector<32x128xbf16>
    %cst = arith.constant dense<0.000000e+00> : vector<256x128xf32>
    %2 = tpu.matmul %0, %1, %cst {dimension_numbers = #tpu.dot_dimension_numbers<[1], [0], [0], [1], [0, 0, 1, 1], [], []>} : vector<256x32xbf16>, vector<32x128xbf16>, vector<256x128xf32> -> vector<256x128xf32>
    %c0_3 = arith.constant 0 : index
    %c0_4 = arith.constant 0 : index
    %3 = vector.load %arg5[%c0_3, %c0_4] : memref<1x128xf32, #tpu.memory_space<vmem>>, vector<1x128xf32>
    %4 = vector.broadcast %3 : vector<1x128xf32> to vector<256x128xf32>
    %5 = arith.addf %2, %4 : vector<256x128xf32>
    %cst_5 = arith.constant 0.000000e+00 : f32
    %6 = vector.broadcast %cst_5 : f32 to vector<256x128xf32>
    %7 = arith.maximumf %5, %6 : vector<256x128xf32>
    %c0_6 = arith.constant 0 : index
    %c0_7 = arith.constant 0 : index
    %8 = vector.load %arg2[%c0_6, %c0_7] : memref<256x32xbf16, #tpu.memory_space<vmem>>, vector<256x32xbf16>
    %c0_8 = arith.constant 0 : index
    %c0_9 = arith.constant 0 : index
    %9 = vector.load %arg6[%c0_8, %c0_9] : memref<32x128xbf16, #tpu.memory_space<vmem>>, vector<32x128xbf16>
    %cst_10 = arith.constant dense<0.000000e+00> : vector<256x128xf32>
    %10 = tpu.matmul %8, %9, %cst_10 {dimension_numbers = #tpu.dot_dimension_numbers<[1], [0], [0], [1], [0, 0, 1, 1], [], []>} : vector<256x32xbf16>, vector<32x128xbf16>, vector<256x128xf32> -> vector<256x128xf32>
    %c0_11 = arith.constant 0 : index
    %c0_12 = arith.constant 0 : index
    %11 = vector.load %arg7[%c0_11, %c0_12] : memref<1x128xf32, #tpu.memory_space<vmem>>, vector<1x128xf32>
    %12 = vector.broadcast %11 : vector<1x128xf32> to vector<256x128xf32>
    %13 = arith.addf %10, %12 : vector<256x128xf32>
    %cst_13 = arith.constant 0.000000e+00 : f32
    %14 = vector.broadcast %cst_13 : f32 to vector<256x128xf32>
    %15 = arith.maximumf %13, %14 : vector<256x128xf32>
    %16 = vector.shape_cast %7 : vector<256x128xf32> to vector<32x8x128xf32>
    %17 = vector.shape_cast %15 : vector<256x128xf32> to vector<32x8x128xf32>
    %c0_14 = arith.constant 0 : index
    %c0_15 = arith.constant 0 : index
    %c0_16 = arith.constant 0 : index
    %18 = vector.load %arg3[%c0_14, %c0_15, %c0_16] : memref<32x8x8xf32, #tpu.memory_space<vmem>>, vector<32x8x8xf32>
    %cst_17 = arith.constant 0.000000e+00 : f32
    %19 = vector.broadcast %cst_17 : f32 to vector<32x8x128xf32>
    %20 = vector.extract_strided_slice %18 {offsets = [0, 0, 0], sizes = [32, 8, 1], strides = [1, 1, 1]} : vector<32x8x8xf32> to vector<32x8x1xf32>
    %21 = vector.extract_strided_slice %17 {offsets = [0, 0, 0], sizes = [32, 1, 128], strides = [1, 1, 1]} : vector<32x8x128xf32> to vector<32x1x128xf32>
    %22 = vector.broadcast %20 : vector<32x8x1xf32> to vector<32x8x128xf32>
    %23 = vector.broadcast %21 : vector<32x1x128xf32> to vector<32x8x128xf32>
    %24 = arith.mulf %22, %23 : vector<32x8x128xf32>
    %25 = arith.addf %19, %24 : vector<32x8x128xf32>
    %26 = vector.extract_strided_slice %18 {offsets = [0, 0, 1], sizes = [32, 8, 1], strides = [1, 1, 1]} : vector<32x8x8xf32> to vector<32x8x1xf32>
    %27 = vector.extract_strided_slice %17 {offsets = [0, 1, 0], sizes = [32, 1, 128], strides = [1, 1, 1]} : vector<32x8x128xf32> to vector<32x1x128xf32>
    %28 = vector.broadcast %26 : vector<32x8x1xf32> to vector<32x8x128xf32>
    %29 = vector.broadcast %27 : vector<32x1x128xf32> to vector<32x8x128xf32>
    %30 = arith.mulf %28, %29 : vector<32x8x128xf32>
    %31 = arith.addf %25, %30 : vector<32x8x128xf32>
    %32 = vector.extract_strided_slice %18 {offsets = [0, 0, 2], sizes = [32, 8, 1], strides = [1, 1, 1]} : vector<32x8x8xf32> to vector<32x8x1xf32>
    %33 = vector.extract_strided_slice %17 {offsets = [0, 2, 0], sizes = [32, 1, 128], strides = [1, 1, 1]} : vector<32x8x128xf32> to vector<32x1x128xf32>
    %34 = vector.broadcast %32 : vector<32x8x1xf32> to vector<32x8x128xf32>
    %35 = vector.broadcast %33 : vector<32x1x128xf32> to vector<32x8x128xf32>
    %36 = arith.mulf %34, %35 : vector<32x8x128xf32>
    %37 = arith.addf %31, %36 : vector<32x8x128xf32>
    %38 = vector.extract_strided_slice %18 {offsets = [0, 0, 3], sizes = [32, 8, 1], strides = [1, 1, 1]} : vector<32x8x8xf32> to vector<32x8x1xf32>
    %39 = vector.extract_strided_slice %17 {offsets = [0, 3, 0], sizes = [32, 1, 128], strides = [1, 1, 1]} : vector<32x8x128xf32> to vector<32x1x128xf32>
    %40 = vector.broadcast %38 : vector<32x8x1xf32> to vector<32x8x128xf32>
    %41 = vector.broadcast %39 : vector<32x1x128xf32> to vector<32x8x128xf32>
    %42 = arith.mulf %40, %41 : vector<32x8x128xf32>
    %43 = arith.addf %37, %42 : vector<32x8x128xf32>
    %44 = vector.extract_strided_slice %18 {offsets = [0, 0, 4], sizes = [32, 8, 1], strides = [1, 1, 1]} : vector<32x8x8xf32> to vector<32x8x1xf32>
    %45 = vector.extract_strided_slice %17 {offsets = [0, 4, 0], sizes = [32, 1, 128], strides = [1, 1, 1]} : vector<32x8x128xf32> to vector<32x1x128xf32>
    %46 = vector.broadcast %44 : vector<32x8x1xf32> to vector<32x8x128xf32>
    %47 = vector.broadcast %45 : vector<32x1x128xf32> to vector<32x8x128xf32>
    %48 = arith.mulf %46, %47 : vector<32x8x128xf32>
    %49 = arith.addf %43, %48 : vector<32x8x128xf32>
    %50 = vector.extract_strided_slice %18 {offsets = [0, 0, 5], sizes = [32, 8, 1], strides = [1, 1, 1]} : vector<32x8x8xf32> to vector<32x8x1xf32>
    %51 = vector.extract_strided_slice %17 {offsets = [0, 5, 0], sizes = [32, 1, 128], strides = [1, 1, 1]} : vector<32x8x128xf32> to vector<32x1x128xf32>
    %52 = vector.broadcast %50 : vector<32x8x1xf32> to vector<32x8x128xf32>
    %53 = vector.broadcast %51 : vector<32x1x128xf32> to vector<32x8x128xf32>
    %54 = arith.mulf %52, %53 : vector<32x8x128xf32>
    %55 = arith.addf %49, %54 : vector<32x8x128xf32>
    %56 = vector.extract_strided_slice %18 {offsets = [0, 0, 6], sizes = [32, 8, 1], strides = [1, 1, 1]} : vector<32x8x8xf32> to vector<32x8x1xf32>
    %57 = vector.extract_strided_slice %17 {offsets = [0, 6, 0], sizes = [32, 1, 128], strides = [1, 1, 1]} : vector<32x8x128xf32> to vector<32x1x128xf32>
    %58 = vector.broadcast %56 : vector<32x8x1xf32> to vector<32x8x128xf32>
    %59 = vector.broadcast %57 : vector<32x1x128xf32> to vector<32x8x128xf32>
    %60 = arith.mulf %58, %59 : vector<32x8x128xf32>
    %61 = arith.addf %55, %60 : vector<32x8x128xf32>
    %62 = vector.extract_strided_slice %18 {offsets = [0, 0, 7], sizes = [32, 8, 1], strides = [1, 1, 1]} : vector<32x8x8xf32> to vector<32x8x1xf32>
    %63 = vector.extract_strided_slice %17 {offsets = [0, 7, 0], sizes = [32, 1, 128], strides = [1, 1, 1]} : vector<32x8x128xf32> to vector<32x1x128xf32>
    %64 = vector.broadcast %62 : vector<32x8x1xf32> to vector<32x8x128xf32>
    %65 = vector.broadcast %63 : vector<32x1x128xf32> to vector<32x8x128xf32>
    %66 = arith.mulf %64, %65 : vector<32x8x128xf32>
    %67 = arith.addf %61, %66 : vector<32x8x128xf32>
    %68 = arith.mulf %16, %67 : vector<32x8x128xf32>
    %cst_18 = arith.constant dense<0.000000e+00> : vector<32x128xf32>
    %69 = vector.multi_reduction <add>, %68, %cst_18 [1] : vector<32x8x128xf32> to vector<32x128xf32>
    %70 = arith.truncf %69 : vector<32x128xf32> to vector<32x128xbf16>
    %c0_19 = arith.constant 0 : index
    %c0_20 = arith.constant 0 : index
    %71 = vector.load %arg8[%c0_19, %c0_20] : memref<32x128xbf16, #tpu.memory_space<vmem>>, vector<32x128xbf16>
    tpu.vector_store %arg8[%c0_19, %c0_20], %70 {strides = array<i32>} : memref<32x128xbf16, #tpu.memory_space<vmem>>, vector<32x128xbf16>,
    return
  }
  func.func @transform_0(%arg0: i32) -> (i32, i32) {
    %c0_i32 = arith.constant 0 : i32
    %c0_i32_0 = arith.constant 0 : i32
    return %arg0, %c0_i32 : i32, i32
  }
  func.func @transform_1(%arg0: i32) -> (i32, i32) {
    %c0_i32 = arith.constant 0 : i32
    %c0_i32_0 = arith.constant 0 : i32
    return %arg0, %c0_i32 : i32, i32
  }
  func.func @transform_2(%arg0: i32) -> (i32, i32, i32) {
    %c0_i32 = arith.constant 0 : i32
    %c0_i32_0 = arith.constant 0 : i32
    %c0_i32_1 = arith.constant 0 : i32
    return %arg0, %c0_i32, %c0_i32_0 : i32, i32, i32
  }
  func.func @transform_3(%arg0: i32) -> (i32, i32) {
    %c0_i32 = arith.constant 0 : i32
    %c0_i32_0 = arith.constant 0 : i32
    %c0_i32_1 = arith.constant 0 : i32
    return %c0_i32, %c0_i32_0 : i32, i32
  }
  func.func @transform_4(%arg0: i32) -> (i32, i32) {
    %c0_i32 = arith.constant 0 : i32
    %c0_i32_0 = arith.constant 0 : i32
    %c0_i32_1 = arith.constant 0 : i32
    return %c0_i32, %c0_i32_0 : i32, i32
  }
  func.func @transform_5(%arg0: i32) -> (i32, i32) {
    %c0_i32 = arith.constant 0 : i32
    %c0_i32_0 = arith.constant 0 : i32
    %c0_i32_1 = arith.constant 0 : i32
    return %c0_i32, %c0_i32_0 : i32, i32
  }
  func.func @transform_6(%arg0: i32) -> (i32, i32) {
    %c0_i32 = arith.constant 0 : i32
    %c0_i32_0 = arith.constant 0 : i32
    %c0_i32_1 = arith.constant 0 : i32
    return %c0_i32, %c0_i32_0 : i32, i32
  }
  func.func @transform_7(%arg0: i32) -> (i32, i32) {
    %c0_i32 = arith.constant 0 : i32
    %c0_i32_0 = arith.constant 0 : i32
    return %arg0, %c0_i32 : i32, i32
  }
}

</mosaic_0001>

<llo_original>
// kernel: tpu_custom_call.1
$region0: #{tpu_custom_call.1}
  #allocation0 [shape = 'u32[]', space=smem, size = 0x4, offset = 0x4, fixed_abs, tag = 'smem constant byte address 0x4 - core index']
  #allocation1 [shape = 'u32[144,128]{1,0:T(1,128)}', space=vmem, size = 0x12000, scoped, tag = 'internal scratch']
  %s0 = inlined_call_operand.vmem [shape: bf16[2048,32], index: 0, kind: input, shape index: {}]
  %s1 = inlined_call_operand.vmem [shape: bf16[2048,32], index: 1, kind: input, shape index: {}]
  %s2 = inlined_call_operand.vmem [shape: f32[256,8,8], index: 2, kind: input, shape index: {}]
  %s3 = inlined_call_operand.vmem [shape: bf16[32,128], index: 3, kind: input, shape index: {}]
  %s4 = inlined_call_operand.vmem [shape: f32[1,128], index: 4, kind: input, shape index: {}]
  %s5 = inlined_call_operand.vmem [shape: bf16[32,128], index: 5, kind: input, shape index: {}]
  %s6 = inlined_call_operand.vmem [shape: f32[1,128], index: 6, kind: input, shape index: {}]
  %s7 = inlined_call_operand.hbm [shape: bf16[256,128], index: 7, kind: output, shape index: {}]
  %s8 = sld [smem:[#allocation0]]
  $region61: #{tpu_custom_call.1} parent=0
    _
  %s10 = ssub.s32 1, %s8
  %s11 = scalar_select 0, %s10, %s8
  $region1: #{tpu_custom_call.1} parent=0
    #allocation2 [shape = 'u8[16384]{0}', space=vmem, size = 0x4000, scoped, tag = 'output window, operand 0']
    #allocation3 [shape = 's32[2]{0}', space=sflag, size = 0x8, scoped, tag = 'scoped memory for tpu_custom_call.1']
    %12 = vsyncpa [#allocation3], 0
    %s13 = scalar_lea.sflag [#allocation3], 1
    %14 = vsyncpa %s13, 0
    loop: start=0, step=1, limit=10
    $region2: #{tpu_custom_call.1} parent=1 // loop_pre_header
      _
    $region3: #{tpu_custom_call.1} parent=1 // loop_header
      %s16 = sphi 0, %s20
      %p17 = scmp.ge.s32.totalorder %s16, 10
      %s26 = sphi 0, %s28
      %s29 = sphi 0, %s26
      %s30 = sphi 0, %s29
      %s46 = sphi 0, %s30
      %s52 = sphi 0, %s54
      %s55 = sphi 0, %s52
      %s56 = sphi 0, %s55
      %s72 = sphi 0, %s56
      %s78 = sphi 0, %s80
      %s81 = sphi 0, %s78
      %s82 = sphi 0, %s81
      %s98 = sphi 0, %s82
      %s102 = sphi 0, %s102
      %s104 = sphi 0, %s102
      %s105 = sphi 0, %s104
      %s119 = sphi 0, %s105
      %s123 = sphi 0, %s123
      %s125 = sphi 0, %s123
      %s126 = sphi 0, %s125
      %s140 = sphi 0, %s126
      %s144 = sphi 0, %s144
      %s146 = sphi 0, %s144
      %s147 = sphi 0, %s146
      %s161 = sphi 0, %s147
      %s165 = sphi 0, %s165
      %s167 = sphi 0, %s165
      %s168 = sphi 0, %s167
      %s182 = sphi 0, %s168
      %s188 = sphi 0, %s190
      %s191 = sphi 0, %s188
      %s192 = sphi 0, %s191
      %s208 = sphi 0, %s192
    $region4: #{tpu_custom_call.1} parent=1 // loop_header_branch
      %19 = sbr.rel (%p17) target = $region8
    $region5: #{tpu_custom_call.1} parent=1 // loop_body
      %s21 = ssub.s32 %s16, 1
      %s22 = ssub.s32 %s16, 2
      %s23 = sadd.s32 %s16, 1
      %s24 = ssub.s32 %s16, %s23
      %p25 = scmp.eq.s32.totalorder %s24, 0
      %s27 = sadd.s32 %s26, 1
      %s28 = scalar_select %p25, %s26, %s27
      %p31 = pneg %p25
      %p32 = scmp.eq.s32.totalorder %s16, 7
      %p33 = por %p31, %p32
      %p34 = scmp.ne.s32.totalorder %s26, %s29
      %p35 = scmp.eq.s32.totalorder %s16, 0
      %p36 = por %p34, %p35
      %p37 = scmp.ne.s32.totalorder %s26, %s29
      %p38 = scmp.eq.s32.totalorder %s21, 7
      %p39 = por %p37, %p38
      %p40 = scmp.ne.s32.totalorder %s29, %s30
      %p41 = scmp.eq.s32.totalorder %s21, 0
      %p42 = por %p40, %p41
      %p43 = scmp.ne.s32.totalorder %s29, %s30
      %p44 = scmp.eq.s32.totalorder %s22, 7
      %p45 = por %p43, %p44
      %p47 = scmp.ne.s32.totalorder %s30, %s46
      %p48 = scmp.eq.s32.totalorder %s22, 0
      %p49 = por %p47, %p48
      %s50 = ssub.s32 %s16, %s23
      %p51 = scmp.eq.s32.totalorder %s50, 0
      %s53 = sadd.s32 %s52, 1
      %s54 = scalar_select %p51, %s52, %s53
      %p57 = pneg %p51
      %p58 = scmp.eq.s32.totalorder %s16, 7
      %p59 = por %p57, %p58
      %p60 = scmp.ne.s32.totalorder %s52, %s55
      %p61 = scmp.eq.s32.totalorder %s16, 0
      %p62 = por %p60, %p61
      %p63 = scmp.ne.s32.totalorder %s52, %s55
      %p64 = scmp.eq.s32.totalorder %s21, 7
      %p65 = por %p63, %p64
      %p66 = scmp.ne.s32.totalorder %s55, %s56
      %p67 = scmp.eq.s32.totalorder %s21, 0
      %p68 = por %p66, %p67
      %p69 = scmp.ne.s32.totalorder %s55, %s56
      %p70 = scmp.eq.s32.totalorder %s22, 7
      %p71 = por %p69, %p70
      %p73 = scmp.ne.s32.totalorder %s56, %s72
      %p74 = scmp.eq.s32.totalorder %s22, 0
      %p75 = por %p73, %p74
      %s76 = ssub.s32 %s16, %s23
      %p77 = scmp.eq.s32.totalorder %s76, 0
      %s79 = sadd.s32 %s78, 1
      %s80 = scalar_select %p77, %s78, %s79
      %p83 = pneg %p77
      %p84 = scmp.eq.s32.totalorder %s16, 7
      %p85 = por %p83, %p84
      %p86 = scmp.ne.s32.totalorder %s78, %s81
      %p87 = scmp.eq.s32.totalorder %s16, 0
      %p88 = por %p86, %p87
      %p89 = scmp.ne.s32.totalorder %s78, %s81
      %p90 = scmp.eq.s32.totalorder %s21, 7
      %p91 = por %p89, %p90
      %p92 = scmp.ne.s32.totalorder %s81, %s82
      %p93 = scmp.eq.s32.totalorder %s21, 0
      %p94 = por %p92, %p93
      %p95 = scmp.ne.s32.totalorder %s81, %s82
      %p96 = scmp.eq.s32.totalorder %s22, 7
      %p97 = por %p95, %p96
      %p99 = scmp.ne.s32.totalorder %s82, %s98
      %p100 = scmp.eq.s32.totalorder %s22, 0
      %p101 = por %p99, %p100
      %s103 = sadd.s32 %s102, 1
      %p106 = scmp.eq.s32.totalorder %s16, 7
      %p107 = scmp.ne.s32.totalorder %s102, %s104
      %p108 = scmp.eq.s32.totalorder %s16, 0
      %p109 = por %p107, %p108
      %p110 = scmp.ne.s32.totalorder %s102, %s104
      %p111 = scmp.eq.s32.totalorder %s21, 7
      %p112 = por %p110, %p111
      %p113 = scmp.ne.s32.totalorder %s104, %s105
      %p114 = scmp.eq.s32.totalorder %s21, 0
      %p115 = por %p113, %p114
      %p116 = scmp.ne.s32.totalorder %s104, %s105
      %p117 = scmp.eq.s32.totalorder %s22, 7
      %p118 = por %p116, %p117
      %p120 = scmp.ne.s32.totalorder %s105, %s119
      %p121 = scmp.eq.s32.totalorder %s22, 0
      %p122 = por %p120, %p121
      %s124 = sadd.s32 %s123, 1
      %p127 = scmp.eq.s32.totalorder %s16, 7
      %p128 = scmp.ne.s32.totalorder %s123, %s125
      %p129 = scmp.eq.s32.totalorder %s16, 0
      %p130 = por %p128, %p129
      %p131 = scmp.ne.s32.totalorder %s123, %s125
      %p132 = scmp.eq.s32.totalorder %s21, 7
      %p133 = por %p131, %p132
      %p134 = scmp.ne.s32.totalorder %s125, %s126
      %p135 = scmp.eq.s32.totalorder %s21, 0
      %p136 = por %p134, %p135
      %p137 = scmp.ne.s32.totalorder %s125, %s126
      %p138 = scmp.eq.s32.totalorder %s22, 7
      %p139 = por %p137, %p138
      %p141 = scmp.ne.s32.totalorder %s126, %s140
      %p142 = scmp.eq.s32.totalorder %s22, 0
      %p143 = por %p141, %p142
      %s145 = sadd.s32 %s144, 1
      %p148 = scmp.eq.s32.totalorder %s16, 7
      %p149 = scmp.ne.s32.totalorder %s144, %s146
      %p150 = scmp.eq.s32.totalorder %s16, 0
      %p151 = por %p149, %p150
      %p152 = scmp.ne.s32.totalorder %s144, %s146
      %p153 = scmp.eq.s32.totalorder %s21, 7
      %p154 = por %p152, %p153
      %p155 = scmp.ne.s32.totalorder %s146, %s147
      %p156 = scmp.eq.s32.totalorder %s21, 0
      %p157 = por %p155, %p156
      %p158 = scmp.ne.s32.totalorder %s146, %s147
      %p159 = scmp.eq.s32.totalorder %s22, 7
      %p160 = por %p158, %p159
      %p162 = scmp.ne.s32.totalorder %s147, %s161
      %p163 = scmp.eq.s32.totalorder %s22, 0
      %p164 = por %p162, %p163
      %s166 = sadd.s32 %s165, 1
      %p169 = scmp.eq.s32.totalorder %s16, 7
      %p170 = scmp.ne.s32.totalorder %s165, %s167
      %p171 = scmp.eq.s32.totalorder %s16, 0
      %p172 = por %p170, %p171
      %p173 = scmp.ne.s32.totalorder %s165, %s167
      %p174 = scmp.eq.s32.totalorder %s21, 7
      %p175 = por %p173, %p174
      %p176 = scmp.ne.s32.totalorder %s167, %s168
      %p177 = scmp.eq.s32.totalorder %s21, 0
      %p178 = por %p176, %p177
      %p179 = scmp.ne.s32.totalorder %s167, %s168
      %p180 = scmp.eq.s32.totalorder %s22, 7
      %p181 = por %p179, %p180
      %p183 = scmp.ne.s32.totalorder %s168, %s182
      %p184 = scmp.eq.s32.totalorder %s22, 0
      %p185 = por %p183, %p184
      %s186 = ssub.s32 %s16, %s23
      %p187 = scmp.eq.s32.totalorder %s186, 0
      %s189 = sadd.s32 %s188, 1
      %s190 = scalar_select %p187, %s188, %s189
      %p193 = pneg %p187
      %p194 = scmp.eq.s32.totalorder %s16, 7
      %p195 = por %p193, %p194
      %p196 = scmp.ne.s32.totalorder %s188, %s191
      %p197 = scmp.eq.s32.totalorder %s16, 0
      %p198 = por %p196, %p197
      %p199 = scmp.ne.s32.totalorder %s188, %s191
      %p200 = scmp.eq.s32.totalorder %s21, 7
      %p201 = por %p199, %p200
      %p202 = scmp.ne.s32.totalorder %s191, %s192
      %p203 = scmp.eq.s32.totalorder %s21, 0
      %p204 = por %p202, %p203
      %p205 = scmp.ne.s32.totalorder %s191, %s192
      %p206 = scmp.eq.s32.totalorder %s22, 7
      %p207 = por %p205, %p206
      %p209 = scmp.ne.s32.totalorder %s192, %s208
      %p210 = scmp.eq.s32.totalorder %s22, 0
      %p211 = por %p209, %p210
      %p212 = scmp.le.s32.totalorder 1, %s16
      %p213 = scmp.lt.s32.totalorder %s16, 9
      %p214 = pnand %p212, %p213
      %p215 = pneg %p214
      // Predicated region
      $region9: #{tpu_custom_call.1} parent=5 // pred_check
        _
      $region10: #{tpu_custom_call.1} parent=5 // pred_check_branch
        %217 = sbr.rel (%p214) target = $region12
      $region11: #{tpu_custom_call.1} parent=5 // pred_region
        %s218 = ssub.s32 %s16, 1
        // Predicated region
        $region13: #{tpu_custom_call.1} parent=11 // pred_check
          %p219 = pneg %p115
        $region14: #{tpu_custom_call.1} parent=11 // pred_check_branch
          %221 = sbr.rel (%p219) target = $region16
        $region15: #{tpu_custom_call.1} parent=11 // pred_region
          _
        $region16: #{tpu_custom_call.1} parent=11 // pred_fallthru
          _
        // Predicated region
        $region17: #{tpu_custom_call.1} parent=11 // pred_check
          %p222 = pneg %p136
        $region18: #{tpu_custom_call.1} parent=11 // pred_check_branch
          %224 = sbr.rel (%p222) target = $region20
        $region19: #{tpu_custom_call.1} parent=11 // pred_region
          _
        $region20: #{tpu_custom_call.1} parent=11 // pred_fallthru
          _
        // Predicated region
        $region21: #{tpu_custom_call.1} parent=11 // pred_check
          %p225 = pneg %p157
        $region22: #{tpu_custom_call.1} parent=11 // pred_check_branch
          %227 = sbr.rel (%p225) target = $region24
        $region23: #{tpu_custom_call.1} parent=11 // pred_region
          _
        $region24: #{tpu_custom_call.1} parent=11 // pred_fallthru
          _
        // Predicated region
        $region25: #{tpu_custom_call.1} parent=11 // pred_check
          %p228 = pneg %p178
        $region26: #{tpu_custom_call.1} parent=11 // pred_check_branch
          %230 = sbr.rel (%p228) target = $region28
        $region27: #{tpu_custom_call.1} parent=11 // pred_region
          _
        $region28: #{tpu_custom_call.1} parent=11 // pred_fallthru
          _
      $region12: #{tpu_custom_call.1} parent=5 // pred_fallthru
        _
      %p231 = scmp.lt.s32.totalorder %s16, 8
      // Predicated region
      $region29: #{tpu_custom_call.1} parent=5 // pred_check
        %p232 = pneg %p231
      $region30: #{tpu_custom_call.1} parent=5 // pred_check_branch
        %234 = sbr.rel (%p232) target = $region32
      $region31: #{tpu_custom_call.1} parent=5 // pred_region
        // Predicated region
        $region33: #{tpu_custom_call.1} parent=31 // pred_check
          %p235 = pneg %p36
        $region34: #{tpu_custom_call.1} parent=31 // pred_check_branch
          %237 = sbr.rel (%p235) target = $region36
        $region35: #{tpu_custom_call.1} parent=31 // pred_region
          %s238 = smul.u32 32, %s16
          %p239 = scmp.lt.s32.totalorder %s238, 255
          %s240 = scalar_select %p239, %s238, 255
          %s241 = smul.addr %s240, 4
          %s242 = scalar_lea.vmem %s0, %s241
          %s243 = smul.u32 32, %s16
        $region36: #{tpu_custom_call.1} parent=31 // pred_fallthru
          _
        // Predicated region
        $region37: #{tpu_custom_call.1} parent=31 // pred_check
          %p244 = pneg %p62
        $region38: #{tpu_custom_call.1} parent=31 // pred_check_branch
          %246 = sbr.rel (%p244) target = $region40
        $region39: #{tpu_custom_call.1} parent=31 // pred_region
          %s247 = smul.u32 32, %s16
          %p248 = scmp.lt.s32.totalorder %s247, 255
          %s249 = scalar_select %p248, %s247, 255
          %s250 = smul.addr %s249, 4
          %s251 = scalar_lea.vmem %s1, %s250
          %s252 = smul.u32 32, %s16
        $region40: #{tpu_custom_call.1} parent=31 // pred_fallthru
          _
        // Predicated region
        $region41: #{tpu_custom_call.1} parent=31 // pred_check
          %p253 = pneg %p88
        $region42: #{tpu_custom_call.1} parent=31 // pred_check_branch
          %255 = sbr.rel (%p253) target = $region44
        $region43: #{tpu_custom_call.1} parent=31 // pred_region
          %s256 = smul.u32 32, %s16
          %p257 = scmp.lt.s32.totalorder %s256, 255
          %s258 = scalar_select %p257, %s256, 255
          %s259 = smul.addr %s258, 8
          %s260 = scalar_lea.vmem %s2, %s259
          %s261 = smul.u32 32, %s16
        $region44: #{tpu_custom_call.1} parent=31 // pred_fallthru
          _
      $region32: #{tpu_custom_call.1} parent=5 // pred_fallthru
        _
      %p262 = scmp.le.s32.totalorder 1, %s16
      %p263 = scmp.lt.s32.totalorder %s16, 9
      %p264 = pnand %p262, %p263
      %p265 = pneg %p264
      // Predicated region
      $region45: #{tpu_custom_call.1} parent=5 // pred_check
        _
      $region46: #{tpu_custom_call.1} parent=5 // pred_check_branch
        %267 = sbr.rel (%p264) target = $region48
      $region47: #{tpu_custom_call.1} parent=5 // pred_region
        %s268 = ssub.s32 %s16, 1
        %s269 = smul.u32 32, %s21
        %p270 = scmp.lt.s32.totalorder %s269, 255
        %s271 = scalar_select %p270, %s269, 255
        %s272 = smul.addr %s271, 4
        %s273 = scalar_lea.vmem %s0, %s272
        %p274 = pneg %p42
        %p275 = pneg %p39
        %s276 = smul.u32 32, %s21
        %p277 = scmp.lt.s32.totalorder %s276, 255
        %s278 = scalar_select %p277, %s276, 255
        %s279 = smul.addr %s278, 4
        %s280 = scalar_lea.vmem %s1, %s279
        %p281 = pneg %p68
        %p282 = pneg %p65
        %s283 = smul.u32 32, %s21
        %p284 = scmp.lt.s32.totalorder %s283, 255
        %s285 = scalar_select %p284, %s283, 255
        %s286 = smul.addr %s285, 8
        %s287 = scalar_lea.vmem %s2, %s286
        %p288 = pneg %p94
        %p289 = pneg %p91
        %p290 = pneg %p115
        %p291 = pneg %p112
        %p292 = pneg %p136
        %p293 = pneg %p133
        %p294 = pneg %p157
        %p295 = pneg %p154
        %p296 = pneg %p178
        %p297 = pneg %p175
        %p298 = pneg %p204
        %p299 = pneg %p201
        %s300 = sand.u32 %s191, 1
        %s301 = scalar_lea.sflag [#allocation3], %s300
        %s302 = sand.u32 %s191, 1
        %s303 = smul.addr %s302, 16
        %s304 = scalar_lea.vmem [#allocation2], %s303
        %s305 = smul.u32 32, %s21
        %p306 = scmp.lt.s32.totalorder %s305, 255
        %s307 = scalar_select %p306, %s305, 255
        %s308 = smul.addr %s307, 4
        %s309 = scalar_lea.vmem %s0, %s308
        %s310 = smul.u32 32, %s21
        %s311 = smul.u32 32, %s21
        %p312 = scmp.lt.s32.totalorder %s311, 255
        %s313 = scalar_select %p312, %s311, 255
        %s314 = smul.addr %s313, 4
        %s315 = scalar_lea.vmem %s1, %s314
        %s316 = smul.u32 32, %s21
        %s317 = smul.u32 32, %s21
        %p318 = scmp.lt.s32.totalorder %s317, 255
        %s319 = scalar_select %p318, %s317, 255
        %s320 = smul.addr %s319, 8
        %s321 = scalar_lea.vmem %s2, %s320
        %s322 = smul.u32 32, %s21
        %s323 = smul.u32 4, %s21
        %v325 = vld [vmem:[%s309] sm:$0xf]
        %v326 = vld [vmem:[%s309 + $0x4] sm:$0xf]
        %v327 = vld [vmem:[%s309 + $0x8] sm:$0xf]
        %v328 = vld [vmem:[%s309 + $0xc] sm:$0xf]
        %v329 = vld [vmem:[%s309 + $0x10] sm:$0xf]
        %v330 = vld [vmem:[%s309 + $0x14] sm:$0xf]
        %v331 = vld [vmem:[%s309 + $0x18] sm:$0xf]
        %v332 = vld [vmem:[%s309 + $0x1c] sm:$0xf]
        %v333 = vld [vmem:[%s309 + $0x20] sm:$0xf]
        %v334 = vld [vmem:[%s309 + $0x24] sm:$0xf]
        %v335 = vld [vmem:[%s309 + $0x28] sm:$0xf]
        %v336 = vld [vmem:[%s309 + $0x2c] sm:$0xf]
        %v337 = vld [vmem:[%s309 + $0x30] sm:$0xf]
        %v338 = vld [vmem:[%s309 + $0x34] sm:$0xf]
        %v339 = vld [vmem:[%s309 + $0x38] sm:$0xf]
        %v340 = vld [vmem:[%s309 + $0x3c] sm:$0xf]
        %v341 = vld [vmem:[%s309 + $0x40] sm:$0xf]
        %v342 = vld [vmem:[%s309 + $0x44] sm:$0xf]
        %v343 = vld [vmem:[%s309 + $0x48] sm:$0xf]
        %v344 = vld [vmem:[%s309 + $0x4c] sm:$0xf]
        %v345 = vld [vmem:[%s309 + $0x50] sm:$0xf]
        %v346 = vld [vmem:[%s309 + $0x54] sm:$0xf]
        %v347 = vld [vmem:[%s309 + $0x58] sm:$0xf]
        %v348 = vld [vmem:[%s309 + $0x5c] sm:$0xf]
        %v349 = vld [vmem:[%s309 + $0x60] sm:$0xf]
        %v350 = vld [vmem:[%s309 + $0x64] sm:$0xf]
        %v351 = vld [vmem:[%s309 + $0x68] sm:$0xf]
        %v352 = vld [vmem:[%s309 + $0x6c] sm:$0xf]
        %v353 = vld [vmem:[%s309 + $0x70] sm:$0xf]
        %v354 = vld [vmem:[%s309 + $0x74] sm:$0xf]
        %v355 = vld [vmem:[%s309 + $0x78] sm:$0xf]
        %v356 = vld [vmem:[%s309 + $0x7c] sm:$0xf]
        %v357 = vld [vmem:[%s3] sm:$0xf]
        %v358 = vld [vmem:[%s3 + $0x4] sm:$0xf]
        %v359 = vld [vmem:[%s3 + $0x8] sm:$0xf]
        %v360 = vld [vmem:[%s3 + $0xc] sm:$0xf]
        %v361 = vld [vmem:[%s4] sm:$0x1]
        %v363 = vlaneseq
        %v364 = vshrl.u32 %v363, 7
        %v365 = vsub.s32 0, %v364
        %v366 = vrot.slane %v361, %v365
        %v400 = vunpack.c.l.b16 %v325
        %v401 = vunpack.c.l.b16 %v326
        %v402 = vunpack.c.l.b16 %v327
        %v403 = vunpack.c.l.b16 %v328
        %v404 = vunpack.c.l.b16 %v329
        %v405 = vunpack.c.l.b16 %v330
        %v406 = vunpack.c.l.b16 %v331
        %v407 = vunpack.c.l.b16 %v332
        %v408 = vunpack.c.l.b16 %v333
        %v409 = vunpack.c.l.b16 %v334
        %v410 = vunpack.c.l.b16 %v335
        %v411 = vunpack.c.l.b16 %v336
        %v412 = vunpack.c.l.b16 %v337
        %v413 = vunpack.c.l.b16 %v338
        %v414 = vunpack.c.l.b16 %v339
        %v415 = vunpack.c.l.b16 %v340
        %v416 = vunpack.c.l.b16 %v341
        %v417 = vunpack.c.l.b16 %v342
        %v418 = vunpack.c.l.b16 %v343
        %v419 = vunpack.c.l.b16 %v344
        %v420 = vunpack.c.l.b16 %v345
        %v421 = vunpack.c.l.b16 %v346
        %v422 = vunpack.c.l.b16 %v347
        %v423 = vunpack.c.l.b16 %v348
        %v424 = vunpack.c.l.b16 %v349
        %v425 = vunpack.c.l.b16 %v350
        %v426 = vunpack.c.l.b16 %v351
        %v427 = vunpack.c.l.b16 %v352
        %v428 = vunpack.c.l.b16 %v353
        %v429 = vunpack.c.l.b16 %v354
        %v430 = vunpack.c.l.b16 %v355
        %v431 = vunpack.c.l.b16 %v356
        %v432 = vpack.c.b16 %v401, %v400
        %v433 = vpack.c.b16 %v403, %v402
        %v434 = vpack.c.b16 %v405, %v404
        %v435 = vpack.c.b16 %v407, %v406
        %v436 = vpack.c.b16 %v409, %v408
        %v437 = vpack.c.b16 %v411, %v410
        %v438 = vpack.c.b16 %v413, %v412
        %v439 = vpack.c.b16 %v415, %v414
        %v440 = vpack.c.b16 %v417, %v416
        %v441 = vpack.c.b16 %v419, %v418
        %v442 = vpack.c.b16 %v421, %v420
        %v443 = vpack.c.b16 %v423, %v422
        %v444 = vpack.c.b16 %v425, %v424
        %v445 = vpack.c.b16 %v427, %v426
        %v446 = vpack.c.b16 %v429, %v428
        %v447 = vpack.c.b16 %v431, %v430
        %v452 = vunpack.c.l.b16 %v357
        %v453 = vunpack.c.l.b16 %v358
        %v454 = vunpack.c.l.b16 %v359
        %v455 = vunpack.c.l.b16 %v360
        %v456 = vpack.c.b16 %v453, %v452
        %v457 = vpack.c.b16 %v455, %v454
        %vm460 = vcmask 261120
        %v462 = vsel %vm460, %v432, 0
        %v465 = vsel %vm460, %v433, 0
        %v468 = vsel %vm460, %v434, 0
        %v471 = vsel %vm460, %v435, 0
        %v474 = vsel %vm460, %v436, 0
        %v477 = vsel %vm460, %v437, 0
        %v480 = vsel %vm460, %v438, 0
        %v483 = vsel %vm460, %v439, 0
        %v486 = vsel %vm460, %v440, 0
        %v489 = vsel %vm460, %v441, 0
        %v492 = vsel %vm460, %v442, 0
        %v495 = vsel %vm460, %v443, 0
        %v498 = vsel %vm460, %v444, 0
        %v501 = vsel %vm460, %v445, 0
        %v504 = vsel %vm460, %v446, 0
        %v507 = vsel %vm460, %v447, 0
        %509 = vmatprep.subr.bf16.mxu0 0
        %510 = vmatpush1.bf16.msra.mxu0 %v456
        %511 = vmatprep.subr.bf16.mxu0 0
        %512 = vmatpush1.bf16.msra.mxu0 %v457
        %513 = vmatprep.subr.bf16.mxu0 0
        %514 = vmatpush1.bf16.msra.mxu0 0
        %515 = vmatprep.subr.bf16.mxu0 0
        %516 = vmatpush1.bf16.msra.mxu0 0
        %517 = vmatprep.subr.bf16.mxu0 0
        %518 = vmatpush1.bf16.msra.mxu0 0
        %519 = vmatprep.subr.bf16.mxu0 0
        %520 = vmatpush1.bf16.msra.mxu0 0
        %521 = vmatprep.subr.bf16.mxu0 0
        %522 = vmatpush1.bf16.msra.mxu0 0
        %523 = vmatprep.subr.bf16.mxu0 0
        %524 = vmatpush1.bf16.msra.mxu0 0
        %525 = vmatprep.subr.bf16.mxu0 0
        %526 = vmatpush1.bf16.msra.mxu0 0
        %527 = vmatprep.subr.bf16.mxu0 0
        %528 = vmatpush1.bf16.msra.mxu0 0
        %529 = vmatprep.subr.bf16.mxu0 0
        %530 = vmatpush1.bf16.msra.mxu0 0
        %531 = vmatprep.subr.bf16.mxu0 0
        %532 = vmatpush1.bf16.msra.mxu0 0
        %533 = vmatprep.subr.bf16.mxu0 0
        %534 = vmatpush1.bf16.msra.mxu0 0
        %535 = vmatprep.subr.bf16.mxu0 0
        %536 = vmatpush1.bf16.msra.mxu0 0
        %537 = vmatprep.subr.bf16.mxu0 0
        %538 = vmatpush1.bf16.msra.mxu0 0
        %539 = vmatprep.subr.bf16.mxu0 0
        %540 = vmatpush1.bf16.msra.mxu0 0
        %541 = vmatprep.mubr.bf16.mxu0 0
        %542 = vmatmul.mubr.bf16.gmra.mrb[0].mxu0 %v462
        %v543 = vpop.f32.mrb[0].mxu0
        %v544 = vadd.f32 %v366, %v543
        %v545 = vpop.f32.mrb[0].mxu0
        %v546 = vpop.f32.mrb[0].mxu0
        %v547 = vadd.f32 %v366, %v546
        %v548 = vpop.f32.mrb[0].mxu0
        %549 = vmatprep.mubr.bf16.mxu0 0
        %550 = vmatmul.mubr.bf16.gmra.mrb[0].mxu0 %v465
        %v551 = vpop.f32.mrb[0].mxu0
        %v552 = vadd.f32 %v366, %v551
        %v553 = vpop.f32.mrb[0].mxu0
        %v554 = vpop.f32.mrb[0].mxu0
        %v555 = vadd.f32 %v366, %v554
        %v556 = vpop.f32.mrb[0].mxu0
        %557 = vmatprep.mubr.bf16.mxu0 0
        %558 = vmatmul.mubr.bf16.gmra.mrb[0].mxu0 %v468
        %v559 = vpop.f32.mrb[0].mxu0
        %v560 = vadd.f32 %v366, %v559
        %v561 = vpop.f32.mrb[0].mxu0
        %v562 = vpop.f32.mrb[0].mxu0
        %v563 = vadd.f32 %v366, %v562
        %v564 = vpop.f32.mrb[0].mxu0
        %565 = vmatprep.mubr.bf16.mxu0 0
        %566 = vmatmul.mubr.bf16.gmra.mrb[0].mxu0 %v471
        %v567 = vpop.f32.mrb[0].mxu0
        %v568 = vadd.f32 %v366, %v567
        %v569 = vpop.f32.mrb[0].mxu0
        %v570 = vpop.f32.mrb[0].mxu0
        %v571 = vadd.f32 %v366, %v570
        %v572 = vpop.f32.mrb[0].mxu0
        %573 = vmatprep.mubr.bf16.mxu0 0
        %574 = vmatmul.mubr.bf16.gmra.mrb[0].mxu0 %v474
        %v575 = vpop.f32.mrb[0].mxu0
        %v576 = vadd.f32 %v366, %v575
        %v577 = vpop.f32.mrb[0].mxu0
        %v578 = vpop.f32.mrb[0].mxu0
        %v579 = vadd.f32 %v366, %v578
        %v580 = vpop.f32.mrb[0].mxu0
        %581 = vmatprep.mubr.bf16.mxu0 0
        %582 = vmatmul.mubr.bf16.gmra.mrb[0].mxu0 %v477
        %v583 = vpop.f32.mrb[0].mxu0
        %v584 = vadd.f32 %v366, %v583
        %v585 = vpop.f32.mrb[0].mxu0
        %v586 = vpop.f32.mrb[0].mxu0
        %v587 = vadd.f32 %v366, %v586
        %v588 = vpop.f32.mrb[0].mxu0
        %589 = vmatprep.mubr.bf16.mxu0 0
        %590 = vmatmul.mubr.bf16.gmra.mrb[0].mxu0 %v480
        %v591 = vpop.f32.mrb[0].mxu0
        %v592 = vadd.f32 %v366, %v591
        %v593 = vpop.f32.mrb[0].mxu0
        %v594 = vpop.f32.mrb[0].mxu0
        %v595 = vadd.f32 %v366, %v594
        %v596 = vpop.f32.mrb[0].mxu0
        %597 = vmatprep.mubr.bf16.mxu0 0
        %598 = vmatmul.mubr.bf16.gmra.mrb[0].mxu0 %v483
        %v599 = vpop.f32.mrb[0].mxu0
        %v600 = vadd.f32 %v366, %v599
        %v601 = vpop.f32.mrb[0].mxu0
        %v602 = vpop.f32.mrb[0].mxu0
        %v603 = vadd.f32 %v366, %v602
        %v604 = vpop.f32.mrb[0].mxu0
        %605 = vmatprep.mubr.bf16.mxu0 0
        %606 = vmatmul.mubr.bf16.gmra.mrb[0].mxu0 %v486
        %v607 = vpop.f32.mrb[0].mxu0
        %v608 = vadd.f32 %v366, %v607
        %v609 = vpop.f32.mrb[0].mxu0
        %v610 = vpop.f32.mrb[0].mxu0
        %v611 = vadd.f32 %v366, %v610
        %v612 = vpop.f32.mrb[0].mxu0
        %613 = vmatprep.mubr.bf16.mxu0 0
        %614 = vmatmul.mubr.bf16.gmra.mrb[0].mxu0 %v489
        %v615 = vpop.f32.mrb[0].mxu0
        %v616 = vadd.f32 %v366, %v615
        %v617 = vpop.f32.mrb[0].mxu0
        %v618 = vpop.f32.mrb[0].mxu0
        %v619 = vadd.f32 %v366, %v618
        %v620 = vpop.f32.mrb[0].mxu0
        %621 = vmatprep.mubr.bf16.mxu0 0
        %622 = vmatmul.mubr.bf16.gmra.mrb[0].mxu0 %v492
        %v623 = vpop.f32.mrb[0].mxu0
        %v624 = vadd.f32 %v366, %v623
        %v625 = vpop.f32.mrb[0].mxu0
        %v626 = vpop.f32.mrb[0].mxu0
        %v627 = vadd.f32 %v366, %v626
        %v628 = vpop.f32.mrb[0].mxu0
        %629 = vmatprep.mubr.bf16.mxu0 0
        %630 = vmatmul.mubr.bf16.gmra.mrb[0].mxu0 %v495
        %v631 = vpop.f32.mrb[0].mxu0
        %v632 = vadd.f32 %v366, %v631
        %v633 = vpop.f32.mrb[0].mxu0
        %v634 = vpop.f32.mrb[0].mxu0
        %v635 = vadd.f32 %v366, %v634
        %v636 = vpop.f32.mrb[0].mxu0
        %637 = vmatprep.mubr.bf16.mxu0 0
        %638 = vmatmul.mubr.bf16.gmra.mrb[0].mxu0 %v498
        %v639 = vpop.f32.mrb[0].mxu0
        %v640 = vadd.f32 %v366, %v639
        %v641 = vpop.f32.mrb[0].mxu0
        %v642 = vpop.f32.mrb[0].mxu0
        %v643 = vadd.f32 %v366, %v642
        %v644 = vpop.f32.mrb[0].mxu0
        %645 = vmatprep.mubr.bf16.mxu0 0
        %646 = vmatmul.mubr.bf16.gmra.mrb[0].mxu0 %v501
        %v647 = vpop.f32.mrb[0].mxu0
        %v648 = vadd.f32 %v366, %v647
        %v649 = vpop.f32.mrb[0].mxu0
        %v650 = vpop.f32.mrb[0].mxu0
        %v651 = vadd.f32 %v366, %v650
        %v652 = vpop.f32.mrb[0].mxu0
        %653 = vmatprep.mubr.bf16.mxu0 0
        %654 = vmatmul.mubr.bf16.gmra.mrb[0].mxu0 %v504
        %v655 = vpop.f32.mrb[0].mxu0
        %v656 = vadd.f32 %v366, %v655
        %v657 = vpop.f32.mrb[0].mxu0
        %v658 = vpop.f32.mrb[0].mxu0
        %v659 = vadd.f32 %v366, %v658
        %v660 = vpop.f32.mrb[0].mxu0
        %661 = vmatprep.mubr.bf16.mxu0 0
        %662 = vmatmul.mubr.bf16.gmra.mrb[0].mxu0 %v507
        %v663 = vpop.f32.mrb[0].mxu0
        %v664 = vadd.f32 %v366, %v663
        %v665 = vpop.f32.mrb[0].mxu0
        %v666 = vpop.f32.mrb[0].mxu0
        %v667 = vadd.f32 %v366, %v666
        %v668 = vpop.f32.mrb[0].mxu0
        %669 = vdwg.mxu0
        %v670 = vmax.f32 %v544, 0.0
        %v671 = vmax.f32 %v547, 0.0
        %v672 = vmax.f32 %v552, 0.0
        %v673 = vmax.f32 %v555, 0.0
        %v674 = vmax.f32 %v560, 0.0
        %v675 = vmax.f32 %v563, 0.0
        %v676 = vmax.f32 %v568, 0.0
        %v677 = vmax.f32 %v571, 0.0
        %v678 = vmax.f32 %v576, 0.0
        %v679 = vmax.f32 %v579, 0.0
        %v680 = vmax.f32 %v584, 0.0
        %v681 = vmax.f32 %v587, 0.0
        %v682 = vmax.f32 %v592, 0.0
        %v683 = vmax.f32 %v595, 0.0
        %v684 = vmax.f32 %v600, 0.0
        %v685 = vmax.f32 %v603, 0.0
        %v686 = vmax.f32 %v608, 0.0
        %v687 = vmax.f32 %v611, 0.0
        %v688 = vmax.f32 %v616, 0.0
        %v689 = vmax.f32 %v619, 0.0
        %v690 = vmax.f32 %v624, 0.0
        %v691 = vmax.f32 %v627, 0.0
        %v692 = vmax.f32 %v632, 0.0
        %v693 = vmax.f32 %v635, 0.0
        %v694 = vmax.f32 %v640, 0.0
        %v695 = vmax.f32 %v643, 0.0
        %v696 = vmax.f32 %v648, 0.0
        %v697 = vmax.f32 %v651, 0.0
        %v698 = vmax.f32 %v656, 0.0
        %v699 = vmax.f32 %v659, 0.0
        %v700 = vmax.f32 %v664, 0.0
        %v701 = vmax.f32 %v667, 0.0
        %v702 = vld [vmem:[%s315] sm:$0xf]
        %v703 = vld [vmem:[%s315 + $0x4] sm:$0xf]
        %v704 = vld [vmem:[%s315 + $0x8] sm:$0xf]
        %v705 = vld [vmem:[%s315 + $0xc] sm:$0xf]
        %v706 = vld [vmem:[%s315 + $0x10] sm:$0xf]
        %v707 = vld [vmem:[%s315 + $0x14] sm:$0xf]
        %v708 = vld [vmem:[%s315 + $0x18] sm:$0xf]
        %v709 = vld [vmem:[%s315 + $0x1c] sm:$0xf]
        %v710 = vld [vmem:[%s315 + $0x20] sm:$0xf]
        %v711 = vld [vmem:[%s315 + $0x24] sm:$0xf]
        %v712 = vld [vmem:[%s315 + $0x28] sm:$0xf]
        %v713 = vld [vmem:[%s315 + $0x2c] sm:$0xf]
        %v714 = vld [vmem:[%s315 + $0x30] sm:$0xf]
        %v715 = vld [vmem:[%s315 + $0x34] sm:$0xf]
        %v716 = vld [vmem:[%s315 + $0x38] sm:$0xf]
        %v717 = vld [vmem:[%s315 + $0x3c] sm:$0xf]
        %v718 = vld [vmem:[%s315 + $0x40] sm:$0xf]
        %v719 = vld [vmem:[%s315 + $0x44] sm:$0xf]
        %v720 = vld [vmem:[%s315 + $0x48] sm:$0xf]
        %v721 = vld [vmem:[%s315 + $0x4c] sm:$0xf]
        %v722 = vld [vmem:[%s315 + $0x50] sm:$0xf]
        %v723 = vld [vmem:[%s315 + $0x54] sm:$0xf]
        %v724 = vld [vmem:[%s315 + $0x58] sm:$0xf]
        %v725 = vld [vmem:[%s315 + $0x5c] sm:$0xf]
        %v726 = vld [vmem:[%s315 + $0x60] sm:$0xf]
        %v727 = vld [vmem:[%s315 + $0x64] sm:$0xf]
        %v728 = vld [vmem:[%s315 + $0x68] sm:$0xf]
        %v729 = vld [vmem:[%s315 + $0x6c] sm:$0xf]
        %v730 = vld [vmem:[%s315 + $0x70] sm:$0xf]
        %v731 = vld [vmem:[%s315 + $0x74] sm:$0xf]
        %v732 = vld [vmem:[%s315 + $0x78] sm:$0xf]
        %v733 = vld [vmem:[%s315 + $0x7c] sm:$0xf]
        %v734 = vld [vmem:[%s5] sm:$0xf]
        %v735 = vld [vmem:[%s5 + $0x4] sm:$0xf]
        %v736 = vld [vmem:[%s5 + $0x8] sm:$0xf]
        %v737 = vld [vmem:[%s5 + $0xc] sm:$0xf]
        %v738 = vld [vmem:[%s6] sm:$0x1]
        %v740 = vlaneseq
        %v741 = vshrl.u32 %v740, 7
        %v742 = vsub.s32 0, %v741
        %v743 = vrot.slane %v738, %v742
        %v777 = vunpack.c.l.b16 %v702
        %v778 = vunpack.c.l.b16 %v703
        %v779 = vunpack.c.l.b16 %v704
        %v780 = vunpack.c.l.b16 %v705
        %v781 = vunpack.c.l.b16 %v706
        %v782 = vunpack.c.l.b16 %v707
        %v783 = vunpack.c.l.b16 %v708
        %v784 = vunpack.c.l.b16 %v709
        %v785 = vunpack.c.l.b16 %v710
        %v786 = vunpack.c.l.b16 %v711
        %v787 = vunpack.c.l.b16 %v712
        %v788 = vunpack.c.l.b16 %v713
        %v789 = vunpack.c.l.b16 %v714
        %v790 = vunpack.c.l.b16 %v715
        %v791 = vunpack.c.l.b16 %v716
        %v792 = vunpack.c.l.b16 %v717
        %v793 = vunpack.c.l.b16 %v718
        %v794 = vunpack.c.l.b16 %v719
        %v795 = vunpack.c.l.b16 %v720
        %v796 = vunpack.c.l.b16 %v721
        %v797 = vunpack.c.l.b16 %v722
        %v798 = vunpack.c.l.b16 %v723
        %v799 = vunpack.c.l.b16 %v724
        %v800 = vunpack.c.l.b16 %v725
        %v801 = vunpack.c.l.b16 %v726
        %v802 = vunpack.c.l.b16 %v727
        %v803 = vunpack.c.l.b16 %v728
        %v804 = vunpack.c.l.b16 %v729
        %v805 = vunpack.c.l.b16 %v730
        %v806 = vunpack.c.l.b16 %v731
        %v807 = vunpack.c.l.b16 %v732
        %v808 = vunpack.c.l.b16 %v733
        %v809 = vpack.c.b16 %v778, %v777
        %v810 = vpack.c.b16 %v780, %v779
        %v811 = vpack.c.b16 %v782, %v781
        %v812 = vpack.c.b16 %v784, %v783
        %v813 = vpack.c.b16 %v786, %v785
        %v814 = vpack.c.b16 %v788, %v787
        %v815 = vpack.c.b16 %v790, %v789
        %v816 = vpack.c.b16 %v792, %v791
        %v817 = vpack.c.b16 %v794, %v793
        %v818 = vpack.c.b16 %v796, %v795
        %v819 = vpack.c.b16 %v798, %v797
        %v820 = vpack.c.b16 %v800, %v799
        %v821 = vpack.c.b16 %v802, %v801
        %v822 = vpack.c.b16 %v804, %v803
        %v823 = vpack.c.b16 %v806, %v805
        %v824 = vpack.c.b16 %v808, %v807
        %v829 = vunpack.c.l.b16 %v734
        %v830 = vunpack.c.l.b16 %v735
        %v831 = vunpack.c.l.b16 %v736
        %v832 = vunpack.c.l.b16 %v737
        %v833 = vpack.c.b16 %v830, %v829
        %v834 = vpack.c.b16 %v832, %v831
        %v838 = vsel %vm460, %v809, 0
        %v841 = vsel %vm460, %v810, 0
        %v844 = vsel %vm460, %v811, 0
        %v847 = vsel %vm460, %v812, 0
        %v850 = vsel %vm460, %v813, 0
        %v853 = vsel %vm460, %v814, 0
        %v856 = vsel %vm460, %v815, 0
        %v859 = vsel %vm460, %v816, 0
        %v862 = vsel %vm460, %v817, 0
        %v865 = vsel %vm460, %v818, 0
        %v868 = vsel %vm460, %v819, 0
        %v871 = vsel %vm460, %v820, 0
        %v874 = vsel %vm460, %v821, 0
        %v877 = vsel %vm460, %v822, 0
        %v880 = vsel %vm460, %v823, 0
        %v883 = vsel %vm460, %v824, 0
        %885 = vmatprep.subr.bf16.mxu0 0
        %886 = vmatpush1.bf16.msra.mxu0 %v833
        %887 = vmatprep.subr.bf16.mxu0 0
        %888 = vmatpush1.bf16.msra.mxu0 %v834
        %889 = vmatprep.subr.bf16.mxu0 0
        %890 = vmatpush1.bf16.msra.mxu0 0
        %891 = vmatprep.subr.bf16.mxu0 0
        %892 = vmatpush1.bf16.msra.mxu0 0
        %893 = vmatprep.subr.bf16.mxu0 0
        %894 = vmatpush1.bf16.msra.mxu0 0
        %895 = vmatprep.subr.bf16.mxu0 0
        %896 = vmatpush1.bf16.msra.mxu0 0
        %897 = vmatprep.subr.bf16.mxu0 0
        %898 = vmatpush1.bf16.msra.mxu0 0
        %899 = vmatprep.subr.bf16.mxu0 0
        %900 = vmatpush1.bf16.msra.mxu0 0
        %901 = vmatprep.subr.bf16.mxu0 0
        %902 = vmatpush1.bf16.msra.mxu0 0
        %903 = vmatprep.subr.bf16.mxu0 0
        %904 = vmatpush1.bf16.msra.mxu0 0
        %905 = vmatprep.subr.bf16.mxu0 0
        %906 = vmatpush1.bf16.msra.mxu0 0
        %907 = vmatprep.subr.bf16.mxu0 0
        %908 = vmatpush1.bf16.msra.mxu0 0
        %909 = vmatprep.subr.bf16.mxu0 0
        %910 = vmatpush1.bf16.msra.mxu0 0
        %911 = vmatprep.subr.bf16.mxu0 0
        %912 = vmatpush1.bf16.msra.mxu0 0
        %913 = vmatprep.subr.bf16.mxu0 0
        %914 = vmatpush1.bf16.msra.mxu0 0
        %915 = vmatprep.subr.bf16.mxu0 0
        %916 = vmatpush1.bf16.msra.mxu0 0
        %917 = vmatprep.mubr.bf16.mxu0 0
        %918 = vmatmul.mubr.bf16.gmra.mrb[0].mxu0 %v838
        %v919 = vpop.f32.mrb[0].mxu0
        %v920 = vadd.f32 %v743, %v919
        %v921 = vpop.f32.mrb[0].mxu0
        %v922 = vpop.f32.mrb[0].mxu0
        %v923 = vadd.f32 %v743, %v922
        %v924 = vpop.f32.mrb[0].mxu0
        %925 = vmatprep.mubr.bf16.mxu0 0
        %926 = vmatmul.mubr.bf16.gmra.mrb[0].mxu0 %v841
        %v927 = vpop.f32.mrb[0].mxu0
        %v928 = vadd.f32 %v743, %v927
        %v929 = vpop.f32.mrb[0].mxu0
        %v930 = vpop.f32.mrb[0].mxu0
        %v931 = vadd.f32 %v743, %v930
        %v932 = vpop.f32.mrb[0].mxu0
        %933 = vmatprep.mubr.bf16.mxu0 0
        %934 = vmatmul.mubr.bf16.gmra.mrb[0].mxu0 %v844
        %v935 = vpop.f32.mrb[0].mxu0
        %v936 = vadd.f32 %v743, %v935
        %v937 = vpop.f32.mrb[0].mxu0
        %v938 = vpop.f32.mrb[0].mxu0
        %v939 = vadd.f32 %v743, %v938
        %v940 = vpop.f32.mrb[0].mxu0
        %941 = vmatprep.mubr.bf16.mxu0 0
        %942 = vmatmul.mubr.bf16.gmra.mrb[0].mxu0 %v847
        %v943 = vpop.f32.mrb[0].mxu0
        %v944 = vadd.f32 %v743, %v943
        %v945 = vpop.f32.mrb[0].mxu0
        %v946 = vpop.f32.mrb[0].mxu0
        %v947 = vadd.f32 %v743, %v946
        %v948 = vpop.f32.mrb[0].mxu0
        %949 = vmatprep.mubr.bf16.mxu0 0
        %950 = vmatmul.mubr.bf16.gmra.mrb[0].mxu0 %v850
        %v951 = vpop.f32.mrb[0].mxu0
        %v952 = vadd.f32 %v743, %v951
        %v953 = vpop.f32.mrb[0].mxu0
        %v954 = vpop.f32.mrb[0].mxu0
        %v955 = vadd.f32 %v743, %v954
        %v956 = vpop.f32.mrb[0].mxu0
        %957 = vmatprep.mubr.bf16.mxu0 0
        %958 = vmatmul.mubr.bf16.gmra.mrb[0].mxu0 %v853
        %v959 = vpop.f32.mrb[0].mxu0
        %v960 = vadd.f32 %v743, %v959
        %v961 = vpop.f32.mrb[0].mxu0
        %v962 = vpop.f32.mrb[0].mxu0
        %v963 = vadd.f32 %v743, %v962
        %v964 = vpop.f32.mrb[0].mxu0
        %965 = vmatprep.mubr.bf16.mxu0 0
        %966 = vmatmul.mubr.bf16.gmra.mrb[0].mxu0 %v856
        %v967 = vpop.f32.mrb[0].mxu0
        %v968 = vadd.f32 %v743, %v967
        %v969 = vpop.f32.mrb[0].mxu0
        %v970 = vpop.f32.mrb[0].mxu0
        %v971 = vadd.f32 %v743, %v970
        %v972 = vpop.f32.mrb[0].mxu0
        %973 = vmatprep.mubr.bf16.mxu0 0
        %974 = vmatmul.mubr.bf16.gmra.mrb[0].mxu0 %v859
        %v975 = vpop.f32.mrb[0].mxu0
        %v976 = vadd.f32 %v743, %v975
        %v977 = vpop.f32.mrb[0].mxu0
        %v978 = vpop.f32.mrb[0].mxu0
        %v979 = vadd.f32 %v743, %v978
        %v980 = vpop.f32.mrb[0].mxu0
        %981 = vmatprep.mubr.bf16.mxu0 0
        %982 = vmatmul.mubr.bf16.gmra.mrb[0].mxu0 %v862
        %v983 = vpop.f32.mrb[0].mxu0
        %v984 = vadd.f32 %v743, %v983
        %v985 = vpop.f32.mrb[0].mxu0
        %v986 = vpop.f32.mrb[0].mxu0
        %v987 = vadd.f32 %v743, %v986
        %v988 = vpop.f32.mrb[0].mxu0
        %989 = vmatprep.mubr.bf16.mxu0 0
        %990 = vmatmul.mubr.bf16.gmra.mrb[0].mxu0 %v865
        %v991 = vpop.f32.mrb[0].mxu0
        %v992 = vadd.f32 %v743, %v991
        %v993 = vpop.f32.mrb[0].mxu0
        %v994 = vpop.f32.mrb[0].mxu0
        %v995 = vadd.f32 %v743, %v994
        %v996 = vpop.f32.mrb[0].mxu0
        %997 = vmatprep.mubr.bf16.mxu0 0
        %998 = vmatmul.mubr.bf16.gmra.mrb[0].mxu0 %v868
        %v999 = vpop.f32.mrb[0].mxu0
        %v1000 = vadd.f32 %v743, %v999
        %v1001 = vpop.f32.mrb[0].mxu0
        %v1002 = vpop.f32.mrb[0].mxu0
        %v1003 = vadd.f32 %v743, %v1002
        %v1004 = vpop.f32.mrb[0].mxu0
        %1005 = vmatprep.mubr.bf16.mxu0 0
        %1006 = vmatmul.mubr.bf16.gmra.mrb[0].mxu0 %v871
        %v1007 = vpop.f32.mrb[0].mxu0
        %v1008 = vadd.f32 %v743, %v1007
        %v1009 = vpop.f32.mrb[0].mxu0
        %v1010 = vpop.f32.mrb[0].mxu0
        %v1011 = vadd.f32 %v743, %v1010
        %v1012 = vpop.f32.mrb[0].mxu0
        %1013 = vmatprep.mubr.bf16.mxu0 0
        %1014 = vmatmul.mubr.bf16.gmra.mrb[0].mxu0 %v874
        %v1015 = vpop.f32.mrb[0].mxu0
        %v1016 = vadd.f32 %v743, %v1015
        %v1017 = vpop.f32.mrb[0].mxu0
        %v1018 = vpop.f32.mrb[0].mxu0
        %v1019 = vadd.f32 %v743, %v1018
        %v1020 = vpop.f32.mrb[0].mxu0
        %1021 = vmatprep.mubr.bf16.mxu0 0
        %1022 = vmatmul.mubr.bf16.gmra.mrb[0].mxu0 %v877
        %v1023 = vpop.f32.mrb[0].mxu0
        %v1024 = vadd.f32 %v743, %v1023
        %v1025 = vpop.f32.mrb[0].mxu0
        %v1026 = vpop.f32.mrb[0].mxu0
        %v1027 = vadd.f32 %v743, %v1026
        %v1028 = vpop.f32.mrb[0].mxu0
        %1029 = vmatprep.mubr.bf16.mxu0 0
        %1030 = vmatmul.mubr.bf16.gmra.mrb[0].mxu0 %v880
        %v1031 = vpop.f32.mrb[0].mxu0
        %v1032 = vadd.f32 %v743, %v1031
        %v1033 = vpop.f32.mrb[0].mxu0
        %v1034 = vpop.f32.mrb[0].mxu0
        %v1035 = vadd.f32 %v743, %v1034
        %v1036 = vpop.f32.mrb[0].mxu0
        %1037 = vmatprep.mubr.bf16.mxu0 0
        %1038 = vmatmul.mubr.bf16.gmra.mrb[0].mxu0 %v883
        %v1039 = vpop.f32.mrb[0].mxu0
        %v1040 = vadd.f32 %v743, %v1039
        %v1041 = vpop.f32.mrb[0].mxu0
        %v1042 = vpop.f32.mrb[0].mxu0
        %v1043 = vadd.f32 %v743, %v1042
        %v1044 = vpop.f32.mrb[0].mxu0
        %1045 = vdwg.mxu0
        %v1046 = vmax.f32 %v920, 0.0
        %v1047 = vmax.f32 %v923, 0.0
        %v1048 = vmax.f32 %v928, 0.0
        %v1049 = vmax.f32 %v931, 0.0
        %v1050 = vmax.f32 %v936, 0.0
        %v1051 = vmax.f32 %v939, 0.0
        %v1052 = vmax.f32 %v944, 0.0
        %v1053 = vmax.f32 %v947, 0.0
        %v1054 = vmax.f32 %v952, 0.0
        %v1055 = vmax.f32 %v955, 0.0
        %v1056 = vmax.f32 %v960, 0.0
        %v1057 = vmax.f32 %v963, 0.0
        %v1058 = vmax.f32 %v968, 0.0
        %v1059 = vmax.f32 %v971, 0.0
        %v1060 = vmax.f32 %v976, 0.0
        %v1061 = vmax.f32 %v979, 0.0
        %v1062 = vmax.f32 %v984, 0.0
        %v1063 = vmax.f32 %v987, 0.0
        %v1064 = vmax.f32 %v992, 0.0
        %v1065 = vmax.f32 %v995, 0.0
        %v1066 = vmax.f32 %v1000, 0.0
        %v1067 = vmax.f32 %v1003, 0.0
        %v1068 = vmax.f32 %v1008, 0.0
        %v1069 = vmax.f32 %v1011, 0.0
        %v1070 = vmax.f32 %v1016, 0.0
        %v1071 = vmax.f32 %v1019, 0.0
        %v1072 = vmax.f32 %v1024, 0.0
        %v1073 = vmax.f32 %v1027, 0.0
        %v1074 = vmax.f32 %v1032, 0.0
        %v1075 = vmax.f32 %v1035, 0.0
        %v1076 = vmax.f32 %v1040, 0.0
        %v1077 = vmax.f32 %v1043, 0.0
        %v1078 = vld [vmem:[%s321] sm:$0xff]
        %v1079 = vld [vmem:[%s321 + $0x8] sm:$0xff]
        %v1080 = vld [vmem:[%s321 + $0x10] sm:$0xff]
        %v1081 = vld [vmem:[%s321 + $0x18] sm:$0xff]
        %v1082 = vld [vmem:[%s321 + $0x20] sm:$0xff]
        %v1083 = vld [vmem:[%s321 + $0x28] sm:$0xff]
        %v1084 = vld [vmem:[%s321 + $0x30] sm:$0xff]
        %v1085 = vld [vmem:[%s321 + $0x38] sm:$0xff]
        %v1086 = vld [vmem:[%s321 + $0x40] sm:$0xff]
        %v1087 = vld [vmem:[%s321 + $0x48] sm:$0xff]
        %v1088 = vld [vmem:[%s321 + $0x50] sm:$0xff]
        %v1089 = vld [vmem:[%s321 + $0x58] sm:$0xff]
        %v1090 = vld [vmem:[%s321 + $0x60] sm:$0xff]
        %v1091 = vld [vmem:[%s321 + $0x68] sm:$0xff]
        %v1092 = vld [vmem:[%s321 + $0x70] sm:$0xff]
        %v1093 = vld [vmem:[%s321 + $0x78] sm:$0xff]
        %v1094 = vld [vmem:[%s321 + $0x80] sm:$0xff]
        %v1095 = vld [vmem:[%s321 + $0x88] sm:$0xff]
        %v1096 = vld [vmem:[%s321 + $0x90] sm:$0xff]
        %v1097 = vld [vmem:[%s321 + $0x98] sm:$0xff]
        %v1098 = vld [vmem:[%s321 + $0xa0] sm:$0xff]
        %v1099 = vld [vmem:[%s321 + $0xa8] sm:$0xff]
        %v1100 = vld [vmem:[%s321 + $0xb0] sm:$0xff]
        %v1101 = vld [vmem:[%s321 + $0xb8] sm:$0xff]
        %v1102 = vld [vmem:[%s321 + $0xc0] sm:$0xff]
        %v1103 = vld [vmem:[%s321 + $0xc8] sm:$0xff]
        %v1104 = vld [vmem:[%s321 + $0xd0] sm:$0xff]
        %v1105 = vld [vmem:[%s321 + $0xd8] sm:$0xff]
        %v1106 = vld [vmem:[%s321 + $0xe0] sm:$0xff]
        %v1107 = vld [vmem:[%s321 + $0xe8] sm:$0xff]
        %v1108 = vld [vmem:[%s321 + $0xf0] sm:$0xff]
        %v1109 = vld [vmem:[%s321 + $0xf8] sm:$0xff]
        %1111 = vset.pattern.permute.xlu0 0
        %1112 = vperm.xlu0 %1111, %v1078
        %v1113 = vpop.permute.xlu0 %1112
        %1116 = vset.pattern.permute.xlu0 0
        %1117 = vperm.xlu0 %1116, %v1079
        %v1118 = vpop.permute.xlu0 %1117
        %1121 = vset.pattern.permute.xlu0 0
        %1122 = vperm.xlu0 %1121, %v1080
        %v1123 = vpop.permute.xlu0 %1122
        %1126 = vset.pattern.permute.xlu0 0
        %1127 = vperm.xlu0 %1126, %v1081
        %v1128 = vpop.permute.xlu0 %1127
        %1131 = vset.pattern.permute.xlu0 0
        %1132 = vperm.xlu0 %1131, %v1082
        %v1133 = vpop.permute.xlu0 %1132
        %1136 = vset.pattern.permute.xlu0 0
        %1137 = vperm.xlu0 %1136, %v1083
        %v1138 = vpop.permute.xlu0 %1137
        %1141 = vset.pattern.permute.xlu0 0
        %1142 = vperm.xlu0 %1141, %v1084
        %v1143 = vpop.permute.xlu0 %1142
        %1146 = vset.pattern.permute.xlu0 0
        %1147 = vperm.xlu0 %1146, %v1085
        %v1148 = vpop.permute.xlu0 %1147
        %1151 = vset.pattern.permute.xlu0 0
        %1152 = vperm.xlu0 %1151, %v1086
        %v1153 = vpop.permute.xlu0 %1152
        %1156 = vset.pattern.permute.xlu0 0
        %1157 = vperm.xlu0 %1156, %v1087
        %v1158 = vpop.permute.xlu0 %1157
        %1161 = vset.pattern.permute.xlu0 0
        %1162 = vperm.xlu0 %1161, %v1088
        %v1163 = vpop.permute.xlu0 %1162
        %1166 = vset.pattern.permute.xlu0 0
        %1167 = vperm.xlu0 %1166, %v1089
        %v1168 = vpop.permute.xlu0 %1167
        %1171 = vset.pattern.permute.xlu0 0
        %1172 = vperm.xlu0 %1171, %v1090
        %v1173 = vpop.permute.xlu0 %1172
        %1176 = vset.pattern.permute.xlu0 0
        %1177 = vperm.xlu0 %1176, %v1091
        %v1178 = vpop.permute.xlu0 %1177
        %1181 = vset.pattern.permute.xlu0 0
        %1182 = vperm.xlu0 %1181, %v1092
        %v1183 = vpop.permute.xlu0 %1182
        %1186 = vset.pattern.permute.xlu0 0
        %1187 = vperm.xlu0 %1186, %v1093
        %v1188 = vpop.permute.xlu0 %1187
        %1191 = vset.pattern.permute.xlu0 0
        %1192 = vperm.xlu0 %1191, %v1094
        %v1193 = vpop.permute.xlu0 %1192
        %1196 = vset.pattern.permute.xlu0 0
        %1197 = vperm.xlu0 %1196, %v1095
        %v1198 = vpop.permute.xlu0 %1197
        %1201 = vset.pattern.permute.xlu0 0
        %1202 = vperm.xlu0 %1201, %v1096
        %v1203 = vpop.permute.xlu0 %1202
        %1206 = vset.pattern.permute.xlu0 0
        %1207 = vperm.xlu0 %1206, %v1097
        %v1208 = vpop.permute.xlu0 %1207
        %1211 = vset.pattern.permute.xlu0 0
        %1212 = vperm.xlu0 %1211, %v1098
        %v1213 = vpop.permute.xlu0 %1212
        %1216 = vset.pattern.permute.xlu0 0
        %1217 = vperm.xlu0 %1216, %v1099
        %v1218 = vpop.permute.xlu0 %1217
        %1221 = vset.pattern.permute.xlu0 0
        %1222 = vperm.xlu0 %1221, %v1100
        %v1223 = vpop.permute.xlu0 %1222
        %1226 = vset.pattern.permute.xlu0 0
        %1227 = vperm.xlu0 %1226, %v1101
        %v1228 = vpop.permute.xlu0 %1227
        %1231 = vset.pattern.permute.xlu0 0
        %1232 = vperm.xlu0 %1231, %v1102
        %v1233 = vpop.permute.xlu0 %1232
        %1236 = vset.pattern.permute.xlu0 0
        %1237 = vperm.xlu0 %1236, %v1103
        %v1238 = vpop.permute.xlu0 %1237
        %1241 = vset.pattern.permute.xlu0 0
        %1242 = vperm.xlu0 %1241, %v1104
        %v1243 = vpop.permute.xlu0 %1242
        %1246 = vset.pattern.permute.xlu0 0
        %1247 = vperm.xlu0 %1246, %v1105
        %v1248 = vpop.permute.xlu0 %1247
        %1251 = vset.pattern.permute.xlu0 0
        %1252 = vperm.xlu0 %1251, %v1106
        %v1253 = vpop.permute.xlu0 %1252
        %1256 = vset.pattern.permute.xlu0 0
        %1257 = vperm.xlu0 %1256, %v1107
        %v1258 = vpop.permute.xlu0 %1257
        %1261 = vset.pattern.permute.xlu0 0
        %1262 = vperm.xlu0 %1261, %v1108
        %v1263 = vpop.permute.xlu0 %1262
        %1266 = vset.pattern.permute.xlu0 0
        %1267 = vperm.xlu0 %1266, %v1109
        %v1268 = vpop.permute.xlu0 %1267
        %v1270 = vlaneseq
        %v1271 = vshrl.u32 %v1270, 7
        %v1272 = vsub.s32 0, %v1271
        %v1273 = vrot.slane %v1046, %v1272
        %v1274 = vlaneseq
        %v1275 = vshrl.u32 %v1274, 7
        %v1276 = vsub.s32 0, %v1275
        %v1277 = vrot.slane %v1047, %v1276
        %v1278 = vlaneseq
        %v1279 = vshrl.u32 %v1278, 7
        %v1280 = vsub.s32 0, %v1279
        %v1281 = vrot.slane %v1048, %v1280
        %v1282 = vlaneseq
        %v1283 = vshrl.u32 %v1282, 7
        %v1284 = vsub.s32 0, %v1283
        %v1285 = vrot.slane %v1049, %v1284
        %v1286 = vlaneseq
        %v1287 = vshrl.u32 %v1286, 7
        %v1288 = vsub.s32 0, %v1287
        %v1289 = vrot.slane %v1050, %v1288
        %v1290 = vlaneseq
        %v1291 = vshrl.u32 %v1290, 7
        %v1292 = vsub.s32 0, %v1291
        %v1293 = vrot.slane %v1051, %v1292
        %v1294 = vlaneseq
        %v1295 = vshrl.u32 %v1294, 7
        %v1296 = vsub.s32 0, %v1295
        %v1297 = vrot.slane %v1052, %v1296
        %v1298 = vlaneseq
        %v1299 = vshrl.u32 %v1298, 7
        %v1300 = vsub.s32 0, %v1299
        %v1301 = vrot.slane %v1053, %v1300
        %v1302 = vlaneseq
        %v1303 = vshrl.u32 %v1302, 7
        %v1304 = vsub.s32 0, %v1303
        %v1305 = vrot.slane %v1054, %v1304
        %v1306 = vlaneseq
        %v1307 = vshrl.u32 %v1306, 7
        %v1308 = vsub.s32 0, %v1307
        %v1309 = vrot.slane %v1055, %v1308
        %v1310 = vlaneseq
        %v1311 = vshrl.u32 %v1310, 7
        %v1312 = vsub.s32 0, %v1311
        %v1313 = vrot.slane %v1056, %v1312
        %v1314 = vlaneseq
        %v1315 = vshrl.u32 %v1314, 7
        %v1316 = vsub.s32 0, %v1315
        %v1317 = vrot.slane %v1057, %v1316
        %v1318 = vlaneseq
        %v1319 = vshrl.u32 %v1318, 7
        %v1320 = vsub.s32 0, %v1319
        %v1321 = vrot.slane %v1058, %v1320
        %v1322 = vlaneseq
        %v1323 = vshrl.u32 %v1322, 7
        %v1324 = vsub.s32 0, %v1323
        %v1325 = vrot.slane %v1059, %v1324
        %v1326 = vlaneseq
        %v1327 = vshrl.u32 %v1326, 7
        %v1328 = vsub.s32 0, %v1327
        %v1329 = vrot.slane %v1060, %v1328
        %v1330 = vlaneseq
        %v1331 = vshrl.u32 %v1330, 7
        %v1332 = vsub.s32 0, %v1331
        %v1333 = vrot.slane %v1061, %v1332
        %v1334 = vlaneseq
        %v1335 = vshrl.u32 %v1334, 7
        %v1336 = vsub.s32 0, %v1335
        %v1337 = vrot.slane %v1062, %v1336
        %v1338 = vlaneseq
        %v1339 = vshrl.u32 %v1338, 7
        %v1340 = vsub.s32 0, %v1339
        %v1341 = vrot.slane %v1063, %v1340
        %v1342 = vlaneseq
        %v1343 = vshrl.u32 %v1342, 7
        %v1344 = vsub.s32 0, %v1343
        %v1345 = vrot.slane %v1064, %v1344
        %v1346 = vlaneseq
        %v1347 = vshrl.u32 %v1346, 7
        %v1348 = vsub.s32 0, %v1347
        %v1349 = vrot.slane %v1065, %v1348
        %v1350 = vlaneseq
        %v1351 = vshrl.u32 %v1350, 7
        %v1352 = vsub.s32 0, %v1351
        %v1353 = vrot.slane %v1066, %v1352
        %v1354 = vlaneseq
        %v1355 = vshrl.u32 %v1354, 7
        %v1356 = vsub.s32 0, %v1355
        %v1357 = vrot.slane %v1067, %v1356
        %v1358 = vlaneseq
        %v1359 = vshrl.u32 %v1358, 7
        %v1360 = vsub.s32 0, %v1359
        %v1361 = vrot.slane %v1068, %v1360
        %v1362 = vlaneseq
        %v1363 = vshrl.u32 %v1362, 7
        %v1364 = vsub.s32 0, %v1363
        %v1365 = vrot.slane %v1069, %v1364
        %v1366 = vlaneseq
        %v1367 = vshrl.u32 %v1366, 7
        %v1368 = vsub.s32 0, %v1367
        %v1369 = vrot.slane %v1070, %v1368
        %v1370 = vlaneseq
        %v1371 = vshrl.u32 %v1370, 7
        %v1372 = vsub.s32 0, %v1371
        %v1373 = vrot.slane %v1071, %v1372
        %v1374 = vlaneseq
        %v1375 = vshrl.u32 %v1374, 7
        %v1376 = vsub.s32 0, %v1375
        %v1377 = vrot.slane %v1072, %v1376
        %v1378 = vlaneseq
        %v1379 = vshrl.u32 %v1378, 7
        %v1380 = vsub.s32 0, %v1379
        %v1381 = vrot.slane %v1073, %v1380
        %v1382 = vlaneseq
        %v1383 = vshrl.u32 %v1382, 7
        %v1384 = vsub.s32 0, %v1383
        %v1385 = vrot.slane %v1074, %v1384
        %v1386 = vlaneseq
        %v1387 = vshrl.u32 %v1386, 7
        %v1388 = vsub.s32 0, %v1387
        %v1389 = vrot.slane %v1075, %v1388
        %v1390 = vlaneseq
        %v1391 = vshrl.u32 %v1390, 7
        %v1392 = vsub.s32 0, %v1391
        %v1393 = vrot.slane %v1076, %v1392
        %v1394 = vlaneseq
        %v1395 = vshrl.u32 %v1394, 7
        %v1396 = vsub.s32 0, %v1395
        %v1397 = vrot.slane %v1077, %v1396
        %v1398 = vmul.f32 %v1113, %v1273
        %v1399 = vmul.f32 %v1118, %v1277
        %v1400 = vmul.f32 %v1123, %v1281
        %v1401 = vmul.f32 %v1128, %v1285
        %v1402 = vmul.f32 %v1133, %v1289
        %v1403 = vmul.f32 %v1138, %v1293
        %v1404 = vmul.f32 %v1143, %v1297
        %v1405 = vmul.f32 %v1148, %v1301
        %v1406 = vmul.f32 %v1153, %v1305
        %v1407 = vmul.f32 %v1158, %v1309
        %v1408 = vmul.f32 %v1163, %v1313
        %v1409 = vmul.f32 %v1168, %v1317
        %v1410 = vmul.f32 %v1173, %v1321
        %v1411 = vmul.f32 %v1178, %v1325
        %v1412 = vmul.f32 %v1183, %v1329
        %v1413 = vmul.f32 %v1188, %v1333
        %v1414 = vmul.f32 %v1193, %v1337
        %v1415 = vmul.f32 %v1198, %v1341
        %v1416 = vmul.f32 %v1203, %v1345
        %v1417 = vmul.f32 %v1208, %v1349
        %v1418 = vmul.f32 %v1213, %v1353
        %v1419 = vmul.f32 %v1218, %v1357
        %v1420 = vmul.f32 %v1223, %v1361
        %v1421 = vmul.f32 %v1228, %v1365
        %v1422 = vmul.f32 %v1233, %v1369
        %v1423 = vmul.f32 %v1238, %v1373
        %v1424 = vmul.f32 %v1243, %v1377
        %v1425 = vmul.f32 %v1248, %v1381
        %v1426 = vmul.f32 %v1253, %v1385
        %v1427 = vmul.f32 %v1258, %v1389
        %v1428 = vmul.f32 %v1263, %v1393
        %v1429 = vmul.f32 %v1268, %v1397
        %v1430 = vadd.f32 %v1398, 0.0
        %v1431 = vadd.f32 %v1399, 0.0
        %v1432 = vadd.f32 %v1400, 0.0
        %v1433 = vadd.f32 %v1401, 0.0
        %v1434 = vadd.f32 %v1402, 0.0
        %v1435 = vadd.f32 %v1403, 0.0
        %v1436 = vadd.f32 %v1404, 0.0
        %v1437 = vadd.f32 %v1405, 0.0
        %v1438 = vadd.f32 %v1406, 0.0
        %v1439 = vadd.f32 %v1407, 0.0
        %v1440 = vadd.f32 %v1408, 0.0
        %v1441 = vadd.f32 %v1409, 0.0
        %v1442 = vadd.f32 %v1410, 0.0
        %v1443 = vadd.f32 %v1411, 0.0
        %v1444 = vadd.f32 %v1412, 0.0
        %v1445 = vadd.f32 %v1413, 0.0
        %v1446 = vadd.f32 %v1414, 0.0
        %v1447 = vadd.f32 %v1415, 0.0
        %v1448 = vadd.f32 %v1416, 0.0
        %v1449 = vadd.f32 %v1417, 0.0
        %v1450 = vadd.f32 %v1418, 0.0
        %v1451 = vadd.f32 %v1419, 0.0
        %v1452 = vadd.f32 %v1420, 0.0
        %v1453 = vadd.f32 %v1421, 0.0
        %v1454 = vadd.f32 %v1422, 0.0
        %v1455 = vadd.f32 %v1423, 0.0
        %v1456 = vadd.f32 %v1424, 0.0
        %v1457 = vadd.f32 %v1425, 0.0
        %v1458 = vadd.f32 %v1426, 0.0
        %v1459 = vadd.f32 %v1427, 0.0
        %v1460 = vadd.f32 %v1428, 0.0
        %v1461 = vadd.f32 %v1429, 0.0
        %1462 = vset.pattern.permute.xlu0 1
        %1463 = vperm.xlu0 %1462, %v1078
        %v1464 = vpop.permute.xlu0 %1463
        %1466 = vset.pattern.permute.xlu0 1
        %1467 = vperm.xlu0 %1466, %v1079
        %v1468 = vpop.permute.xlu0 %1467
        %1470 = vset.pattern.permute.xlu0 1
        %1471 = vperm.xlu0 %1470, %v1080
        %v1472 = vpop.permute.xlu0 %1471
        %1474 = vset.pattern.permute.xlu0 1
        %1475 = vperm.xlu0 %1474, %v1081
        %v1476 = vpop.permute.xlu0 %1475
        %1478 = vset.pattern.permute.xlu0 1
        %1479 = vperm.xlu0 %1478, %v1082
        %v1480 = vpop.permute.xlu0 %1479
        %1482 = vset.pattern.permute.xlu0 1
        %1483 = vperm.xlu0 %1482, %v1083
        %v1484 = vpop.permute.xlu0 %1483
        %1486 = vset.pattern.permute.xlu0 1
        %1487 = vperm.xlu0 %1486, %v1084
        %v1488 = vpop.permute.xlu0 %1487
        %1490 = vset.pattern.permute.xlu0 1
        %1491 = vperm.xlu0 %1490, %v1085
        %v1492 = vpop.permute.xlu0 %1491
        %1494 = vset.pattern.permute.xlu0 1
        %1495 = vperm.xlu0 %1494, %v1086
        %v1496 = vpop.permute.xlu0 %1495
        %1498 = vset.pattern.permute.xlu0 1
        %1499 = vperm.xlu0 %1498, %v1087
        %v1500 = vpop.permute.xlu0 %1499
        %1502 = vset.pattern.permute.xlu0 1
        %1503 = vperm.xlu0 %1502, %v1088
        %v1504 = vpop.permute.xlu0 %1503
        %1506 = vset.pattern.permute.xlu0 1
        %1507 = vperm.xlu0 %1506, %v1089
        %v1508 = vpop.permute.xlu0 %1507
        %1510 = vset.pattern.permute.xlu0 1
        %1511 = vperm.xlu0 %1510, %v1090
        %v1512 = vpop.permute.xlu0 %1511
        %1514 = vset.pattern.permute.xlu0 1
        %1515 = vperm.xlu0 %1514, %v1091
        %v1516 = vpop.permute.xlu0 %1515
        %1518 = vset.pattern.permute.xlu0 1
        %1519 = vperm.xlu0 %1518, %v1092
        %v1520 = vpop.permute.xlu0 %1519
        %1522 = vset.pattern.permute.xlu0 1
        %1523 = vperm.xlu0 %1522, %v1093
        %v1524 = vpop.permute.xlu0 %1523
        %1526 = vset.pattern.permute.xlu0 1
        %1527 = vperm.xlu0 %1526, %v1094
        %v1528 = vpop.permute.xlu0 %1527
        %1530 = vset.pattern.permute.xlu0 1
        %1531 = vperm.xlu0 %1530, %v1095
        %v1532 = vpop.permute.xlu0 %1531
        %1534 = vset.pattern.permute.xlu0 1
        %1535 = vperm.xlu0 %1534, %v1096
        %v1536 = vpop.permute.xlu0 %1535
        %1538 = vset.pattern.permute.xlu0 1
        %1539 = vperm.xlu0 %1538, %v1097
        %v1540 = vpop.permute.xlu0 %1539
        %1542 = vset.pattern.permute.xlu0 1
        %1543 = vperm.xlu0 %1542, %v1098
        %v1544 = vpop.permute.xlu0 %1543
        %1546 = vset.pattern.permute.xlu0 1
        %1547 = vperm.xlu0 %1546, %v1099
        %v1548 = vpop.permute.xlu0 %1547
        %1550 = vset.pattern.permute.xlu0 1
        %1551 = vperm.xlu0 %1550, %v1100
        %v1552 = vpop.permute.xlu0 %1551
        %1554 = vset.pattern.permute.xlu0 1
        %1555 = vperm.xlu0 %1554, %v1101
        %v1556 = vpop.permute.xlu0 %1555
        %1558 = vset.pattern.permute.xlu0 1
        %1559 = vperm.xlu0 %1558, %v1102
        %v1560 = vpop.permute.xlu0 %1559
        %1562 = vset.pattern.permute.xlu0 1
        %1563 = vperm.xlu0 %1562, %v1103
        %v1564 = vpop.permute.xlu0 %1563
        %1566 = vset.pattern.permute.xlu0 1
        %1567 = vperm.xlu0 %1566, %v1104
        %v1568 = vpop.permute.xlu0 %1567
        %1570 = vset.pattern.permute.xlu0 1
        %1571 = vperm.xlu0 %1570, %v1105
        %v1572 = vpop.permute.xlu0 %1571
        %1574 = vset.pattern.permute.xlu0 1
        %1575 = vperm.xlu0 %1574, %v1106
        %v1576 = vpop.permute.xlu0 %1575
        %1578 = vset.pattern.permute.xlu0 1
        %1579 = vperm.xlu0 %1578, %v1107
        %v1580 = vpop.permute.xlu0 %1579
        %1582 = vset.pattern.permute.xlu0 1
        %1583 = vperm.xlu0 %1582, %v1108
        %v1584 = vpop.permute.xlu0 %1583
        %1586 = vset.pattern.permute.xlu0 1
        %1587 = vperm.xlu0 %1586, %v1109
        %v1588 = vpop.permute.xlu0 %1587
        %v1590 = vlaneseq
        %v1591 = vshrl.u32 %v1590, 7
        %v1592 = vsub.s32 1, %v1591
        %v1593 = vrot.slane %v1046, %v1592
        %v1594 = vlaneseq
        %v1595 = vshrl.u32 %v1594, 7
        %v1596 = vsub.s32 1, %v1595
        %v1597 = vrot.slane %v1047, %v1596
        %v1598 = vlaneseq
        %v1599 = vshrl.u32 %v1598, 7
        %v1600 = vsub.s32 1, %v1599
        %v1601 = vrot.slane %v1048, %v1600
        %v1602 = vlaneseq
        %v1603 = vshrl.u32 %v1602, 7
        %v1604 = vsub.s32 1, %v1603
        %v1605 = vrot.slane %v1049, %v1604
        %v1606 = vlaneseq
        %v1607 = vshrl.u32 %v1606, 7
        %v1608 = vsub.s32 1, %v1607
        %v1609 = vrot.slane %v1050, %v1608
        %v1610 = vlaneseq
        %v1611 = vshrl.u32 %v1610, 7
        %v1612 = vsub.s32 1, %v1611
        %v1613 = vrot.slane %v1051, %v1612
        %v1614 = vlaneseq
        %v1615 = vshrl.u32 %v1614, 7
        %v1616 = vsub.s32 1, %v1615
        %v1617 = vrot.slane %v1052, %v1616
        %v1618 = vlaneseq
        %v1619 = vshrl.u32 %v1618, 7
        %v1620 = vsub.s32 1, %v1619
        %v1621 = vrot.slane %v1053, %v1620
        %v1622 = vlaneseq
        %v1623 = vshrl.u32 %v1622, 7
        %v1624 = vsub.s32 1, %v1623
        %v1625 = vrot.slane %v1054, %v1624
        %v1626 = vlaneseq
        %v1627 = vshrl.u32 %v1626, 7
        %v1628 = vsub.s32 1, %v1627
        %v1629 = vrot.slane %v1055, %v1628
        %v1630 = vlaneseq
        %v1631 = vshrl.u32 %v1630, 7
        %v1632 = vsub.s32 1, %v1631
        %v1633 = vrot.slane %v1056, %v1632
        %v1634 = vlaneseq
        %v1635 = vshrl.u32 %v1634, 7
        %v1636 = vsub.s32 1, %v1635
        %v1637 = vrot.slane %v1057, %v1636
        %v1638 = vlaneseq
        %v1639 = vshrl.u32 %v1638, 7
        %v1640 = vsub.s32 1, %v1639
        %v1641 = vrot.slane %v1058, %v1640
        %v1642 = vlaneseq
        %v1643 = vshrl.u32 %v1642, 7
        %v1644 = vsub.s32 1, %v1643
        %v1645 = vrot.slane %v1059, %v1644
        %v1646 = vlaneseq
        %v1647 = vshrl.u32 %v1646, 7
        %v1648 = vsub.s32 1, %v1647
        %v1649 = vrot.slane %v1060, %v1648
        %v1650 = vlaneseq
        %v1651 = vshrl.u32 %v1650, 7
        %v1652 = vsub.s32 1, %v1651
        %v1653 = vrot.slane %v1061, %v1652
        %v1654 = vlaneseq
        %v1655 = vshrl.u32 %v1654, 7
        %v1656 = vsub.s32 1, %v1655
        %v1657 = vrot.slane %v1062, %v1656
        %v1658 = vlaneseq
        %v1659 = vshrl.u32 %v1658, 7
        %v1660 = vsub.s32 1, %v1659
        %v1661 = vrot.slane %v1063, %v1660
        %v1662 = vlaneseq
        %v1663 = vshrl.u32 %v1662, 7
        %v1664 = vsub.s32 1, %v1663
        %v1665 = vrot.slane %v1064, %v1664
        %v1666 = vlaneseq
        %v1667 = vshrl.u32 %v1666, 7
        %v1668 = vsub.s32 1, %v1667
        %v1669 = vrot.slane %v1065, %v1668
        %v1670 = vlaneseq
        %v1671 = vshrl.u32 %v1670, 7
        %v1672 = vsub.s32 1, %v1671
        %v1673 = vrot.slane %v1066, %v1672
        %v1674 = vlaneseq
        %v1675 = vshrl.u32 %v1674, 7
        %v1676 = vsub.s32 1, %v1675
        %v1677 = vrot.slane %v1067, %v1676
        %v1678 = vlaneseq
        %v1679 = vshrl.u32 %v1678, 7
        %v1680 = vsub.s32 1, %v1679
        %v1681 = vrot.slane %v1068, %v1680
        %v1682 = vlaneseq
        %v1683 = vshrl.u32 %v1682, 7
        %v1684 = vsub.s32 1, %v1683
        %v1685 = vrot.slane %v1069, %v1684
        %v1686 = vlaneseq
        %v1687 = vshrl.u32 %v1686, 7
        %v1688 = vsub.s32 1, %v1687
        %v1689 = vrot.slane %v1070, %v1688
        %v1690 = vlaneseq
        %v1691 = vshrl.u32 %v1690, 7
        %v1692 = vsub.s32 1, %v1691
        %v1693 = vrot.slane %v1071, %v1692
        %v1694 = vlaneseq
        %v1695 = vshrl.u32 %v1694, 7
        %v1696 = vsub.s32 1, %v1695
        %v1697 = vrot.slane %v1072, %v1696
        %v1698 = vlaneseq
        %v1699 = vshrl.u32 %v1698, 7
        %v1700 = vsub.s32 1, %v1699
        %v1701 = vrot.slane %v1073, %v1700
        %v1702 = vlaneseq
        %v1703 = vshrl.u32 %v1702, 7
        %v1704 = vsub.s32 1, %v1703
        %v1705 = vrot.slane %v1074, %v1704
        %v1706 = vlaneseq
        %v1707 = vshrl.u32 %v1706, 7
        %v1708 = vsub.s32 1, %v1707
        %v1709 = vrot.slane %v1075, %v1708
        %v1710 = vlaneseq
        %v1711 = vshrl.u32 %v1710, 7
        %v1712 = vsub.s32 1, %v1711
        %v1713 = vrot.slane %v1076, %v1712
        %v1714 = vlaneseq
        %v1715 = vshrl.u32 %v1714, 7
        %v1716 = vsub.s32 1, %v1715
        %v1717 = vrot.slane %v1077, %v1716
        %v1718 = vmul.f32 %v1464, %v1593
        %v1719 = vmul.f32 %v1468, %v1597
        %v1720 = vmul.f32 %v1472, %v1601
        %v1721 = vmul.f32 %v1476, %v1605
        %v1722 = vmul.f32 %v1480, %v1609
        %v1723 = vmul.f32 %v1484, %v1613
        %v1724 = vmul.f32 %v1488, %v1617
        %v1725 = vmul.f32 %v1492, %v1621
        %v1726 = vmul.f32 %v1496, %v1625
        %v1727 = vmul.f32 %v1500, %v1629
        %v1728 = vmul.f32 %v1504, %v1633
        %v1729 = vmul.f32 %v1508, %v1637
        %v1730 = vmul.f32 %v1512, %v1641
        %v1731 = vmul.f32 %v1516, %v1645
        %v1732 = vmul.f32 %v1520, %v1649
        %v1733 = vmul.f32 %v1524, %v1653
        %v1734 = vmul.f32 %v1528, %v1657
        %v1735 = vmul.f32 %v1532, %v1661
        %v1736 = vmul.f32 %v1536, %v1665
        %v1737 = vmul.f32 %v1540, %v1669
        %v1738 = vmul.f32 %v1544, %v1673
        %v1739 = vmul.f32 %v1548, %v1677
        %v1740 = vmul.f32 %v1552, %v1681
        %v1741 = vmul.f32 %v1556, %v1685
        %v1742 = vmul.f32 %v1560, %v1689
        %v1743 = vmul.f32 %v1564, %v1693
        %v1744 = vmul.f32 %v1568, %v1697
        %v1745 = vmul.f32 %v1572, %v1701
        %v1746 = vmul.f32 %v1576, %v1705
        %v1747 = vmul.f32 %v1580, %v1709
        %v1748 = vmul.f32 %v1584, %v1713
        %v1749 = vmul.f32 %v1588, %v1717
        %v1750 = vadd.f32 %v1430, %v1718
        %v1751 = vadd.f32 %v1431, %v1719
        %v1752 = vadd.f32 %v1432, %v1720
        %v1753 = vadd.f32 %v1433, %v1721
        %v1754 = vadd.f32 %v1434, %v1722
        %v1755 = vadd.f32 %v1435, %v1723
        %v1756 = vadd.f32 %v1436, %v1724
        %v1757 = vadd.f32 %v1437, %v1725
        %v1758 = vadd.f32 %v1438, %v1726
        %v1759 = vadd.f32 %v1439, %v1727
        %v1760 = vadd.f32 %v1440, %v1728
        %v1761 = vadd.f32 %v1441, %v1729
        %v1762 = vadd.f32 %v1442, %v1730
        %v1763 = vadd.f32 %v1443, %v1731
        %v1764 = vadd.f32 %v1444, %v1732
        %v1765 = vadd.f32 %v1445, %v1733
        %v1766 = vadd.f32 %v1446, %v1734
        %v1767 = vadd.f32 %v1447, %v1735
        %v1768 = vadd.f32 %v1448, %v1736
        %v1769 = vadd.f32 %v1449, %v1737
        %v1770 = vadd.f32 %v1450, %v1738
        %v1771 = vadd.f32 %v1451, %v1739
        %v1772 = vadd.f32 %v1452, %v1740
        %v1773 = vadd.f32 %v1453, %v1741
        %v1774 = vadd.f32 %v1454, %v1742
        %v1775 = vadd.f32 %v1455, %v1743
        %v1776 = vadd.f32 %v1456, %v1744
        %v1777 = vadd.f32 %v1457, %v1745
        %v1778 = vadd.f32 %v1458, %v1746
        %v1779 = vadd.f32 %v1459, %v1747
        %v1780 = vadd.f32 %v1460, %v1748
        %v1781 = vadd.f32 %v1461, %v1749
        %1782 = vset.pattern.permute.xlu0 2
        %1783 = vperm.xlu0 %1782, %v1078
        %v1784 = vpop.permute.xlu0 %1783
        %1786 = vset.pattern.permute.xlu0 2
        %1787 = vperm.xlu0 %1786, %v1079
        %v1788 = vpop.permute.xlu0 %1787
        %1790 = vset.pattern.permute.xlu0 2
        %1791 = vperm.xlu0 %1790, %v1080
        %v1792 = vpop.permute.xlu0 %1791
        %1794 = vset.pattern.permute.xlu0 2
        %1795 = vperm.xlu0 %1794, %v1081
        %v1796 = vpop.permute.xlu0 %1795
        %1798 = vset.pattern.permute.xlu0 2
        %1799 = vperm.xlu0 %1798, %v1082
        %v1800 = vpop.permute.xlu0 %1799
        %1802 = vset.pattern.permute.xlu0 2
        %1803 = vperm.xlu0 %1802, %v1083
        %v1804 = vpop.permute.xlu0 %1803
        %1806 = vset.pattern.permute.xlu0 2
        %1807 = vperm.xlu0 %1806, %v1084
        %v1808 = vpop.permute.xlu0 %1807
        %1810 = vset.pattern.permute.xlu0 2
        %1811 = vperm.xlu0 %1810, %v1085
        %v1812 = vpop.permute.xlu0 %1811
        %1814 = vset.pattern.permute.xlu0 2
        %1815 = vperm.xlu0 %1814, %v1086
        %v1816 = vpop.permute.xlu0 %1815
        %1818 = vset.pattern.permute.xlu0 2
        %1819 = vperm.xlu0 %1818, %v1087
        %v1820 = vpop.permute.xlu0 %1819
        %1822 = vset.pattern.permute.xlu0 2
        %1823 = vperm.xlu0 %1822, %v1088
        %v1824 = vpop.permute.xlu0 %1823
        %1826 = vset.pattern.permute.xlu0 2
        %1827 = vperm.xlu0 %1826, %v1089
        %v1828 = vpop.permute.xlu0 %1827
        %1830 = vset.pattern.permute.xlu0 2
        %1831 = vperm.xlu0 %1830, %v1090
        %v1832 = vpop.permute.xlu0 %1831
        %1834 = vset.pattern.permute.xlu0 2
        %1835 = vperm.xlu0 %1834, %v1091
        %v1836 = vpop.permute.xlu0 %1835
        %1838 = vset.pattern.permute.xlu0 2
        %1839 = vperm.xlu0 %1838, %v1092
        %v1840 = vpop.permute.xlu0 %1839
        %1842 = vset.pattern.permute.xlu0 2
        %1843 = vperm.xlu0 %1842, %v1093
        %v1844 = vpop.permute.xlu0 %1843
        %1846 = vset.pattern.permute.xlu0 2
        %1847 = vperm.xlu0 %1846, %v1094
        %v1848 = vpop.permute.xlu0 %1847
        %1850 = vset.pattern.permute.xlu0 2
        %1851 = vperm.xlu0 %1850, %v1095
        %v1852 = vpop.permute.xlu0 %1851
        %1854 = vset.pattern.permute.xlu0 2
        %1855 = vperm.xlu0 %1854, %v1096
        %v1856 = vpop.permute.xlu0 %1855
        %1858 = vset.pattern.permute.xlu0 2
        %1859 = vperm.xlu0 %1858, %v1097
        %v1860 = vpop.permute.xlu0 %1859
        %1862 = vset.pattern.permute.xlu0 2
        %1863 = vperm.xlu0 %1862, %v1098
        %v1864 = vpop.permute.xlu0 %1863
        %1866 = vset.pattern.permute.xlu0 2
        %1867 = vperm.xlu0 %1866, %v1099
        %v1868 = vpop.permute.xlu0 %1867
        %1870 = vset.pattern.permute.xlu0 2
        %1871 = vperm.xlu0 %1870, %v1100
        %v1872 = vpop.permute.xlu0 %1871
        %1874 = vset.pattern.permute.xlu0 2
        %1875 = vperm.xlu0 %1874, %v1101
        %v1876 = vpop.permute.xlu0 %1875
        %1878 = vset.pattern.permute.xlu0 2
        %1879 = vperm.xlu0 %1878, %v1102
        %v1880 = vpop.permute.xlu0 %1879
        %1882 = vset.pattern.permute.xlu0 2
        %1883 = vperm.xlu0 %1882, %v1103
        %v1884 = vpop.permute.xlu0 %1883
        %1886 = vset.pattern.permute.xlu0 2
        %1887 = vperm.xlu0 %1886, %v1104
        %v1888 = vpop.permute.xlu0 %1887
        %1890 = vset.pattern.permute.xlu0 2
        %1891 = vperm.xlu0 %1890, %v1105
        %v1892 = vpop.permute.xlu0 %1891
        %1894 = vset.pattern.permute.xlu0 2
        %1895 = vperm.xlu0 %1894, %v1106
        %v1896 = vpop.permute.xlu0 %1895
        %1898 = vset.pattern.permute.xlu0 2
        %1899 = vperm.xlu0 %1898, %v1107
        %v1900 = vpop.permute.xlu0 %1899
        %1902 = vset.pattern.permute.xlu0 2
        %1903 = vperm.xlu0 %1902, %v1108
        %v1904 = vpop.permute.xlu0 %1903
        %1906 = vset.pattern.permute.xlu0 2
        %1907 = vperm.xlu0 %1906, %v1109
        %v1908 = vpop.permute.xlu0 %1907
        %v1910 = vlaneseq
        %v1911 = vshrl.u32 %v1910, 7
        %v1912 = vsub.s32 2, %v1911
        %v1913 = vrot.slane %v1046, %v1912
        %v1914 = vlaneseq
        %v1915 = vshrl.u32 %v1914, 7
        %v1916 = vsub.s32 2, %v1915
        %v1917 = vrot.slane %v1047, %v1916
        %v1918 = vlaneseq
        %v1919 = vshrl.u32 %v1918, 7
        %v1920 = vsub.s32 2, %v1919
        %v1921 = vrot.slane %v1048, %v1920
        %v1922 = vlaneseq
        %v1923 = vshrl.u32 %v1922, 7
        %v1924 = vsub.s32 2, %v1923
        %v1925 = vrot.slane %v1049, %v1924
        %v1926 = vlaneseq
        %v1927 = vshrl.u32 %v1926, 7
        %v1928 = vsub.s32 2, %v1927
        %v1929 = vrot.slane %v1050, %v1928
        %v1930 = vlaneseq
        %v1931 = vshrl.u32 %v1930, 7
        %v1932 = vsub.s32 2, %v1931
        %v1933 = vrot.slane %v1051, %v1932
        %v1934 = vlaneseq
        %v1935 = vshrl.u32 %v1934, 7
        %v1936 = vsub.s32 2, %v1935
        %v1937 = vrot.slane %v1052, %v1936
        %v1938 = vlaneseq
        %v1939 = vshrl.u32 %v1938, 7
        %v1940 = vsub.s32 2, %v1939
        %v1941 = vrot.slane %v1053, %v1940
        %v1942 = vlaneseq
        %v1943 = vshrl.u32 %v1942, 7
        %v1944 = vsub.s32 2, %v1943
        %v1945 = vrot.slane %v1054, %v1944
        %v1946 = vlaneseq
        %v1947 = vshrl.u32 %v1946, 7
        %v1948 = vsub.s32 2, %v1947
        %v1949 = vrot.slane %v1055, %v1948
        %v1950 = vlaneseq
        %v1951 = vshrl.u32 %v1950, 7
        %v1952 = vsub.s32 2, %v1951
        %v1953 = vrot.slane %v1056, %v1952
        %v1954 = vlaneseq
        %v1955 = vshrl.u32 %v1954, 7
        %v1956 = vsub.s32 2, %v1955
        %v1957 = vrot.slane %v1057, %v1956
        %v1958 = vlaneseq
        %v1959 = vshrl.u32 %v1958, 7
        %v1960 = vsub.s32 2, %v1959
        %v1961 = vrot.slane %v1058, %v1960
        %v1962 = vlaneseq
        %v1963 = vshrl.u32 %v1962, 7
        %v1964 = vsub.s32 2, %v1963
        %v1965 = vrot.slane %v1059, %v1964
        %v1966 = vlaneseq
        %v1967 = vshrl.u32 %v1966, 7
        %v1968 = vsub.s32 2, %v1967
        %v1969 = vrot.slane %v1060, %v1968
        %v1970 = vlaneseq
        %v1971 = vshrl.u32 %v1970, 7
        %v1972 = vsub.s32 2, %v1971
        %v1973 = vrot.slane %v1061, %v1972
        %v1974 = vlaneseq
        %v1975 = vshrl.u32 %v1974, 7
        %v1976 = vsub.s32 2, %v1975
        %v1977 = vrot.slane %v1062, %v1976
        %v1978 = vlaneseq
        %v1979 = vshrl.u32 %v1978, 7
        %v1980 = vsub.s32 2, %v1979
        %v1981 = vrot.slane %v1063, %v1980
        %v1982 = vlaneseq
        %v1983 = vshrl.u32 %v1982, 7
        %v1984 = vsub.s32 2, %v1983
        %v1985 = vrot.slane %v1064, %v1984
        %v1986 = vlaneseq
        %v1987 = vshrl.u32 %v1986, 7
        %v1988 = vsub.s32 2, %v1987
        %v1989 = vrot.slane %v1065, %v1988
        %v1990 = vlaneseq
        %v1991 = vshrl.u32 %v1990, 7
        %v1992 = vsub.s32 2, %v1991
        %v1993 = vrot.slane %v1066, %v1992
        %v1994 = vlaneseq
        %v1995 = vshrl.u32 %v1994, 7
        %v1996 = vsub.s32 2, %v1995
        %v1997 = vrot.slane %v1067, %v1996
        %v1998 = vlaneseq
        %v1999 = vshrl.u32 %v1998, 7
        %v2000 = vsub.s32 2, %v1999
        %v2001 = vrot.slane %v1068, %v2000
        %v2002 = vlaneseq
        %v2003 = vshrl.u32 %v2002, 7
        %v2004 = vsub.s32 2, %v2003
        %v2005 = vrot.slane %v1069, %v2004
        %v2006 = vlaneseq
        %v2007 = vshrl.u32 %v2006, 7
        %v2008 = vsub.s32 2, %v2007
        %v2009 = vrot.slane %v1070, %v2008
        %v2010 = vlaneseq
        %v2011 = vshrl.u32 %v2010, 7
        %v2012 = vsub.s32 2, %v2011
        %v2013 = vrot.slane %v1071, %v2012
        %v2014 = vlaneseq
        %v2015 = vshrl.u32 %v2014, 7
        %v2016 = vsub.s32 2, %v2015
        %v2017 = vrot.slane %v1072, %v2016
        %v2018 = vlaneseq
        %v2019 = vshrl.u32 %v2018, 7
        %v2020 = vsub.s32 2, %v2019
        %v2021 = vrot.slane %v1073, %v2020
        %v2022 = vlaneseq
        %v2023 = vshrl.u32 %v2022, 7
        %v2024 = vsub.s32 2, %v2023
        %v2025 = vrot.slane %v1074, %v2024
        %v2026 = vlaneseq
        %v2027 = vshrl.u32 %v2026, 7
        %v2028 = vsub.s32 2, %v2027
        %v2029 = vrot.slane %v1075, %v2028
        %v2030 = vlaneseq
        %v2031 = vshrl.u32 %v2030, 7
        %v2032 = vsub.s32 2, %v2031
        %v2033 = vrot.slane %v1076, %v2032
        %v2034 = vlaneseq
        %v2035 = vshrl.u32 %v2034, 7
        %v2036 = vsub.s32 2, %v2035
        %v2037 = vrot.slane %v1077, %v2036
        %v2038 = vmul.f32 %v1784, %v1913
        %v2039 = vmul.f32 %v1788, %v1917
        %v2040 = vmul.f32 %v1792, %v1921
        %v2041 = vmul.f32 %v1796, %v1925
        %v2042 = vmul.f32 %v1800, %v1929
        %v2043 = vmul.f32 %v1804, %v1933
        %v2044 = vmul.f32 %v1808, %v1937
        %v2045 = vmul.f32 %v1812, %v1941
        %v2046 = vmul.f32 %v1816, %v1945
        %v2047 = vmul.f32 %v1820, %v1949
        %v2048 = vmul.f32 %v1824, %v1953
        %v2049 = vmul.f32 %v1828, %v1957
        %v2050 = vmul.f32 %v1832, %v1961
        %v2051 = vmul.f32 %v1836, %v1965
        %v2052 = vmul.f32 %v1840, %v1969
        %v2053 = vmul.f32 %v1844, %v1973
        %v2054 = vmul.f32 %v1848, %v1977
        %v2055 = vmul.f32 %v1852, %v1981
        %v2056 = vmul.f32 %v1856, %v1985
        %v2057 = vmul.f32 %v1860, %v1989
        %v2058 = vmul.f32 %v1864, %v1993
        %v2059 = vmul.f32 %v1868, %v1997
        %v2060 = vmul.f32 %v1872, %v2001
        %v2061 = vmul.f32 %v1876, %v2005
        %v2062 = vmul.f32 %v1880, %v2009
        %v2063 = vmul.f32 %v1884, %v2013
        %v2064 = vmul.f32 %v1888, %v2017
        %v2065 = vmul.f32 %v1892, %v2021
        %v2066 = vmul.f32 %v1896, %v2025
        %v2067 = vmul.f32 %v1900, %v2029
        %v2068 = vmul.f32 %v1904, %v2033
        %v2069 = vmul.f32 %v1908, %v2037
        %v2070 = vadd.f32 %v1750, %v2038
        %v2071 = vadd.f32 %v1751, %v2039
        %v2072 = vadd.f32 %v1752, %v2040
        %v2073 = vadd.f32 %v1753, %v2041
        %v2074 = vadd.f32 %v1754, %v2042
        %v2075 = vadd.f32 %v1755, %v2043
        %v2076 = vadd.f32 %v1756, %v2044
        %v2077 = vadd.f32 %v1757, %v2045
        %v2078 = vadd.f32 %v1758, %v2046
        %v2079 = vadd.f32 %v1759, %v2047
        %v2080 = vadd.f32 %v1760, %v2048
        %v2081 = vadd.f32 %v1761, %v2049
        %v2082 = vadd.f32 %v1762, %v2050
        %v2083 = vadd.f32 %v1763, %v2051
        %v2084 = vadd.f32 %v1764, %v2052
        %v2085 = vadd.f32 %v1765, %v2053
        %v2086 = vadd.f32 %v1766, %v2054
        %v2087 = vadd.f32 %v1767, %v2055
        %v2088 = vadd.f32 %v1768, %v2056
        %v2089 = vadd.f32 %v1769, %v2057
        %v2090 = vadd.f32 %v1770, %v2058
        %v2091 = vadd.f32 %v1771, %v2059
        %v2092 = vadd.f32 %v1772, %v2060
        %v2093 = vadd.f32 %v1773, %v2061
        %v2094 = vadd.f32 %v1774, %v2062
        %v2095 = vadd.f32 %v1775, %v2063
        %v2096 = vadd.f32 %v1776, %v2064
        %v2097 = vadd.f32 %v1777, %v2065
        %v2098 = vadd.f32 %v1778, %v2066
        %v2099 = vadd.f32 %v1779, %v2067
        %v2100 = vadd.f32 %v1780, %v2068
        %v2101 = vadd.f32 %v1781, %v2069
        %2102 = vset.pattern.permute.xlu0 3
        %2103 = vperm.xlu0 %2102, %v1078
        %v2104 = vpop.permute.xlu0 %2103
        %2106 = vset.pattern.permute.xlu0 3
        %2107 = vperm.xlu0 %2106, %v1079
        %v2108 = vpop.permute.xlu0 %2107
        %2110 = vset.pattern.permute.xlu0 3
        %2111 = vperm.xlu0 %2110, %v1080
        %v2112 = vpop.permute.xlu0 %2111
        %2114 = vset.pattern.permute.xlu0 3
        %2115 = vperm.xlu0 %2114, %v1081
        %v2116 = vpop.permute.xlu0 %2115
        %2118 = vset.pattern.permute.xlu0 3
        %2119 = vperm.xlu0 %2118, %v1082
        %v2120 = vpop.permute.xlu0 %2119
        %2122 = vset.pattern.permute.xlu0 3
        %2123 = vperm.xlu0 %2122, %v1083
        %v2124 = vpop.permute.xlu0 %2123
        %2126 = vset.pattern.permute.xlu0 3
        %2127 = vperm.xlu0 %2126, %v1084
        %v2128 = vpop.permute.xlu0 %2127
        %2130 = vset.pattern.permute.xlu0 3
        %2131 = vperm.xlu0 %2130, %v1085
        %v2132 = vpop.permute.xlu0 %2131
        %2134 = vset.pattern.permute.xlu0 3
        %2135 = vperm.xlu0 %2134, %v1086
        %v2136 = vpop.permute.xlu0 %2135
        %2138 = vset.pattern.permute.xlu0 3
        %2139 = vperm.xlu0 %2138, %v1087
        %v2140 = vpop.permute.xlu0 %2139
        %2142 = vset.pattern.permute.xlu0 3
        %2143 = vperm.xlu0 %2142, %v1088
        %v2144 = vpop.permute.xlu0 %2143
        %2146 = vset.pattern.permute.xlu0 3
        %2147 = vperm.xlu0 %2146, %v1089
        %v2148 = vpop.permute.xlu0 %2147
        %2150 = vset.pattern.permute.xlu0 3
        %2151 = vperm.xlu0 %2150, %v1090
        %v2152 = vpop.permute.xlu0 %2151
        %2154 = vset.pattern.permute.xlu0 3
        %2155 = vperm.xlu0 %2154, %v1091
        %v2156 = vpop.permute.xlu0 %2155
        %2158 = vset.pattern.permute.xlu0 3
        %2159 = vperm.xlu0 %2158, %v1092
        %v2160 = vpop.permute.xlu0 %2159
        %2162 = vset.pattern.permute.xlu0 3
        %2163 = vperm.xlu0 %2162, %v1093
        %v2164 = vpop.permute.xlu0 %2163
        %2166 = vset.pattern.permute.xlu0 3
        %2167 = vperm.xlu0 %2166, %v1094
        %v2168 = vpop.permute.xlu0 %2167
        %2170 = vset.pattern.permute.xlu0 3
        %2171 = vperm.xlu0 %2170, %v1095
        %v2172 = vpop.permute.xlu0 %2171
        %2174 = vset.pattern.permute.xlu0 3
        %2175 = vperm.xlu0 %2174, %v1096
        %v2176 = vpop.permute.xlu0 %2175
        %2178 = vset.pattern.permute.xlu0 3
        %2179 = vperm.xlu0 %2178, %v1097
        %v2180 = vpop.permute.xlu0 %2179
        %2182 = vset.pattern.permute.xlu0 3
        %2183 = vperm.xlu0 %2182, %v1098
        %v2184 = vpop.permute.xlu0 %2183
        %2186 = vset.pattern.permute.xlu0 3
        %2187 = vperm.xlu0 %2186, %v1099
        %v2188 = vpop.permute.xlu0 %2187
        %2190 = vset.pattern.permute.xlu0 3
        %2191 = vperm.xlu0 %2190, %v1100
        %v2192 = vpop.permute.xlu0 %2191
        %2194 = vset.pattern.permute.xlu0 3
        %2195 = vperm.xlu0 %2194, %v1101
        %v2196 = vpop.permute.xlu0 %2195
        %2198 = vset.pattern.permute.xlu0 3
        %2199 = vperm.xlu0 %2198, %v1102
        %v2200 = vpop.permute.xlu0 %2199
        %2202 = vset.pattern.permute.xlu0 3
        %2203 = vperm.xlu0 %2202, %v1103
        %v2204 = vpop.permute.xlu0 %2203
        %2206 = vset.pattern.permute.xlu0 3
        %2207 = vperm.xlu0 %2206, %v1104
        %v2208 = vpop.permute.xlu0 %2207
        %2210 = vset.pattern.permute.xlu0 3
        %2211 = vperm.xlu0 %2210, %v1105
        %v2212 = vpop.permute.xlu0 %2211
        %2214 = vset.pattern.permute.xlu0 3
        %2215 = vperm.xlu0 %2214, %v1106
        %v2216 = vpop.permute.xlu0 %2215
        %2218 = vset.pattern.permute.xlu0 3
        %2219 = vperm.xlu0 %2218, %v1107
        %v2220 = vpop.permute.xlu0 %2219
        %2222 = vset.pattern.permute.xlu0 3
        %2223 = vperm.xlu0 %2222, %v1108
        %v2224 = vpop.permute.xlu0 %2223
        %2226 = vset.pattern.permute.xlu0 3
        %2227 = vperm.xlu0 %2226, %v1109
        %v2228 = vpop.permute.xlu0 %2227
        %v2230 = vlaneseq
        %v2231 = vshrl.u32 %v2230, 7
        %v2232 = vsub.s32 3, %v2231
        %v2233 = vrot.slane %v1046, %v2232
        %v2234 = vlaneseq
        %v2235 = vshrl.u32 %v2234, 7
        %v2236 = vsub.s32 3, %v2235
        %v2237 = vrot.slane %v1047, %v2236
        %v2238 = vlaneseq
        %v2239 = vshrl.u32 %v2238, 7
        %v2240 = vsub.s32 3, %v2239
        %v2241 = vrot.slane %v1048, %v2240
        %v2242 = vlaneseq
        %v2243 = vshrl.u32 %v2242, 7
        %v2244 = vsub.s32 3, %v2243
        %v2245 = vrot.slane %v1049, %v2244
        %v2246 = vlaneseq
        %v2247 = vshrl.u32 %v2246, 7
        %v2248 = vsub.s32 3, %v2247
        %v2249 = vrot.slane %v1050, %v2248
        %v2250 = vlaneseq
        %v2251 = vshrl.u32 %v2250, 7
        %v2252 = vsub.s32 3, %v2251
        %v2253 = vrot.slane %v1051, %v2252
        %v2254 = vlaneseq
        %v2255 = vshrl.u32 %v2254, 7
        %v2256 = vsub.s32 3, %v2255
        %v2257 = vrot.slane %v1052, %v2256
        %v2258 = vlaneseq
        %v2259 = vshrl.u32 %v2258, 7
        %v2260 = vsub.s32 3, %v2259
        %v2261 = vrot.slane %v1053, %v2260
        %v2262 = vlaneseq
        %v2263 = vshrl.u32 %v2262, 7
        %v2264 = vsub.s32 3, %v2263
        %v2265 = vrot.slane %v1054, %v2264
        %v2266 = vlaneseq
        %v2267 = vshrl.u32 %v2266, 7
        %v2268 = vsub.s32 3, %v2267
        %v2269 = vrot.slane %v1055, %v2268
        %v2270 = vlaneseq
        %v2271 = vshrl.u32 %v2270, 7
        %v2272 = vsub.s32 3, %v2271
        %v2273 = vrot.slane %v1056, %v2272
        %v2274 = vlaneseq
        %v2275 = vshrl.u32 %v2274, 7
        %v2276 = vsub.s32 3, %v2275
        %v2277 = vrot.slane %v1057, %v2276
        %v2278 = vlaneseq
        %v2279 = vshrl.u32 %v2278, 7
        %v2280 = vsub.s32 3, %v2279
        %v2281 = vrot.slane %v1058, %v2280
        %v2282 = vlaneseq
        %v2283 = vshrl.u32 %v2282, 7
        %v2284 = vsub.s32 3, %v2283
        %v2285 = vrot.slane %v1059, %v2284
        %v2286 = vlaneseq
        %v2287 = vshrl.u32 %v2286, 7
        %v2288 = vsub.s32 3, %v2287
        %v2289 = vrot.slane %v1060, %v2288
        %v2290 = vlaneseq
        %v2291 = vshrl.u32 %v2290, 7
        %v2292 = vsub.s32 3, %v2291
        %v2293 = vrot.slane %v1061, %v2292
        %v2294 = vlaneseq
        %v2295 = vshrl.u32 %v2294, 7
        %v2296 = vsub.s32 3, %v2295
        %v2297 = vrot.slane %v1062, %v2296
        %v2298 = vlaneseq
        %v2299 = vshrl.u32 %v2298, 7
        %v2300 = vsub.s32 3, %v2299
        %v2301 = vrot.slane %v1063, %v2300
        %v2302 = vlaneseq
        %v2303 = vshrl.u32 %v2302, 7
        %v2304 = vsub.s32 3, %v2303
        %v2305 = vrot.slane %v1064, %v2304
        %v2306 = vlaneseq
        %v2307 = vshrl.u32 %v2306, 7
        %v2308 = vsub.s32 3, %v2307
        %v2309 = vrot.slane %v1065, %v2308
        %v2310 = vlaneseq
        %v2311 = vshrl.u32 %v2310, 7
        %v2312 = vsub.s32 3, %v2311
        %v2313 = vrot.slane %v1066, %v2312
        %v2314 = vlaneseq
        %v2315 = vshrl.u32 %v2314, 7
        %v2316 = vsub.s32 3, %v2315
        %v2317 = vrot.slane %v1067, %v2316
        %v2318 = vlaneseq
        %v2319 = vshrl.u32 %v2318, 7
        %v2320 = vsub.s32 3, %v2319
        %v2321 = vrot.slane %v1068, %v2320
        %v2322 = vlaneseq
        %v2323 = vshrl.u32 %v2322, 7
        %v2324 = vsub.s32 3, %v2323
        %v2325 = vrot.slane %v1069, %v2324
        %v2326 = vlaneseq
        %v2327 = vshrl.u32 %v2326, 7
        %v2328 = vsub.s32 3, %v2327
        %v2329 = vrot.slane %v1070, %v2328
        %v2330 = vlaneseq
        %v2331 = vshrl.u32 %v2330, 7
        %v2332 = vsub.s32 3, %v2331
        %v2333 = vrot.slane %v1071, %v2332
        %v2334 = vlaneseq
        %v2335 = vshrl.u32 %v2334, 7
        %v2336 = vsub.s32 3, %v2335
        %v2337 = vrot.slane %v1072, %v2336
        %v2338 = vlaneseq
        %v2339 = vshrl.u32 %v2338, 7
        %v2340 = vsub.s32 3, %v2339
        %v2341 = vrot.slane %v1073, %v2340
        %v2342 = vlaneseq
        %v2343 = vshrl.u32 %v2342, 7
        %v2344 = vsub.s32 3, %v2343
        %v2345 = vrot.slane %v1074, %v2344
        %v2346 = vlaneseq
        %v2347 = vshrl.u32 %v2346, 7
        %v2348 = vsub.s32 3, %v2347
        %v2349 = vrot.slane %v1075, %v2348
        %v2350 = vlaneseq
        %v2351 = vshrl.u32 %v2350, 7
        %v2352 = vsub.s32 3, %v2351
        %v2353 = vrot.slane %v1076, %v2352
        %v2354 = vlaneseq
        %v2355 = vshrl.u32 %v2354, 7
        %v2356 = vsub.s32 3, %v2355
        %v2357 = vrot.slane %v1077, %v2356
        %v2358 = vmul.f32 %v2104, %v2233
        %v2359 = vmul.f32 %v2108, %v2237
        %v2360 = vmul.f32 %v2112, %v2241
        %v2361 = vmul.f32 %v2116, %v2245
        %v2362 = vmul.f32 %v2120, %v2249
        %v2363 = vmul.f32 %v2124, %v2253
        %v2364 = vmul.f32 %v2128, %v2257
        %v2365 = vmul.f32 %v2132, %v2261
        %v2366 = vmul.f32 %v2136, %v2265
        %v2367 = vmul.f32 %v2140, %v2269
        %v2368 = vmul.f32 %v2144, %v2273
        %v2369 = vmul.f32 %v2148, %v2277
        %v2370 = vmul.f32 %v2152, %v2281
        %v2371 = vmul.f32 %v2156, %v2285
        %v2372 = vmul.f32 %v2160, %v2289
        %v2373 = vmul.f32 %v2164, %v2293
        %v2374 = vmul.f32 %v2168, %v2297
        %v2375 = vmul.f32 %v2172, %v2301
        %v2376 = vmul.f32 %v2176, %v2305
        %v2377 = vmul.f32 %v2180, %v2309
        %v2378 = vmul.f32 %v2184, %v2313
        %v2379 = vmul.f32 %v2188, %v2317
        %v2380 = vmul.f32 %v2192, %v2321
        %v2381 = vmul.f32 %v2196, %v2325
        %v2382 = vmul.f32 %v2200, %v2329
        %v2383 = vmul.f32 %v2204, %v2333
        %v2384 = vmul.f32 %v2208, %v2337
        %v2385 = vmul.f32 %v2212, %v2341
        %v2386 = vmul.f32 %v2216, %v2345
        %v2387 = vmul.f32 %v2220, %v2349
        %v2388 = vmul.f32 %v2224, %v2353
        %v2389 = vmul.f32 %v2228, %v2357
        %v2390 = vadd.f32 %v2070, %v2358
        %v2391 = vadd.f32 %v2071, %v2359
        %v2392 = vadd.f32 %v2072, %v2360
        %v2393 = vadd.f32 %v2073, %v2361
        %v2394 = vadd.f32 %v2074, %v2362
        %v2395 = vadd.f32 %v2075, %v2363
        %v2396 = vadd.f32 %v2076, %v2364
        %v2397 = vadd.f32 %v2077, %v2365
        %v2398 = vadd.f32 %v2078, %v2366
        %v2399 = vadd.f32 %v2079, %v2367
        %v2400 = vadd.f32 %v2080, %v2368
        %v2401 = vadd.f32 %v2081, %v2369
        %v2402 = vadd.f32 %v2082, %v2370
        %v2403 = vadd.f32 %v2083, %v2371
        %v2404 = vadd.f32 %v2084, %v2372
        %v2405 = vadd.f32 %v2085, %v2373
        %v2406 = vadd.f32 %v2086, %v2374
        %v2407 = vadd.f32 %v2087, %v2375
        %v2408 = vadd.f32 %v2088, %v2376
        %v2409 = vadd.f32 %v2089, %v2377
        %v2410 = vadd.f32 %v2090, %v2378
        %v2411 = vadd.f32 %v2091, %v2379
        %v2412 = vadd.f32 %v2092, %v2380
        %v2413 = vadd.f32 %v2093, %v2381
        %v2414 = vadd.f32 %v2094, %v2382
        %v2415 = vadd.f32 %v2095, %v2383
        %v2416 = vadd.f32 %v2096, %v2384
        %v2417 = vadd.f32 %v2097, %v2385
        %v2418 = vadd.f32 %v2098, %v2386
        %v2419 = vadd.f32 %v2099, %v2387
        %v2420 = vadd.f32 %v2100, %v2388
        %v2421 = vadd.f32 %v2101, %v2389
        %2422 = vset.pattern.permute.xlu0 4
        %2423 = vperm.xlu0 %2422, %v1078
        %v2424 = vpop.permute.xlu0 %2423
        %2426 = vset.pattern.permute.xlu0 4
        %2427 = vperm.xlu0 %2426, %v1079
        %v2428 = vpop.permute.xlu0 %2427
        %2430 = vset.pattern.permute.xlu0 4
        %2431 = vperm.xlu0 %2430, %v1080
        %v2432 = vpop.permute.xlu0 %2431
        %2434 = vset.pattern.permute.xlu0 4
        %2435 = vperm.xlu0 %2434, %v1081
        %v2436 = vpop.permute.xlu0 %2435
        %2438 = vset.pattern.permute.xlu0 4
        %2439 = vperm.xlu0 %2438, %v1082
        %v2440 = vpop.permute.xlu0 %2439
        %2442 = vset.pattern.permute.xlu0 4
        %2443 = vperm.xlu0 %2442, %v1083
        %v2444 = vpop.permute.xlu0 %2443
        %2446 = vset.pattern.permute.xlu0 4
        %2447 = vperm.xlu0 %2446, %v1084
        %v2448 = vpop.permute.xlu0 %2447
        %2450 = vset.pattern.permute.xlu0 4
        %2451 = vperm.xlu0 %2450, %v1085
        %v2452 = vpop.permute.xlu0 %2451
        %2454 = vset.pattern.permute.xlu0 4
        %2455 = vperm.xlu0 %2454, %v1086
        %v2456 = vpop.permute.xlu0 %2455
        %2458 = vset.pattern.permute.xlu0 4
        %2459 = vperm.xlu0 %2458, %v1087
        %v2460 = vpop.permute.xlu0 %2459
        %2462 = vset.pattern.permute.xlu0 4
        %2463 = vperm.xlu0 %2462, %v1088
        %v2464 = vpop.permute.xlu0 %2463
        %2466 = vset.pattern.permute.xlu0 4
        %2467 = vperm.xlu0 %2466, %v1089
        %v2468 = vpop.permute.xlu0 %2467
        %2470 = vset.pattern.permute.xlu0 4
        %2471 = vperm.xlu0 %2470, %v1090
        %v2472 = vpop.permute.xlu0 %2471
        %2474 = vset.pattern.permute.xlu0 4
        %2475 = vperm.xlu0 %2474, %v1091
        %v2476 = vpop.permute.xlu0 %2475
        %2478 = vset.pattern.permute.xlu0 4
        %2479 = vperm.xlu0 %2478, %v1092
        %v2480 = vpop.permute.xlu0 %2479
        %2482 = vset.pattern.permute.xlu0 4
        %2483 = vperm.xlu0 %2482, %v1093
        %v2484 = vpop.permute.xlu0 %2483
        %2486 = vset.pattern.permute.xlu0 4
        %2487 = vperm.xlu0 %2486, %v1094
        %v2488 = vpop.permute.xlu0 %2487
        %2490 = vset.pattern.permute.xlu0 4
        %2491 = vperm.xlu0 %2490, %v1095
        %v2492 = vpop.permute.xlu0 %2491
        %2494 = vset.pattern.permute.xlu0 4
        %2495 = vperm.xlu0 %2494, %v1096
        %v2496 = vpop.permute.xlu0 %2495
        %2498 = vset.pattern.permute.xlu0 4
        %2499 = vperm.xlu0 %2498, %v1097
        %v2500 = vpop.permute.xlu0 %2499
        %2502 = vset.pattern.permute.xlu0 4
        %2503 = vperm.xlu0 %2502, %v1098
        %v2504 = vpop.permute.xlu0 %2503
        %2506 = vset.pattern.permute.xlu0 4
        %2507 = vperm.xlu0 %2506, %v1099
        %v2508 = vpop.permute.xlu0 %2507
        %2510 = vset.pattern.permute.xlu0 4
        %2511 = vperm.xlu0 %2510, %v1100
        %v2512 = vpop.permute.xlu0 %2511
        %2514 = vset.pattern.permute.xlu0 4
        %2515 = vperm.xlu0 %2514, %v1101
        %v2516 = vpop.permute.xlu0 %2515
        %2518 = vset.pattern.permute.xlu0 4
        %2519 = vperm.xlu0 %2518, %v1102
        %v2520 = vpop.permute.xlu0 %2519
        %2522 = vset.pattern.permute.xlu0 4
        %2523 = vperm.xlu0 %2522, %v1103
        %v2524 = vpop.permute.xlu0 %2523
        %2526 = vset.pattern.permute.xlu0 4
        %2527 = vperm.xlu0 %2526, %v1104
        %v2528 = vpop.permute.xlu0 %2527
        %2530 = vset.pattern.permute.xlu0 4
        %2531 = vperm.xlu0 %2530, %v1105
        %v2532 = vpop.permute.xlu0 %2531
        %2534 = vset.pattern.permute.xlu0 4
        %2535 = vperm.xlu0 %2534, %v1106
        %v2536 = vpop.permute.xlu0 %2535
        %2538 = vset.pattern.permute.xlu0 4
        %2539 = vperm.xlu0 %2538, %v1107
        %v2540 = vpop.permute.xlu0 %2539
        %2542 = vset.pattern.permute.xlu0 4
        %2543 = vperm.xlu0 %2542, %v1108
        %v2544 = vpop.permute.xlu0 %2543
        %2546 = vset.pattern.permute.xlu0 4
        %2547 = vperm.xlu0 %2546, %v1109
        %v2548 = vpop.permute.xlu0 %2547
        %v2550 = vlaneseq
        %v2551 = vshrl.u32 %v2550, 7
        %v2552 = vsub.s32 4, %v2551
        %v2553 = vrot.slane %v1046, %v2552
        %v2554 = vlaneseq
        %v2555 = vshrl.u32 %v2554, 7
        %v2556 = vsub.s32 4, %v2555
        %v2557 = vrot.slane %v1047, %v2556
        %v2558 = vlaneseq
        %v2559 = vshrl.u32 %v2558, 7
        %v2560 = vsub.s32 4, %v2559
        %v2561 = vrot.slane %v1048, %v2560
        %v2562 = vlaneseq
        %v2563 = vshrl.u32 %v2562, 7
        %v2564 = vsub.s32 4, %v2563
        %v2565 = vrot.slane %v1049, %v2564
        %v2566 = vlaneseq
        %v2567 = vshrl.u32 %v2566, 7
        %v2568 = vsub.s32 4, %v2567
        %v2569 = vrot.slane %v1050, %v2568
        %v2570 = vlaneseq
        %v2571 = vshrl.u32 %v2570, 7
        %v2572 = vsub.s32 4, %v2571
        %v2573 = vrot.slane %v1051, %v2572
        %v2574 = vlaneseq
        %v2575 = vshrl.u32 %v2574, 7
        %v2576 = vsub.s32 4, %v2575
        %v2577 = vrot.slane %v1052, %v2576
        %v2578 = vlaneseq
        %v2579 = vshrl.u32 %v2578, 7
        %v2580 = vsub.s32 4, %v2579
        %v2581 = vrot.slane %v1053, %v2580
        %v2582 = vlaneseq
        %v2583 = vshrl.u32 %v2582, 7
        %v2584 = vsub.s32 4, %v2583
        %v2585 = vrot.slane %v1054, %v2584
        %v2586 = vlaneseq
        %v2587 = vshrl.u32 %v2586, 7
        %v2588 = vsub.s32 4, %v2587
        %v2589 = vrot.slane %v1055, %v2588
        %v2590 = vlaneseq
        %v2591 = vshrl.u32 %v2590, 7
        %v2592 = vsub.s32 4, %v2591
        %v2593 = vrot.slane %v1056, %v2592
        %v2594 = vlaneseq
        %v2595 = vshrl.u32 %v2594, 7
        %v2596 = vsub.s32 4, %v2595
        %v2597 = vrot.slane %v1057, %v2596
        %v2598 = vlaneseq
        %v2599 = vshrl.u32 %v2598, 7
        %v2600 = vsub.s32 4, %v2599
        %v2601 = vrot.slane %v1058, %v2600
        %v2602 = vlaneseq
        %v2603 = vshrl.u32 %v2602, 7
        %v2604 = vsub.s32 4, %v2603
        %v2605 = vrot.slane %v1059, %v2604
        %v2606 = vlaneseq
        %v2607 = vshrl.u32 %v2606, 7
        %v2608 = vsub.s32 4, %v2607
        %v2609 = vrot.slane %v1060, %v2608
        %v2610 = vlaneseq
        %v2611 = vshrl.u32 %v2610, 7
        %v2612 = vsub.s32 4, %v2611
        %v2613 = vrot.slane %v1061, %v2612
        %v2614 = vlaneseq
        %v2615 = vshrl.u32 %v2614, 7
        %v2616 = vsub.s32 4, %v2615
        %v2617 = vrot.slane %v1062, %v2616
        %v2618 = vlaneseq
        %v2619 = vshrl.u32 %v2618, 7
        %v2620 = vsub.s32 4, %v2619
        %v2621 = vrot.slane %v1063, %v2620
        %v2622 = vlaneseq
        %v2623 = vshrl.u32 %v2622, 7
        %v2624 = vsub.s32 4, %v2623
        %v2625 = vrot.slane %v1064, %v2624
        %v2626 = vlaneseq
        %v2627 = vshrl.u32 %v2626, 7
        %v2628 = vsub.s32 4, %v2627
        %v2629 = vrot.slane %v1065, %v2628
        %v2630 = vlaneseq
        %v2631 = vshrl.u32 %v2630, 7
        %v2632 = vsub.s32 4, %v2631
        %v2633 = vrot.slane %v1066, %v2632
        %v2634 = vlaneseq
        %v2635 = vshrl.u32 %v2634, 7
        %v2636 = vsub.s32 4, %v2635
        %v2637 = vrot.slane %v1067, %v2636
        %v2638 = vlaneseq
        %v2639 = vshrl.u32 %v2638, 7
        %v2640 = vsub.s32 4, %v2639
        %v2641 = vrot.slane %v1068, %v2640
        %v2642 = vlaneseq
        %v2643 = vshrl.u32 %v2642, 7
        %v2644 = vsub.s32 4, %v2643
        %v2645 = vrot.slane %v1069, %v2644
        %v2646 = vlaneseq
        %v2647 = vshrl.u32 %v2646, 7
        %v2648 = vsub.s32 4, %v2647
        %v2649 = vrot.slane %v1070, %v2648
        %v2650 = vlaneseq
        %v2651 = vshrl.u32 %v2650, 7
        %v2652 = vsub.s32 4, %v2651
        %v2653 = vrot.slane %v1071, %v2652
        %v2654 = vlaneseq
        %v2655 = vshrl.u32 %v2654, 7
        %v2656 = vsub.s32 4, %v2655
        %v2657 = vrot.slane %v1072, %v2656
        %v2658 = vlaneseq
        %v2659 = vshrl.u32 %v2658, 7
        %v2660 = vsub.s32 4, %v2659
        %v2661 = vrot.slane %v1073, %v2660
        %v2662 = vlaneseq
        %v2663 = vshrl.u32 %v2662, 7
        %v2664 = vsub.s32 4, %v2663
        %v2665 = vrot.slane %v1074, %v2664
        %v2666 = vlaneseq
        %v2667 = vshrl.u32 %v2666, 7
        %v2668 = vsub.s32 4, %v2667
        %v2669 = vrot.slane %v1075, %v2668
        %v2670 = vlaneseq
        %v2671 = vshrl.u32 %v2670, 7
        %v2672 = vsub.s32 4, %v2671
        %v2673 = vrot.slane %v1076, %v2672
        %v2674 = vlaneseq
        %v2675 = vshrl.u32 %v2674, 7
        %v2676 = vsub.s32 4, %v2675
        %v2677 = vrot.slane %v1077, %v2676
        %v2678 = vmul.f32 %v2424, %v2553
        %v2679 = vmul.f32 %v2428, %v2557
        %v2680 = vmul.f32 %v2432, %v2561
        %v2681 = vmul.f32 %v2436, %v2565
        %v2682 = vmul.f32 %v2440, %v2569
        %v2683 = vmul.f32 %v2444, %v2573
        %v2684 = vmul.f32 %v2448, %v2577
        %v2685 = vmul.f32 %v2452, %v2581
        %v2686 = vmul.f32 %v2456, %v2585
        %v2687 = vmul.f32 %v2460, %v2589
        %v2688 = vmul.f32 %v2464, %v2593
        %v2689 = vmul.f32 %v2468, %v2597
        %v2690 = vmul.f32 %v2472, %v2601
        %v2691 = vmul.f32 %v2476, %v2605
        %v2692 = vmul.f32 %v2480, %v2609
        %v2693 = vmul.f32 %v2484, %v2613
        %v2694 = vmul.f32 %v2488, %v2617
        %v2695 = vmul.f32 %v2492, %v2621
        %v2696 = vmul.f32 %v2496, %v2625
        %v2697 = vmul.f32 %v2500, %v2629
        %v2698 = vmul.f32 %v2504, %v2633
        %v2699 = vmul.f32 %v2508, %v2637
        %v2700 = vmul.f32 %v2512, %v2641
        %v2701 = vmul.f32 %v2516, %v2645
        %v2702 = vmul.f32 %v2520, %v2649
        %v2703 = vmul.f32 %v2524, %v2653
        %v2704 = vmul.f32 %v2528, %v2657
        %v2705 = vmul.f32 %v2532, %v2661
        %v2706 = vmul.f32 %v2536, %v2665
        %v2707 = vmul.f32 %v2540, %v2669
        %v2708 = vmul.f32 %v2544, %v2673
        %v2709 = vmul.f32 %v2548, %v2677
        %v2710 = vadd.f32 %v2390, %v2678
        %v2711 = vadd.f32 %v2391, %v2679
        %v2712 = vadd.f32 %v2392, %v2680
        %v2713 = vadd.f32 %v2393, %v2681
        %v2714 = vadd.f32 %v2394, %v2682
        %v2715 = vadd.f32 %v2395, %v2683
        %v2716 = vadd.f32 %v2396, %v2684
        %v2717 = vadd.f32 %v2397, %v2685
        %v2718 = vadd.f32 %v2398, %v2686
        %v2719 = vadd.f32 %v2399, %v2687
        %v2720 = vadd.f32 %v2400, %v2688
        %v2721 = vadd.f32 %v2401, %v2689
        %v2722 = vadd.f32 %v2402, %v2690
        %v2723 = vadd.f32 %v2403, %v2691
        %v2724 = vadd.f32 %v2404, %v2692
        %v2725 = vadd.f32 %v2405, %v2693
        %v2726 = vadd.f32 %v2406, %v2694
        %v2727 = vadd.f32 %v2407, %v2695
        %v2728 = vadd.f32 %v2408, %v2696
        %v2729 = vadd.f32 %v2409, %v2697
        %v2730 = vadd.f32 %v2410, %v2698
        %v2731 = vadd.f32 %v2411, %v2699
        %v2732 = vadd.f32 %v2412, %v2700
        %v2733 = vadd.f32 %v2413, %v2701
        %v2734 = vadd.f32 %v2414, %v2702
        %v2735 = vadd.f32 %v2415, %v2703
        %v2736 = vadd.f32 %v2416, %v2704
        %v2737 = vadd.f32 %v2417, %v2705
        %v2738 = vadd.f32 %v2418, %v2706
        %v2739 = vadd.f32 %v2419, %v2707
        %v2740 = vadd.f32 %v2420, %v2708
        %v2741 = vadd.f32 %v2421, %v2709
        %2742 = vset.pattern.permute.xlu0 5
        %2743 = vperm.xlu0 %2742, %v1078
        %v2744 = vpop.permute.xlu0 %2743
        %2746 = vset.pattern.permute.xlu0 5
        %2747 = vperm.xlu0 %2746, %v1079
        %v2748 = vpop.permute.xlu0 %2747
        %2750 = vset.pattern.permute.xlu0 5
        %2751 = vperm.xlu0 %2750, %v1080
        %v2752 = vpop.permute.xlu0 %2751
        %2754 = vset.pattern.permute.xlu0 5
        %2755 = vperm.xlu0 %2754, %v1081
        %v2756 = vpop.permute.xlu0 %2755
        %2758 = vset.pattern.permute.xlu0 5
        %2759 = vperm.xlu0 %2758, %v1082
        %v2760 = vpop.permute.xlu0 %2759
        %2762 = vset.pattern.permute.xlu0 5
        %2763 = vperm.xlu0 %2762, %v1083
        %v2764 = vpop.permute.xlu0 %2763
        %2766 = vset.pattern.permute.xlu0 5
        %2767 = vperm.xlu0 %2766, %v1084
        %v2768 = vpop.permute.xlu0 %2767
        %2770 = vset.pattern.permute.xlu0 5
        %2771 = vperm.xlu0 %2770, %v1085
        %v2772 = vpop.permute.xlu0 %2771
        %2774 = vset.pattern.permute.xlu0 5
        %2775 = vperm.xlu0 %2774, %v1086
        %v2776 = vpop.permute.xlu0 %2775
        %2778 = vset.pattern.permute.xlu0 5
        %2779 = vperm.xlu0 %2778, %v1087
        %v2780 = vpop.permute.xlu0 %2779
        %2782 = vset.pattern.permute.xlu0 5
        %2783 = vperm.xlu0 %2782, %v1088
        %v2784 = vpop.permute.xlu0 %2783
        %2786 = vset.pattern.permute.xlu0 5
        %2787 = vperm.xlu0 %2786, %v1089
        %v2788 = vpop.permute.xlu0 %2787
        %2790 = vset.pattern.permute.xlu0 5
        %2791 = vperm.xlu0 %2790, %v1090
        %v2792 = vpop.permute.xlu0 %2791
        %2794 = vset.pattern.permute.xlu0 5
        %2795 = vperm.xlu0 %2794, %v1091
        %v2796 = vpop.permute.xlu0 %2795
        %2798 = vset.pattern.permute.xlu0 5
        %2799 = vperm.xlu0 %2798, %v1092
        %v2800 = vpop.permute.xlu0 %2799
        %2802 = vset.pattern.permute.xlu0 5
        %2803 = vperm.xlu0 %2802, %v1093
        %v2804 = vpop.permute.xlu0 %2803
        %2806 = vset.pattern.permute.xlu0 5
        %2807 = vperm.xlu0 %2806, %v1094
        %v2808 = vpop.permute.xlu0 %2807
        %2810 = vset.pattern.permute.xlu0 5
        %2811 = vperm.xlu0 %2810, %v1095
        %v2812 = vpop.permute.xlu0 %2811
        %2814 = vset.pattern.permute.xlu0 5
        %2815 = vperm.xlu0 %2814, %v1096
        %v2816 = vpop.permute.xlu0 %2815
        %2818 = vset.pattern.permute.xlu0 5
        %2819 = vperm.xlu0 %2818, %v1097
        %v2820 = vpop.permute.xlu0 %2819
        %2822 = vset.pattern.permute.xlu0 5
        %2823 = vperm.xlu0 %2822, %v1098
        %v2824 = vpop.permute.xlu0 %2823
        %2826 = vset.pattern.permute.xlu0 5
        %2827 = vperm.xlu0 %2826, %v1099
        %v2828 = vpop.permute.xlu0 %2827
        %2830 = vset.pattern.permute.xlu0 5
        %2831 = vperm.xlu0 %2830, %v1100
        %v2832 = vpop.permute.xlu0 %2831
        %2834 = vset.pattern.permute.xlu0 5
        %2835 = vperm.xlu0 %2834, %v1101
        %v2836 = vpop.permute.xlu0 %2835
        %2838 = vset.pattern.permute.xlu0 5
        %2839 = vperm.xlu0 %2838, %v1102
        %v2840 = vpop.permute.xlu0 %2839
        %2842 = vset.pattern.permute.xlu0 5
        %2843 = vperm.xlu0 %2842, %v1103
        %v2844 = vpop.permute.xlu0 %2843
        %2846 = vset.pattern.permute.xlu0 5
        %2847 = vperm.xlu0 %2846, %v1104
        %v2848 = vpop.permute.xlu0 %2847
        %2850 = vset.pattern.permute.xlu0 5
        %2851 = vperm.xlu0 %2850, %v1105
        %v2852 = vpop.permute.xlu0 %2851
        %2854 = vset.pattern.permute.xlu0 5
        %2855 = vperm.xlu0 %2854, %v1106
        %v2856 = vpop.permute.xlu0 %2855
        %2858 = vset.pattern.permute.xlu0 5
        %2859 = vperm.xlu0 %2858, %v1107
        %v2860 = vpop.permute.xlu0 %2859
        %2862 = vset.pattern.permute.xlu0 5
        %2863 = vperm.xlu0 %2862, %v1108
        %v2864 = vpop.permute.xlu0 %2863
        %2866 = vset.pattern.permute.xlu0 5
        %2867 = vperm.xlu0 %2866, %v1109
        %v2868 = vpop.permute.xlu0 %2867
        %v2870 = vlaneseq
        %v2871 = vshrl.u32 %v2870, 7
        %v2872 = vsub.s32 5, %v2871
        %v2873 = vrot.slane %v1046, %v2872
        %v2874 = vlaneseq
        %v2875 = vshrl.u32 %v2874, 7
        %v2876 = vsub.s32 5, %v2875
        %v2877 = vrot.slane %v1047, %v2876
        %v2878 = vlaneseq
        %v2879 = vshrl.u32 %v2878, 7
        %v2880 = vsub.s32 5, %v2879
        %v2881 = vrot.slane %v1048, %v2880
        %v2882 = vlaneseq
        %v2883 = vshrl.u32 %v2882, 7
        %v2884 = vsub.s32 5, %v2883
        %v2885 = vrot.slane %v1049, %v2884
        %v2886 = vlaneseq
        %v2887 = vshrl.u32 %v2886, 7
        %v2888 = vsub.s32 5, %v2887
        %v2889 = vrot.slane %v1050, %v2888
        %v2890 = vlaneseq
        %v2891 = vshrl.u32 %v2890, 7
        %v2892 = vsub.s32 5, %v2891
        %v2893 = vrot.slane %v1051, %v2892
        %v2894 = vlaneseq
        %v2895 = vshrl.u32 %v2894, 7
        %v2896 = vsub.s32 5, %v2895
        %v2897 = vrot.slane %v1052, %v2896
        %v2898 = vlaneseq
        %v2899 = vshrl.u32 %v2898, 7
        %v2900 = vsub.s32 5, %v2899
        %v2901 = vrot.slane %v1053, %v2900
        %v2902 = vlaneseq
        %v2903 = vshrl.u32 %v2902, 7
        %v2904 = vsub.s32 5, %v2903
        %v2905 = vrot.slane %v1054, %v2904
        %v2906 = vlaneseq
        %v2907 = vshrl.u32 %v2906, 7
        %v2908 = vsub.s32 5, %v2907
        %v2909 = vrot.slane %v1055, %v2908
        %v2910 = vlaneseq
        %v2911 = vshrl.u32 %v2910, 7
        %v2912 = vsub.s32 5, %v2911
        %v2913 = vrot.slane %v1056, %v2912
        %v2914 = vlaneseq
        %v2915 = vshrl.u32 %v2914, 7
        %v2916 = vsub.s32 5, %v2915
        %v2917 = vrot.slane %v1057, %v2916
        %v2918 = vlaneseq
        %v2919 = vshrl.u32 %v2918, 7
        %v2920 = vsub.s32 5, %v2919
        %v2921 = vrot.slane %v1058, %v2920
        %v2922 = vlaneseq
        %v2923 = vshrl.u32 %v2922, 7
        %v2924 = vsub.s32 5, %v2923
        %v2925 = vrot.slane %v1059, %v2924
        %v2926 = vlaneseq
        %v2927 = vshrl.u32 %v2926, 7
        %v2928 = vsub.s32 5, %v2927
        %v2929 = vrot.slane %v1060, %v2928
        %v2930 = vlaneseq
        %v2931 = vshrl.u32 %v2930, 7
        %v2932 = vsub.s32 5, %v2931
        %v2933 = vrot.slane %v1061, %v2932
        %v2934 = vlaneseq
        %v2935 = vshrl.u32 %v2934, 7
        %v2936 = vsub.s32 5, %v2935
        %v2937 = vrot.slane %v1062, %v2936
        %v2938 = vlaneseq
        %v2939 = vshrl.u32 %v2938, 7
        %v2940 = vsub.s32 5, %v2939
        %v2941 = vrot.slane %v1063, %v2940
        %v2942 = vlaneseq
        %v2943 = vshrl.u32 %v2942, 7
        %v2944 = vsub.s32 5, %v2943
        %v2945 = vrot.slane %v1064, %v2944
        %v2946 = vlaneseq
        %v2947 = vshrl.u32 %v2946, 7
        %v2948 = vsub.s32 5, %v2947
        %v2949 = vrot.slane %v1065, %v2948
        %v2950 = vlaneseq
        %v2951 = vshrl.u32 %v2950, 7
        %v2952 = vsub.s32 5, %v2951
        %v2953 = vrot.slane %v1066, %v2952
        %v2954 = vlaneseq
        %v2955 = vshrl.u32 %v2954, 7
        %v2956 = vsub.s32 5, %v2955
        %v2957 = vrot.slane %v1067, %v2956
        %v2958 = vlaneseq
        %v2959 = vshrl.u32 %v2958, 7
        %v2960 = vsub.s32 5, %v2959
        %v2961 = vrot.slane %v1068, %v2960
        %v2962 = vlaneseq
        %v2963 = vshrl.u32 %v2962, 7
        %v2964 = vsub.s32 5, %v2963
        %v2965 = vrot.slane %v1069, %v2964
        %v2966 = vlaneseq
        %v2967 = vshrl.u32 %v2966, 7
        %v2968 = vsub.s32 5, %v2967
        %v2969 = vrot.slane %v1070, %v2968
        %v2970 = vlaneseq
        %v2971 = vshrl.u32 %v2970, 7
        %v2972 = vsub.s32 5, %v2971
        %v2973 = vrot.slane %v1071, %v2972
        %v2974 = vlaneseq
        %v2975 = vshrl.u32 %v2974, 7
        %v2976 = vsub.s32 5, %v2975
        %v2977 = vrot.slane %v1072, %v2976
        %v2978 = vlaneseq
        %v2979 = vshrl.u32 %v2978, 7
        %v2980 = vsub.s32 5, %v2979
        %v2981 = vrot.slane %v1073, %v2980
        %v2982 = vlaneseq
        %v2983 = vshrl.u32 %v2982, 7
        %v2984 = vsub.s32 5, %v2983
        %v2985 = vrot.slane %v1074, %v2984
        %v2986 = vlaneseq
        %v2987 = vshrl.u32 %v2986, 7
        %v2988 = vsub.s32 5, %v2987
        %v2989 = vrot.slane %v1075, %v2988
        %v2990 = vlaneseq
        %v2991 = vshrl.u32 %v2990, 7
        %v2992 = vsub.s32 5, %v2991
        %v2993 = vrot.slane %v1076, %v2992
        %v2994 = vlaneseq
        %v2995 = vshrl.u32 %v2994, 7
        %v2996 = vsub.s32 5, %v2995
        %v2997 = vrot.slane %v1077, %v2996
        %v2998 = vmul.f32 %v2744, %v2873
        %v2999 = vmul.f32 %v2748, %v2877
        %v3000 = vmul.f32 %v2752, %v2881
        %v3001 = vmul.f32 %v2756, %v2885
        %v3002 = vmul.f32 %v2760, %v2889
        %v3003 = vmul.f32 %v2764, %v2893
        %v3004 = vmul.f32 %v2768, %v2897
        %v3005 = vmul.f32 %v2772, %v2901
        %v3006 = vmul.f32 %v2776, %v2905
        %v3007 = vmul.f32 %v2780, %v2909
        %v3008 = vmul.f32 %v2784, %v2913
        %v3009 = vmul.f32 %v2788, %v2917
        %v3010 = vmul.f32 %v2792, %v2921
        %v3011 = vmul.f32 %v2796, %v2925
        %v3012 = vmul.f32 %v2800, %v2929
        %v3013 = vmul.f32 %v2804, %v2933
        %v3014 = vmul.f32 %v2808, %v2937
        %v3015 = vmul.f32 %v2812, %v2941
        %v3016 = vmul.f32 %v2816, %v2945
        %v3017 = vmul.f32 %v2820, %v2949
        %v3018 = vmul.f32 %v2824, %v2953
        %v3019 = vmul.f32 %v2828, %v2957
        %v3020 = vmul.f32 %v2832, %v2961
        %v3021 = vmul.f32 %v2836, %v2965
        %v3022 = vmul.f32 %v2840, %v2969
        %v3023 = vmul.f32 %v2844, %v2973
        %v3024 = vmul.f32 %v2848, %v2977
        %v3025 = vmul.f32 %v2852, %v2981
        %v3026 = vmul.f32 %v2856, %v2985
        %v3027 = vmul.f32 %v2860, %v2989
        %v3028 = vmul.f32 %v2864, %v2993
        %v3029 = vmul.f32 %v2868, %v2997
        %v3030 = vadd.f32 %v2710, %v2998
        %v3031 = vadd.f32 %v2711, %v2999
        %v3032 = vadd.f32 %v2712, %v3000
        %v3033 = vadd.f32 %v2713, %v3001
        %v3034 = vadd.f32 %v2714, %v3002
        %v3035 = vadd.f32 %v2715, %v3003
        %v3036 = vadd.f32 %v2716, %v3004
        %v3037 = vadd.f32 %v2717, %v3005
        %v3038 = vadd.f32 %v2718, %v3006
        %v3039 = vadd.f32 %v2719, %v3007
        %v3040 = vadd.f32 %v2720, %v3008
        %v3041 = vadd.f32 %v2721, %v3009
        %v3042 = vadd.f32 %v2722, %v3010
        %v3043 = vadd.f32 %v2723, %v3011
        %v3044 = vadd.f32 %v2724, %v3012
        %v3045 = vadd.f32 %v2725, %v3013
        %v3046 = vadd.f32 %v2726, %v3014
        %v3047 = vadd.f32 %v2727, %v3015
        %v3048 = vadd.f32 %v2728, %v3016
        %v3049 = vadd.f32 %v2729, %v3017
        %v3050 = vadd.f32 %v2730, %v3018
        %v3051 = vadd.f32 %v2731, %v3019
        %v3052 = vadd.f32 %v2732, %v3020
        %v3053 = vadd.f32 %v2733, %v3021
        %v3054 = vadd.f32 %v2734, %v3022
        %v3055 = vadd.f32 %v2735, %v3023
        %v3056 = vadd.f32 %v2736, %v3024
        %v3057 = vadd.f32 %v2737, %v3025
        %v3058 = vadd.f32 %v2738, %v3026
        %v3059 = vadd.f32 %v2739, %v3027
        %v3060 = vadd.f32 %v2740, %v3028
        %v3061 = vadd.f32 %v2741, %v3029
        %3062 = vset.pattern.permute.xlu0 6
        %3063 = vperm.xlu0 %3062, %v1078
        %v3064 = vpop.permute.xlu0 %3063
        %3066 = vset.pattern.permute.xlu0 6
        %3067 = vperm.xlu0 %3066, %v1079
        %v3068 = vpop.permute.xlu0 %3067
        %3070 = vset.pattern.permute.xlu0 6
        %3071 = vperm.xlu0 %3070, %v1080
        %v3072 = vpop.permute.xlu0 %3071
        %3074 = vset.pattern.permute.xlu0 6
        %3075 = vperm.xlu0 %3074, %v1081
        %v3076 = vpop.permute.xlu0 %3075
        %3078 = vset.pattern.permute.xlu0 6
        %3079 = vperm.xlu0 %3078, %v1082
        %v3080 = vpop.permute.xlu0 %3079
        %3082 = vset.pattern.permute.xlu0 6
        %3083 = vperm.xlu0 %3082, %v1083
        %v3084 = vpop.permute.xlu0 %3083
        %3086 = vset.pattern.permute.xlu0 6
        %3087 = vperm.xlu0 %3086, %v1084
        %v3088 = vpop.permute.xlu0 %3087
        %3090 = vset.pattern.permute.xlu0 6
        %3091 = vperm.xlu0 %3090, %v1085
        %v3092 = vpop.permute.xlu0 %3091
        %3094 = vset.pattern.permute.xlu0 6
        %3095 = vperm.xlu0 %3094, %v1086
        %v3096 = vpop.permute.xlu0 %3095
        %3098 = vset.pattern.permute.xlu0 6
        %3099 = vperm.xlu0 %3098, %v1087
        %v3100 = vpop.permute.xlu0 %3099
        %3102 = vset.pattern.permute.xlu0 6
        %3103 = vperm.xlu0 %3102, %v1088
        %v3104 = vpop.permute.xlu0 %3103
        %3106 = vset.pattern.permute.xlu0 6
        %3107 = vperm.xlu0 %3106, %v1089
        %v3108 = vpop.permute.xlu0 %3107
        %3110 = vset.pattern.permute.xlu0 6
        %3111 = vperm.xlu0 %3110, %v1090
        %v3112 = vpop.permute.xlu0 %3111
        %3114 = vset.pattern.permute.xlu0 6
        %3115 = vperm.xlu0 %3114, %v1091
        %v3116 = vpop.permute.xlu0 %3115
        %3118 = vset.pattern.permute.xlu0 6
        %3119 = vperm.xlu0 %3118, %v1092
        %v3120 = vpop.permute.xlu0 %3119
        %3122 = vset.pattern.permute.xlu0 6
        %3123 = vperm.xlu0 %3122, %v1093
        %v3124 = vpop.permute.xlu0 %3123
        %3126 = vset.pattern.permute.xlu0 6
        %3127 = vperm.xlu0 %3126, %v1094
        %v3128 = vpop.permute.xlu0 %3127
        %3130 = vset.pattern.permute.xlu0 6
        %3131 = vperm.xlu0 %3130, %v1095
        %v3132 = vpop.permute.xlu0 %3131
        %3134 = vset.pattern.permute.xlu0 6
        %3135 = vperm.xlu0 %3134, %v1096
        %v3136 = vpop.permute.xlu0 %3135
        %3138 = vset.pattern.permute.xlu0 6
        %3139 = vperm.xlu0 %3138, %v1097
        %v3140 = vpop.permute.xlu0 %3139
        %3142 = vset.pattern.permute.xlu0 6
        %3143 = vperm.xlu0 %3142, %v1098
        %v3144 = vpop.permute.xlu0 %3143
        %3146 = vset.pattern.permute.xlu0 6
        %3147 = vperm.xlu0 %3146, %v1099
        %v3148 = vpop.permute.xlu0 %3147
        %3150 = vset.pattern.permute.xlu0 6
        %3151 = vperm.xlu0 %3150, %v1100
        %v3152 = vpop.permute.xlu0 %3151
        %3154 = vset.pattern.permute.xlu0 6
        %3155 = vperm.xlu0 %3154, %v1101
        %v3156 = vpop.permute.xlu0 %3155
        %3158 = vset.pattern.permute.xlu0 6
        %3159 = vperm.xlu0 %3158, %v1102
        %v3160 = vpop.permute.xlu0 %3159
        %3162 = vset.pattern.permute.xlu0 6
        %3163 = vperm.xlu0 %3162, %v1103
        %v3164 = vpop.permute.xlu0 %3163
        %3166 = vset.pattern.permute.xlu0 6
        %3167 = vperm.xlu0 %3166, %v1104
        %v3168 = vpop.permute.xlu0 %3167
        %3170 = vset.pattern.permute.xlu0 6
        %3171 = vperm.xlu0 %3170, %v1105
        %v3172 = vpop.permute.xlu0 %3171
        %3174 = vset.pattern.permute.xlu0 6
        %3175 = vperm.xlu0 %3174, %v1106
        %v3176 = vpop.permute.xlu0 %3175
        %3178 = vset.pattern.permute.xlu0 6
        %3179 = vperm.xlu0 %3178, %v1107
        %v3180 = vpop.permute.xlu0 %3179
        %3182 = vset.pattern.permute.xlu0 6
        %3183 = vperm.xlu0 %3182, %v1108
        %v3184 = vpop.permute.xlu0 %3183
        %3186 = vset.pattern.permute.xlu0 6
        %3187 = vperm.xlu0 %3186, %v1109
        %v3188 = vpop.permute.xlu0 %3187
        %v3190 = vlaneseq
        %v3191 = vshrl.u32 %v3190, 7
        %v3192 = vsub.s32 6, %v3191
        %v3193 = vrot.slane %v1046, %v3192
        %v3194 = vlaneseq
        %v3195 = vshrl.u32 %v3194, 7
        %v3196 = vsub.s32 6, %v3195
        %v3197 = vrot.slane %v1047, %v3196
        %v3198 = vlaneseq
        %v3199 = vshrl.u32 %v3198, 7
        %v3200 = vsub.s32 6, %v3199
        %v3201 = vrot.slane %v1048, %v3200
        %v3202 = vlaneseq
        %v3203 = vshrl.u32 %v3202, 7
        %v3204 = vsub.s32 6, %v3203
        %v3205 = vrot.slane %v1049, %v3204
        %v3206 = vlaneseq
        %v3207 = vshrl.u32 %v3206, 7
        %v3208 = vsub.s32 6, %v3207
        %v3209 = vrot.slane %v1050, %v3208
        %v3210 = vlaneseq
        %v3211 = vshrl.u32 %v3210, 7
        %v3212 = vsub.s32 6, %v3211
        %v3213 = vrot.slane %v1051, %v3212
        %v3214 = vlaneseq
        %v3215 = vshrl.u32 %v3214, 7
        %v3216 = vsub.s32 6, %v3215
        %v3217 = vrot.slane %v1052, %v3216
        %v3218 = vlaneseq
        %v3219 = vshrl.u32 %v3218, 7
        %v3220 = vsub.s32 6, %v3219
        %v3221 = vrot.slane %v1053, %v3220
        %v3222 = vlaneseq
        %v3223 = vshrl.u32 %v3222, 7
        %v3224 = vsub.s32 6, %v3223
        %v3225 = vrot.slane %v1054, %v3224
        %v3226 = vlaneseq
        %v3227 = vshrl.u32 %v3226, 7
        %v3228 = vsub.s32 6, %v3227
        %v3229 = vrot.slane %v1055, %v3228
        %v3230 = vlaneseq
        %v3231 = vshrl.u32 %v3230, 7
        %v3232 = vsub.s32 6, %v3231
        %v3233 = vrot.slane %v1056, %v3232
        %v3234 = vlaneseq
        %v3235 = vshrl.u32 %v3234, 7
        %v3236 = vsub.s32 6, %v3235
        %v3237 = vrot.slane %v1057, %v3236
        %v3238 = vlaneseq
        %v3239 = vshrl.u32 %v3238, 7
        %v3240 = vsub.s32 6, %v3239
        %v3241 = vrot.slane %v1058, %v3240
        %v3242 = vlaneseq
        %v3243 = vshrl.u32 %v3242, 7
        %v3244 = vsub.s32 6, %v3243
        %v3245 = vrot.slane %v1059, %v3244
        %v3246 = vlaneseq
        %v3247 = vshrl.u32 %v3246, 7
        %v3248 = vsub.s32 6, %v3247
        %v3249 = vrot.slane %v1060, %v3248
        %v3250 = vlaneseq
        %v3251 = vshrl.u32 %v3250, 7
        %v3252 = vsub.s32 6, %v3251
        %v3253 = vrot.slane %v1061, %v3252
        %v3254 = vlaneseq
        %v3255 = vshrl.u32 %v3254, 7
        %v3256 = vsub.s32 6, %v3255
        %v3257 = vrot.slane %v1062, %v3256
        %v3258 = vlaneseq
        %v3259 = vshrl.u32 %v3258, 7
        %v3260 = vsub.s32 6, %v3259
        %v3261 = vrot.slane %v1063, %v3260
        %v3262 = vlaneseq
        %v3263 = vshrl.u32 %v3262, 7
        %v3264 = vsub.s32 6, %v3263
        %v3265 = vrot.slane %v1064, %v3264
        %v3266 = vlaneseq
        %v3267 = vshrl.u32 %v3266, 7
        %v3268 = vsub.s32 6, %v3267
        %v3269 = vrot.slane %v1065, %v3268
        %v3270 = vlaneseq
        %v3271 = vshrl.u32 %v3270, 7
        %v3272 = vsub.s32 6, %v3271
        %v3273 = vrot.slane %v1066, %v3272
        %v3274 = vlaneseq
        %v3275 = vshrl.u32 %v3274, 7
        %v3276 = vsub.s32 6, %v3275
        %v3277 = vrot.slane %v1067, %v3276
        %v3278 = vlaneseq
        %v3279 = vshrl.u32 %v3278, 7
        %v3280 = vsub.s32 6, %v3279
        %v3281 = vrot.slane %v1068, %v3280
        %v3282 = vlaneseq
        %v3283 = vshrl.u32 %v3282, 7
        %v3284 = vsub.s32 6, %v3283
        %v3285 = vrot.slane %v1069, %v3284
        %v3286 = vlaneseq
        %v3287 = vshrl.u32 %v3286, 7
        %v3288 = vsub.s32 6, %v3287
        %v3289 = vrot.slane %v1070, %v3288
        %v3290 = vlaneseq
        %v3291 = vshrl.u32 %v3290, 7
        %v3292 = vsub.s32 6, %v3291
        %v3293 = vrot.slane %v1071, %v3292
        %v3294 = vlaneseq
        %v3295 = vshrl.u32 %v3294, 7
        %v3296 = vsub.s32 6, %v3295
        %v3297 = vrot.slane %v1072, %v3296
        %v3298 = vlaneseq
        %v3299 = vshrl.u32 %v3298, 7
        %v3300 = vsub.s32 6, %v3299
        %v3301 = vrot.slane %v1073, %v3300
        %v3302 = vlaneseq
        %v3303 = vshrl.u32 %v3302, 7
        %v3304 = vsub.s32 6, %v3303
        %v3305 = vrot.slane %v1074, %v3304
        %v3306 = vlaneseq
        %v3307 = vshrl.u32 %v3306, 7
        %v3308 = vsub.s32 6, %v3307
        %v3309 = vrot.slane %v1075, %v3308
        %v3310 = vlaneseq
        %v3311 = vshrl.u32 %v3310, 7
        %v3312 = vsub.s32 6, %v3311
        %v3313 = vrot.slane %v1076, %v3312
        %v3314 = vlaneseq
        %v3315 = vshrl.u32 %v3314, 7
        %v3316 = vsub.s32 6, %v3315
        %v3317 = vrot.slane %v1077, %v3316
        %v3318 = vmul.f32 %v3064, %v3193
        %v3319 = vmul.f32 %v3068, %v3197
        %v3320 = vmul.f32 %v3072, %v3201
        %v3321 = vmul.f32 %v3076, %v3205
        %v3322 = vmul.f32 %v3080, %v3209
        %v3323 = vmul.f32 %v3084, %v3213
        %v3324 = vmul.f32 %v3088, %v3217
        %v3325 = vmul.f32 %v3092, %v3221
        %v3326 = vmul.f32 %v3096, %v3225
        %v3327 = vmul.f32 %v3100, %v3229
        %v3328 = vmul.f32 %v3104, %v3233
        %v3329 = vmul.f32 %v3108, %v3237
        %v3330 = vmul.f32 %v3112, %v3241
        %v3331 = vmul.f32 %v3116, %v3245
        %v3332 = vmul.f32 %v3120, %v3249
        %v3333 = vmul.f32 %v3124, %v3253
        %v3334 = vmul.f32 %v3128, %v3257
        %v3335 = vmul.f32 %v3132, %v3261
        %v3336 = vmul.f32 %v3136, %v3265
        %v3337 = vmul.f32 %v3140, %v3269
        %v3338 = vmul.f32 %v3144, %v3273
        %v3339 = vmul.f32 %v3148, %v3277
        %v3340 = vmul.f32 %v3152, %v3281
        %v3341 = vmul.f32 %v3156, %v3285
        %v3342 = vmul.f32 %v3160, %v3289
        %v3343 = vmul.f32 %v3164, %v3293
        %v3344 = vmul.f32 %v3168, %v3297
        %v3345 = vmul.f32 %v3172, %v3301
        %v3346 = vmul.f32 %v3176, %v3305
        %v3347 = vmul.f32 %v3180, %v3309
        %v3348 = vmul.f32 %v3184, %v3313
        %v3349 = vmul.f32 %v3188, %v3317
        %v3350 = vadd.f32 %v3030, %v3318
        %v3351 = vadd.f32 %v3031, %v3319
        %v3352 = vadd.f32 %v3032, %v3320
        %v3353 = vadd.f32 %v3033, %v3321
        %v3354 = vadd.f32 %v3034, %v3322
        %v3355 = vadd.f32 %v3035, %v3323
        %v3356 = vadd.f32 %v3036, %v3324
        %v3357 = vadd.f32 %v3037, %v3325
        %v3358 = vadd.f32 %v3038, %v3326
        %v3359 = vadd.f32 %v3039, %v3327
        %v3360 = vadd.f32 %v3040, %v3328
        %v3361 = vadd.f32 %v3041, %v3329
        %v3362 = vadd.f32 %v3042, %v3330
        %v3363 = vadd.f32 %v3043, %v3331
        %v3364 = vadd.f32 %v3044, %v3332
        %v3365 = vadd.f32 %v3045, %v3333
        %v3366 = vadd.f32 %v3046, %v3334
        %v3367 = vadd.f32 %v3047, %v3335
        %v3368 = vadd.f32 %v3048, %v3336
        %v3369 = vadd.f32 %v3049, %v3337
        %v3370 = vadd.f32 %v3050, %v3338
        %v3371 = vadd.f32 %v3051, %v3339
        %v3372 = vadd.f32 %v3052, %v3340
        %v3373 = vadd.f32 %v3053, %v3341
        %v3374 = vadd.f32 %v3054, %v3342
        %v3375 = vadd.f32 %v3055, %v3343
        %v3376 = vadd.f32 %v3056, %v3344
        %v3377 = vadd.f32 %v3057, %v3345
        %v3378 = vadd.f32 %v3058, %v3346
        %v3379 = vadd.f32 %v3059, %v3347
        %v3380 = vadd.f32 %v3060, %v3348
        %v3381 = vadd.f32 %v3061, %v3349
        %3382 = vset.pattern.permute.xlu0 7
        %3383 = vperm.xlu0 %3382, %v1078
        %v3384 = vpop.permute.xlu0 %3383
        %3386 = vset.pattern.permute.xlu0 7
        %3387 = vperm.xlu0 %3386, %v1079
        %v3388 = vpop.permute.xlu0 %3387
        %3390 = vset.pattern.permute.xlu0 7
        %3391 = vperm.xlu0 %3390, %v1080
        %v3392 = vpop.permute.xlu0 %3391
        %3394 = vset.pattern.permute.xlu0 7
        %3395 = vperm.xlu0 %3394, %v1081
        %v3396 = vpop.permute.xlu0 %3395
        %3398 = vset.pattern.permute.xlu0 7
        %3399 = vperm.xlu0 %3398, %v1082
        %v3400 = vpop.permute.xlu0 %3399
        %3402 = vset.pattern.permute.xlu0 7
        %3403 = vperm.xlu0 %3402, %v1083
        %v3404 = vpop.permute.xlu0 %3403
        %3406 = vset.pattern.permute.xlu0 7
        %3407 = vperm.xlu0 %3406, %v1084
        %v3408 = vpop.permute.xlu0 %3407
        %3410 = vset.pattern.permute.xlu0 7
        %3411 = vperm.xlu0 %3410, %v1085
        %v3412 = vpop.permute.xlu0 %3411
        %3414 = vset.pattern.permute.xlu0 7
        %3415 = vperm.xlu0 %3414, %v1086
        %v3416 = vpop.permute.xlu0 %3415
        %3418 = vset.pattern.permute.xlu0 7
        %3419 = vperm.xlu0 %3418, %v1087
        %v3420 = vpop.permute.xlu0 %3419
        %3422 = vset.pattern.permute.xlu0 7
        %3423 = vperm.xlu0 %3422, %v1088
        %v3424 = vpop.permute.xlu0 %3423
        %3426 = vset.pattern.permute.xlu0 7
        %3427 = vperm.xlu0 %3426, %v1089
        %v3428 = vpop.permute.xlu0 %3427
        %3430 = vset.pattern.permute.xlu0 7
        %3431 = vperm.xlu0 %3430, %v1090
        %v3432 = vpop.permute.xlu0 %3431
        %3434 = vset.pattern.permute.xlu0 7
        %3435 = vperm.xlu0 %3434, %v1091
        %v3436 = vpop.permute.xlu0 %3435
        %3438 = vset.pattern.permute.xlu0 7
        %3439 = vperm.xlu0 %3438, %v1092
        %v3440 = vpop.permute.xlu0 %3439
        %3442 = vset.pattern.permute.xlu0 7
        %3443 = vperm.xlu0 %3442, %v1093
        %v3444 = vpop.permute.xlu0 %3443
        %3446 = vset.pattern.permute.xlu0 7
        %3447 = vperm.xlu0 %3446, %v1094
        %v3448 = vpop.permute.xlu0 %3447
        %3450 = vset.pattern.permute.xlu0 7
        %3451 = vperm.xlu0 %3450, %v1095
        %v3452 = vpop.permute.xlu0 %3451
        %3454 = vset.pattern.permute.xlu0 7
        %3455 = vperm.xlu0 %3454, %v1096
        %v3456 = vpop.permute.xlu0 %3455
        %3458 = vset.pattern.permute.xlu0 7
        %3459 = vperm.xlu0 %3458, %v1097
        %v3460 = vpop.permute.xlu0 %3459
        %3462 = vset.pattern.permute.xlu0 7
        %3463 = vperm.xlu0 %3462, %v1098
        %v3464 = vpop.permute.xlu0 %3463
        %3466 = vset.pattern.permute.xlu0 7
        %3467 = vperm.xlu0 %3466, %v1099
        %v3468 = vpop.permute.xlu0 %3467
        %3470 = vset.pattern.permute.xlu0 7
        %3471 = vperm.xlu0 %3470, %v1100
        %v3472 = vpop.permute.xlu0 %3471
        %3474 = vset.pattern.permute.xlu0 7
        %3475 = vperm.xlu0 %3474, %v1101
        %v3476 = vpop.permute.xlu0 %3475
        %3478 = vset.pattern.permute.xlu0 7
        %3479 = vperm.xlu0 %3478, %v1102
        %v3480 = vpop.permute.xlu0 %3479
        %3482 = vset.pattern.permute.xlu0 7
        %3483 = vperm.xlu0 %3482, %v1103
        %v3484 = vpop.permute.xlu0 %3483
        %3486 = vset.pattern.permute.xlu0 7
        %3487 = vperm.xlu0 %3486, %v1104
        %v3488 = vpop.permute.xlu0 %3487
        %3490 = vset.pattern.permute.xlu0 7
        %3491 = vperm.xlu0 %3490, %v1105
        %v3492 = vpop.permute.xlu0 %3491
        %3494 = vset.pattern.permute.xlu0 7
        %3495 = vperm.xlu0 %3494, %v1106
        %v3496 = vpop.permute.xlu0 %3495
        %3498 = vset.pattern.permute.xlu0 7
        %3499 = vperm.xlu0 %3498, %v1107
        %v3500 = vpop.permute.xlu0 %3499
        %3502 = vset.pattern.permute.xlu0 7
        %3503 = vperm.xlu0 %3502, %v1108
        %v3504 = vpop.permute.xlu0 %3503
        %3506 = vset.pattern.permute.xlu0 7
        %3507 = vperm.xlu0 %3506, %v1109
        %v3508 = vpop.permute.xlu0 %3507
        %v3510 = vlaneseq
        %v3511 = vshrl.u32 %v3510, 7
        %v3512 = vsub.s32 7, %v3511
        %v3513 = vrot.slane %v1046, %v3512
        %v3514 = vlaneseq
        %v3515 = vshrl.u32 %v3514, 7
        %v3516 = vsub.s32 7, %v3515
        %v3517 = vrot.slane %v1047, %v3516
        %v3518 = vlaneseq
        %v3519 = vshrl.u32 %v3518, 7
        %v3520 = vsub.s32 7, %v3519
        %v3521 = vrot.slane %v1048, %v3520
        %v3522 = vlaneseq
        %v3523 = vshrl.u32 %v3522, 7
        %v3524 = vsub.s32 7, %v3523
        %v3525 = vrot.slane %v1049, %v3524
        %v3526 = vlaneseq
        %v3527 = vshrl.u32 %v3526, 7
        %v3528 = vsub.s32 7, %v3527
        %v3529 = vrot.slane %v1050, %v3528
        %v3530 = vlaneseq
        %v3531 = vshrl.u32 %v3530, 7
        %v3532 = vsub.s32 7, %v3531
        %v3533 = vrot.slane %v1051, %v3532
        %v3534 = vlaneseq
        %v3535 = vshrl.u32 %v3534, 7
        %v3536 = vsub.s32 7, %v3535
        %v3537 = vrot.slane %v1052, %v3536
        %v3538 = vlaneseq
        %v3539 = vshrl.u32 %v3538, 7
        %v3540 = vsub.s32 7, %v3539
        %v3541 = vrot.slane %v1053, %v3540
        %v3542 = vlaneseq
        %v3543 = vshrl.u32 %v3542, 7
        %v3544 = vsub.s32 7, %v3543
        %v3545 = vrot.slane %v1054, %v3544
        %v3546 = vlaneseq
        %v3547 = vshrl.u32 %v3546, 7
        %v3548 = vsub.s32 7, %v3547
        %v3549 = vrot.slane %v1055, %v3548
        %v3550 = vlaneseq
        %v3551 = vshrl.u32 %v3550, 7
        %v3552 = vsub.s32 7, %v3551
        %v3553 = vrot.slane %v1056, %v3552
        %v3554 = vlaneseq
        %v3555 = vshrl.u32 %v3554, 7
        %v3556 = vsub.s32 7, %v3555
        %v3557 = vrot.slane %v1057, %v3556
        %v3558 = vlaneseq
        %v3559 = vshrl.u32 %v3558, 7
        %v3560 = vsub.s32 7, %v3559
        %v3561 = vrot.slane %v1058, %v3560
        %v3562 = vlaneseq
        %v3563 = vshrl.u32 %v3562, 7
        %v3564 = vsub.s32 7, %v3563
        %v3565 = vrot.slane %v1059, %v3564
        %v3566 = vlaneseq
        %v3567 = vshrl.u32 %v3566, 7
        %v3568 = vsub.s32 7, %v3567
        %v3569 = vrot.slane %v1060, %v3568
        %v3570 = vlaneseq
        %v3571 = vshrl.u32 %v3570, 7
        %v3572 = vsub.s32 7, %v3571
        %v3573 = vrot.slane %v1061, %v3572
        %v3574 = vlaneseq
        %v3575 = vshrl.u32 %v3574, 7
        %v3576 = vsub.s32 7, %v3575
        %v3577 = vrot.slane %v1062, %v3576
        %v3578 = vlaneseq
        %v3579 = vshrl.u32 %v3578, 7
        %v3580 = vsub.s32 7, %v3579
        %v3581 = vrot.slane %v1063, %v3580
        %v3582 = vlaneseq
        %v3583 = vshrl.u32 %v3582, 7
        %v3584 = vsub.s32 7, %v3583
        %v3585 = vrot.slane %v1064, %v3584
        %v3586 = vlaneseq
        %v3587 = vshrl.u32 %v3586, 7
        %v3588 = vsub.s32 7, %v3587
        %v3589 = vrot.slane %v1065, %v3588
        %v3590 = vlaneseq
        %v3591 = vshrl.u32 %v3590, 7
        %v3592 = vsub.s32 7, %v3591
        %v3593 = vrot.slane %v1066, %v3592
        %v3594 = vlaneseq
        %v3595 = vshrl.u32 %v3594, 7
        %v3596 = vsub.s32 7, %v3595
        %v3597 = vrot.slane %v1067, %v3596
        %v3598 = vlaneseq
        %v3599 = vshrl.u32 %v3598, 7
        %v3600 = vsub.s32 7, %v3599
        %v3601 = vrot.slane %v1068, %v3600
        %v3602 = vlaneseq
        %v3603 = vshrl.u32 %v3602, 7
        %v3604 = vsub.s32 7, %v3603
        %v3605 = vrot.slane %v1069, %v3604
        %v3606 = vlaneseq
        %v3607 = vshrl.u32 %v3606, 7
        %v3608 = vsub.s32 7, %v3607
        %v3609 = vrot.slane %v1070, %v3608
        %v3610 = vlaneseq
        %v3611 = vshrl.u32 %v3610, 7
        %v3612 = vsub.s32 7, %v3611
        %v3613 = vrot.slane %v1071, %v3612
        %v3614 = vlaneseq
        %v3615 = vshrl.u32 %v3614, 7
        %v3616 = vsub.s32 7, %v3615
        %v3617 = vrot.slane %v1072, %v3616
        %v3618 = vlaneseq
        %v3619 = vshrl.u32 %v3618, 7
        %v3620 = vsub.s32 7, %v3619
        %v3621 = vrot.slane %v1073, %v3620
        %v3622 = vlaneseq
        %v3623 = vshrl.u32 %v3622, 7
        %v3624 = vsub.s32 7, %v3623
        %v3625 = vrot.slane %v1074, %v3624
        %v3626 = vlaneseq
        %v3627 = vshrl.u32 %v3626, 7
        %v3628 = vsub.s32 7, %v3627
        %v3629 = vrot.slane %v1075, %v3628
        %v3630 = vlaneseq
        %v3631 = vshrl.u32 %v3630, 7
        %v3632 = vsub.s32 7, %v3631
        %v3633 = vrot.slane %v1076, %v3632
        %v3634 = vlaneseq
        %v3635 = vshrl.u32 %v3634, 7
        %v3636 = vsub.s32 7, %v3635
        %v3637 = vrot.slane %v1077, %v3636
        %v3638 = vmul.f32 %v3384, %v3513
        %v3639 = vmul.f32 %v3388, %v3517
        %v3640 = vmul.f32 %v3392, %v3521
        %v3641 = vmul.f32 %v3396, %v3525
        %v3642 = vmul.f32 %v3400, %v3529
        %v3643 = vmul.f32 %v3404, %v3533
        %v3644 = vmul.f32 %v3408, %v3537
        %v3645 = vmul.f32 %v3412, %v3541
        %v3646 = vmul.f32 %v3416, %v3545
        %v3647 = vmul.f32 %v3420, %v3549
        %v3648 = vmul.f32 %v3424, %v3553
        %v3649 = vmul.f32 %v3428, %v3557
        %v3650 = vmul.f32 %v3432, %v3561
        %v3651 = vmul.f32 %v3436, %v3565
        %v3652 = vmul.f32 %v3440, %v3569
        %v3653 = vmul.f32 %v3444, %v3573
        %v3654 = vmul.f32 %v3448, %v3577
        %v3655 = vmul.f32 %v3452, %v3581
        %v3656 = vmul.f32 %v3456, %v3585
        %v3657 = vmul.f32 %v3460, %v3589
        %v3658 = vmul.f32 %v3464, %v3593
        %v3659 = vmul.f32 %v3468, %v3597
        %v3660 = vmul.f32 %v3472, %v3601
        %v3661 = vmul.f32 %v3476, %v3605
        %v3662 = vmul.f32 %v3480, %v3609
        %v3663 = vmul.f32 %v3484, %v3613
        %v3664 = vmul.f32 %v3488, %v3617
        %v3665 = vmul.f32 %v3492, %v3621
        %v3666 = vmul.f32 %v3496, %v3625
        %v3667 = vmul.f32 %v3500, %v3629
        %v3668 = vmul.f32 %v3504, %v3633
        %v3669 = vmul.f32 %v3508, %v3637
        %v3670 = vadd.f32 %v3350, %v3638
        %v3671 = vadd.f32 %v3351, %v3639
        %v3672 = vadd.f32 %v3352, %v3640
        %v3673 = vadd.f32 %v3353, %v3641
        %v3674 = vadd.f32 %v3354, %v3642
        %v3675 = vadd.f32 %v3355, %v3643
        %v3676 = vadd.f32 %v3356, %v3644
        %v3677 = vadd.f32 %v3357, %v3645
        %v3678 = vadd.f32 %v3358, %v3646
        %v3679 = vadd.f32 %v3359, %v3647
        %v3680 = vadd.f32 %v3360, %v3648
        %v3681 = vadd.f32 %v3361, %v3649
        %v3682 = vadd.f32 %v3362, %v3650
        %v3683 = vadd.f32 %v3363, %v3651
        %v3684 = vadd.f32 %v3364, %v3652
        %v3685 = vadd.f32 %v3365, %v3653
        %v3686 = vadd.f32 %v3366, %v3654
        %v3687 = vadd.f32 %v3367, %v3655
        %v3688 = vadd.f32 %v3368, %v3656
        %v3689 = vadd.f32 %v3369, %v3657
        %v3690 = vadd.f32 %v3370, %v3658
        %v3691 = vadd.f32 %v3371, %v3659
        %v3692 = vadd.f32 %v3372, %v3660
        %v3693 = vadd.f32 %v3373, %v3661
        %v3694 = vadd.f32 %v3374, %v3662
        %v3695 = vadd.f32 %v3375, %v3663
        %v3696 = vadd.f32 %v3376, %v3664
        %v3697 = vadd.f32 %v3377, %v3665
        %v3698 = vadd.f32 %v3378, %v3666
        %v3699 = vadd.f32 %v3379, %v3667
        %v3700 = vadd.f32 %v3380, %v3668
        %v3701 = vadd.f32 %v3381, %v3669
        %v3702 = vmul.f32 %v670, %v3670
        %v3703 = vmul.f32 %v671, %v3671
        %v3704 = vmul.f32 %v672, %v3672
        %v3705 = vmul.f32 %v673, %v3673
        %v3706 = vmul.f32 %v674, %v3674
        %v3707 = vmul.f32 %v675, %v3675
        %v3708 = vmul.f32 %v676, %v3676
        %v3709 = vmul.f32 %v677, %v3677
        %v3710 = vmul.f32 %v678, %v3678
        %v3711 = vmul.f32 %v679, %v3679
        %v3712 = vmul.f32 %v680, %v3680
        %v3713 = vmul.f32 %v681, %v3681
        %v3714 = vmul.f32 %v682, %v3682
        %v3715 = vmul.f32 %v683, %v3683
        %v3716 = vmul.f32 %v684, %v3684
        %v3717 = vmul.f32 %v685, %v3685
        %v3718 = vmul.f32 %v686, %v3686
        %v3719 = vmul.f32 %v687, %v3687
        %v3720 = vmul.f32 %v688, %v3688
        %v3721 = vmul.f32 %v689, %v3689
        %v3722 = vmul.f32 %v690, %v3690
        %v3723 = vmul.f32 %v691, %v3691
        %v3724 = vmul.f32 %v692, %v3692
        %v3725 = vmul.f32 %v693, %v3693
        %v3726 = vmul.f32 %v694, %v3694
        %v3727 = vmul.f32 %v695, %v3695
        %v3728 = vmul.f32 %v696, %v3696
        %v3729 = vmul.f32 %v697, %v3697
        %v3730 = vmul.f32 %v698, %v3698
        %v3731 = vmul.f32 %v699, %v3699
        %v3732 = vmul.f32 %v700, %v3700
        %v3733 = vmul.f32 %v701, %v3701
        %v3734 = vrot.slane %v3702, 4
        %v3735 = vadd.f32 %v3702, %v3734
        %v3736 = vrot.slane %v3735, 2
        %v3737 = vadd.f32 %v3735, %v3736
        %v3738 = vrot.slane %v3737, 1
        %v3739 = vadd.f32 %v3737, %v3738
        %v3740 = vrot.slane %v3703, 4
        %v3741 = vadd.f32 %v3703, %v3740
        %v3742 = vrot.slane %v3741, 2
        %v3743 = vadd.f32 %v3741, %v3742
        %v3744 = vrot.slane %v3743, 1
        %v3745 = vadd.f32 %v3743, %v3744
        %v3746 = vrot.slane %v3704, 4
        %v3747 = vadd.f32 %v3704, %v3746
        %v3748 = vrot.slane %v3747, 2
        %v3749 = vadd.f32 %v3747, %v3748
        %v3750 = vrot.slane %v3749, 1
        %v3751 = vadd.f32 %v3749, %v3750
        %v3752 = vrot.slane %v3705, 4
        %v3753 = vadd.f32 %v3705, %v3752
        %v3754 = vrot.slane %v3753, 2
        %v3755 = vadd.f32 %v3753, %v3754
        %v3756 = vrot.slane %v3755, 1
        %v3757 = vadd.f32 %v3755, %v3756
        %v3758 = vrot.slane %v3706, 4
        %v3759 = vadd.f32 %v3706, %v3758
        %v3760 = vrot.slane %v3759, 2
        %v3761 = vadd.f32 %v3759, %v3760
        %v3762 = vrot.slane %v3761, 1
        %v3763 = vadd.f32 %v3761, %v3762
        %v3764 = vrot.slane %v3707, 4
        %v3765 = vadd.f32 %v3707, %v3764
        %v3766 = vrot.slane %v3765, 2
        %v3767 = vadd.f32 %v3765, %v3766
        %v3768 = vrot.slane %v3767, 1
        %v3769 = vadd.f32 %v3767, %v3768
        %v3770 = vrot.slane %v3708, 4
        %v3771 = vadd.f32 %v3708, %v3770
        %v3772 = vrot.slane %v3771, 2
        %v3773 = vadd.f32 %v3771, %v3772
        %v3774 = vrot.slane %v3773, 1
        %v3775 = vadd.f32 %v3773, %v3774
        %v3776 = vrot.slane %v3709, 4
        %v3777 = vadd.f32 %v3709, %v3776
        %v3778 = vrot.slane %v3777, 2
        %v3779 = vadd.f32 %v3777, %v3778
        %v3780 = vrot.slane %v3779, 1
        %v3781 = vadd.f32 %v3779, %v3780
        %v3782 = vrot.slane %v3710, 4
        %v3783 = vadd.f32 %v3710, %v3782
        %v3784 = vrot.slane %v3783, 2
        %v3785 = vadd.f32 %v3783, %v3784
        %v3786 = vrot.slane %v3785, 1
        %v3787 = vadd.f32 %v3785, %v3786
        %v3788 = vrot.slane %v3711, 4
        %v3789 = vadd.f32 %v3711, %v3788
        %v3790 = vrot.slane %v3789, 2
        %v3791 = vadd.f32 %v3789, %v3790
        %v3792 = vrot.slane %v3791, 1
        %v3793 = vadd.f32 %v3791, %v3792
        %v3794 = vrot.slane %v3712, 4
        %v3795 = vadd.f32 %v3712, %v3794
        %v3796 = vrot.slane %v3795, 2
        %v3797 = vadd.f32 %v3795, %v3796
        %v3798 = vrot.slane %v3797, 1
        %v3799 = vadd.f32 %v3797, %v3798
        %v3800 = vrot.slane %v3713, 4
        %v3801 = vadd.f32 %v3713, %v3800
        %v3802 = vrot.slane %v3801, 2
        %v3803 = vadd.f32 %v3801, %v3802
        %v3804 = vrot.slane %v3803, 1
        %v3805 = vadd.f32 %v3803, %v3804
        %v3806 = vrot.slane %v3714, 4
        %v3807 = vadd.f32 %v3714, %v3806
        %v3808 = vrot.slane %v3807, 2
        %v3809 = vadd.f32 %v3807, %v3808
        %v3810 = vrot.slane %v3809, 1
        %v3811 = vadd.f32 %v3809, %v3810
        %v3812 = vrot.slane %v3715, 4
        %v3813 = vadd.f32 %v3715, %v3812
        %v3814 = vrot.slane %v3813, 2
        %v3815 = vadd.f32 %v3813, %v3814
        %v3816 = vrot.slane %v3815, 1
        %v3817 = vadd.f32 %v3815, %v3816
        %v3818 = vrot.slane %v3716, 4
        %v3819 = vadd.f32 %v3716, %v3818
        %v3820 = vrot.slane %v3819, 2
        %v3821 = vadd.f32 %v3819, %v3820
        %v3822 = vrot.slane %v3821, 1
        %v3823 = vadd.f32 %v3821, %v3822
        %v3824 = vrot.slane %v3717, 4
        %v3825 = vadd.f32 %v3717, %v3824
        %v3826 = vrot.slane %v3825, 2
        %v3827 = vadd.f32 %v3825, %v3826
        %v3828 = vrot.slane %v3827, 1
        %v3829 = vadd.f32 %v3827, %v3828
        %v3830 = vrot.slane %v3718, 4
        %v3831 = vadd.f32 %v3718, %v3830
        %v3832 = vrot.slane %v3831, 2
        %v3833 = vadd.f32 %v3831, %v3832
        %v3834 = vrot.slane %v3833, 1
        %v3835 = vadd.f32 %v3833, %v3834
        %v3836 = vrot.slane %v3719, 4
        %v3837 = vadd.f32 %v3719, %v3836
        %v3838 = vrot.slane %v3837, 2
        %v3839 = vadd.f32 %v3837, %v3838
        %v3840 = vrot.slane %v3839, 1
        %v3841 = vadd.f32 %v3839, %v3840
        %v3842 = vrot.slane %v3720, 4
        %v3843 = vadd.f32 %v3720, %v3842
        %v3844 = vrot.slane %v3843, 2
        %v3845 = vadd.f32 %v3843, %v3844
        %v3846 = vrot.slane %v3845, 1
        %v3847 = vadd.f32 %v3845, %v3846
        %v3848 = vrot.slane %v3721, 4
        %v3849 = vadd.f32 %v3721, %v3848
        %v3850 = vrot.slane %v3849, 2
        %v3851 = vadd.f32 %v3849, %v3850
        %v3852 = vrot.slane %v3851, 1
        %v3853 = vadd.f32 %v3851, %v3852
        %v3854 = vrot.slane %v3722, 4
        %v3855 = vadd.f32 %v3722, %v3854
        %v3856 = vrot.slane %v3855, 2
        %v3857 = vadd.f32 %v3855, %v3856
        %v3858 = vrot.slane %v3857, 1
        %v3859 = vadd.f32 %v3857, %v3858
        %v3860 = vrot.slane %v3723, 4
        %v3861 = vadd.f32 %v3723, %v3860
        %v3862 = vrot.slane %v3861, 2
        %v3863 = vadd.f32 %v3861, %v3862
        %v3864 = vrot.slane %v3863, 1
        %v3865 = vadd.f32 %v3863, %v3864
        %v3866 = vrot.slane %v3724, 4
        %v3867 = vadd.f32 %v3724, %v3866
        %v3868 = vrot.slane %v3867, 2
        %v3869 = vadd.f32 %v3867, %v3868
        %v3870 = vrot.slane %v3869, 1
        %v3871 = vadd.f32 %v3869, %v3870
        %v3872 = vrot.slane %v3725, 4
        %v3873 = vadd.f32 %v3725, %v3872
        %v3874 = vrot.slane %v3873, 2
        %v3875 = vadd.f32 %v3873, %v3874
        %v3876 = vrot.slane %v3875, 1
        %v3877 = vadd.f32 %v3875, %v3876
        %v3878 = vrot.slane %v3726, 4
        %v3879 = vadd.f32 %v3726, %v3878
        %v3880 = vrot.slane %v3879, 2
        %v3881 = vadd.f32 %v3879, %v3880
        %v3882 = vrot.slane %v3881, 1
        %v3883 = vadd.f32 %v3881, %v3882
        %v3884 = vrot.slane %v3727, 4
        %v3885 = vadd.f32 %v3727, %v3884
        %v3886 = vrot.slane %v3885, 2
        %v3887 = vadd.f32 %v3885, %v3886
        %v3888 = vrot.slane %v3887, 1
        %v3889 = vadd.f32 %v3887, %v3888
        %v3890 = vrot.slane %v3728, 4
        %v3891 = vadd.f32 %v3728, %v3890
        %v3892 = vrot.slane %v3891, 2
        %v3893 = vadd.f32 %v3891, %v3892
        %v3894 = vrot.slane %v3893, 1
        %v3895 = vadd.f32 %v3893, %v3894
        %v3896 = vrot.slane %v3729, 4
        %v3897 = vadd.f32 %v3729, %v3896
        %v3898 = vrot.slane %v3897, 2
        %v3899 = vadd.f32 %v3897, %v3898
        %v3900 = vrot.slane %v3899, 1
        %v3901 = vadd.f32 %v3899, %v3900
        %v3902 = vrot.slane %v3730, 4
        %v3903 = vadd.f32 %v3730, %v3902
        %v3904 = vrot.slane %v3903, 2
        %v3905 = vadd.f32 %v3903, %v3904
        %v3906 = vrot.slane %v3905, 1
        %v3907 = vadd.f32 %v3905, %v3906
        %v3908 = vrot.slane %v3731, 4
        %v3909 = vadd.f32 %v3731, %v3908
        %v3910 = vrot.slane %v3909, 2
        %v3911 = vadd.f32 %v3909, %v3910
        %v3912 = vrot.slane %v3911, 1
        %v3913 = vadd.f32 %v3911, %v3912
        %v3914 = vrot.slane %v3732, 4
        %v3915 = vadd.f32 %v3732, %v3914
        %v3916 = vrot.slane %v3915, 2
        %v3917 = vadd.f32 %v3915, %v3916
        %v3918 = vrot.slane %v3917, 1
        %v3919 = vadd.f32 %v3917, %v3918
        %v3920 = vrot.slane %v3733, 4
        %v3921 = vadd.f32 %v3733, %v3920
        %v3922 = vrot.slane %v3921, 2
        %v3923 = vadd.f32 %v3921, %v3922
        %v3924 = vrot.slane %v3923, 1
        %v3925 = vadd.f32 %v3923, %v3924
        %v3926 = vpack.c.bf16 %v3739, %v3739
        %v3927 = vpack.c.bf16 %v3745, %v3745
        %v3928 = vpack.c.bf16 %v3751, %v3751
        %v3929 = vpack.c.bf16 %v3757, %v3757
        %v3930 = vpack.c.bf16 %v3763, %v3763
        %v3931 = vpack.c.bf16 %v3769, %v3769
        %v3932 = vpack.c.bf16 %v3775, %v3775
        %v3933 = vpack.c.bf16 %v3781, %v3781
        %v3934 = vpack.c.bf16 %v3787, %v3787
        %v3935 = vpack.c.bf16 %v3793, %v3793
        %v3936 = vpack.c.bf16 %v3799, %v3799
        %v3937 = vpack.c.bf16 %v3805, %v3805
        %v3938 = vpack.c.bf16 %v3811, %v3811
        %v3939 = vpack.c.bf16 %v3817, %v3817
        %v3940 = vpack.c.bf16 %v3823, %v3823
        %v3941 = vpack.c.bf16 %v3829, %v3829
        %v3942 = vpack.c.bf16 %v3835, %v3835
        %v3943 = vpack.c.bf16 %v3841, %v3841
        %v3944 = vpack.c.bf16 %v3847, %v3847
        %v3945 = vpack.c.bf16 %v3853, %v3853
        %v3946 = vpack.c.bf16 %v3859, %v3859
        %v3947 = vpack.c.bf16 %v3865, %v3865
        %v3948 = vpack.c.bf16 %v3871, %v3871
        %v3949 = vpack.c.bf16 %v3877, %v3877
        %v3950 = vpack.c.bf16 %v3883, %v3883
        %v3951 = vpack.c.bf16 %v3889, %v3889
        %v3952 = vpack.c.bf16 %v3895, %v3895
        %v3953 = vpack.c.bf16 %v3901, %v3901
        %v3954 = vpack.c.bf16 %v3907, %v3907
        %v3955 = vpack.c.bf16 %v3913, %v3913
        %v3956 = vpack.c.bf16 %v3919, %v3919
        %v3957 = vpack.c.bf16 %v3925, %v3925
        %v3990 = vunpack.c.l.b16 %v3926
        %v3991 = vunpack.c.l.b16 %v3927
        %v3992 = vunpack.c.l.b16 %v3928
        %v3993 = vunpack.c.l.b16 %v3929
        %v3994 = vunpack.c.l.b16 %v3930
        %v3995 = vunpack.c.l.b16 %v3931
        %v3996 = vunpack.c.l.b16 %v3932
        %v3997 = vunpack.c.l.b16 %v3933
        %v3998 = vunpack.c.l.b16 %v3934
        %v3999 = vunpack.c.l.b16 %v3935
        %v4000 = vunpack.c.l.b16 %v3936
        %v4001 = vunpack.c.l.b16 %v3937
        %v4002 = vunpack.c.l.b16 %v3938
        %v4003 = vunpack.c.l.b16 %v3939
        %v4004 = vunpack.c.l.b16 %v3940
        %v4005 = vunpack.c.l.b16 %v3941
        %v4006 = vunpack.c.l.b16 %v3942
        %v4007 = vunpack.c.l.b16 %v3943
        %v4008 = vunpack.c.l.b16 %v3944
        %v4009 = vunpack.c.l.b16 %v3945
        %v4010 = vunpack.c.l.b16 %v3946
        %v4011 = vunpack.c.l.b16 %v3947
        %v4012 = vunpack.c.l.b16 %v3948
        %v4013 = vunpack.c.l.b16 %v3949
        %v4014 = vunpack.c.l.b16 %v3950
        %v4015 = vunpack.c.l.b16 %v3951
        %v4016 = vunpack.c.l.b16 %v3952
        %v4017 = vunpack.c.l.b16 %v3953
        %v4018 = vunpack.c.l.b16 %v3954
        %v4019 = vunpack.c.l.b16 %v3955
        %v4020 = vunpack.c.l.b16 %v3956
        %v4021 = vunpack.c.l.b16 %v3957
        %v4022 = vpack.c.b16 %v3990, %v3990
        %v4023 = vpack.c.b16 %v3991, %v3991
        %v4024 = vpack.c.b16 %v3992, %v3992
        %v4025 = vpack.c.b16 %v3993, %v3993
        %v4026 = vpack.c.b16 %v3994, %v3994
        %v4027 = vpack.c.b16 %v3995, %v3995
        %v4028 = vpack.c.b16 %v3996, %v3996
        %v4029 = vpack.c.b16 %v3997, %v3997
        %v4030 = vpack.c.b16 %v3998, %v3998
        %v4031 = vpack.c.b16 %v3999, %v3999
        %v4032 = vpack.c.b16 %v4000, %v4000
        %v4033 = vpack.c.b16 %v4001, %v4001
        %v4034 = vpack.c.b16 %v4002, %v4002
        %v4035 = vpack.c.b16 %v4003, %v4003
        %v4036 = vpack.c.b16 %v4004, %v4004
        %v4037 = vpack.c.b16 %v4005, %v4005
        %v4038 = vpack.c.b16 %v4006, %v4006
        %v4039 = vpack.c.b16 %v4007, %v4007
        %v4040 = vpack.c.b16 %v4008, %v4008
        %v4041 = vpack.c.b16 %v4009, %v4009
        %v4042 = vpack.c.b16 %v4010, %v4010
        %v4043 = vpack.c.b16 %v4011, %v4011
        %v4044 = vpack.c.b16 %v4012, %v4012
        %v4045 = vpack.c.b16 %v4013, %v4013
        %v4046 = vpack.c.b16 %v4014, %v4014
        %v4047 = vpack.c.b16 %v4015, %v4015
        %v4048 = vpack.c.b16 %v4016, %v4016
        %v4049 = vpack.c.b16 %v4017, %v4017
        %v4050 = vpack.c.b16 %v4018, %v4018
        %v4051 = vpack.c.b16 %v4019, %v4019
        %v4052 = vpack.c.b16 %v4020, %v4020
        %v4053 = vpack.c.b16 %v4021, %v4021
        %v4054 = vunpack.c.l.b16 %v4022
        %v4055 = vunpack.c.l.b16 %v4023
        %v4056 = vunpack.c.l.b16 %v4024
        %v4057 = vunpack.c.l.b16 %v4025
        %v4058 = vunpack.c.l.b16 %v4026
        %v4059 = vunpack.c.l.b16 %v4027
        %v4060 = vunpack.c.l.b16 %v4028
        %v4061 = vunpack.c.l.b16 %v4029
        %v4062 = vunpack.c.l.b16 %v4030
        %v4063 = vunpack.c.l.b16 %v4031
        %v4064 = vunpack.c.l.b16 %v4032
        %v4065 = vunpack.c.l.b16 %v4033
        %v4066 = vunpack.c.l.b16 %v4034
        %v4067 = vunpack.c.l.b16 %v4035
        %v4068 = vunpack.c.l.b16 %v4036
        %v4069 = vunpack.c.l.b16 %v4037
        %v4070 = vunpack.c.l.b16 %v4038
        %v4071 = vunpack.c.l.b16 %v4039
        %v4072 = vunpack.c.l.b16 %v4040
        %v4073 = vunpack.c.l.b16 %v4041
        %v4074 = vunpack.c.l.b16 %v4042
        %v4075 = vunpack.c.l.b16 %v4043
        %v4076 = vunpack.c.l.b16 %v4044
        %v4077 = vunpack.c.l.b16 %v4045
        %v4078 = vunpack.c.l.b16 %v4046
        %v4079 = vunpack.c.l.b16 %v4047
        %v4080 = vunpack.c.l.b16 %v4048
        %v4081 = vunpack.c.l.b16 %v4049
        %v4082 = vunpack.c.l.b16 %v4050
        %v4083 = vunpack.c.l.b16 %v4051
        %v4084 = vunpack.c.l.b16 %v4052
        %v4085 = vunpack.c.l.b16 %v4053
        %vm4086 = vcmask 1041409
        %v4087 = vsel %vm4086, %v4055, %v4054
        %vm4088 = vcmask 1042434
        %v4089 = vsel %vm4088, %v4056, %v4087
        %vm4090 = vcmask 1043459
        %v4091 = vsel %vm4090, %v4057, %v4089
        %vm4092 = vcmask 1044484
        %v4093 = vsel %vm4092, %v4058, %v4091
        %vm4094 = vcmask 1045509
        %v4095 = vsel %vm4094, %v4059, %v4093
        %vm4096 = vcmask 1046534
        %v4097 = vsel %vm4096, %v4060, %v4095
        %vm4098 = vcmask 1047559
        %v4099 = vsel %vm4098, %v4061, %v4097
        %v4100 = vsel %vm4086, %v4063, %v4062
        %v4101 = vsel %vm4088, %v4064, %v4100
        %v4102 = vsel %vm4090, %v4065, %v4101
        %v4103 = vsel %vm4092, %v4066, %v4102
        %v4104 = vsel %vm4094, %v4067, %v4103
        %v4105 = vsel %vm4096, %v4068, %v4104
        %v4106 = vsel %vm4098, %v4069, %v4105
        %v4107 = vsel %vm4086, %v4071, %v4070
        %v4108 = vsel %vm4088, %v4072, %v4107
        %v4109 = vsel %vm4090, %v4073, %v4108
        %v4110 = vsel %vm4092, %v4074, %v4109
        %v4111 = vsel %vm4094, %v4075, %v4110
        %v4112 = vsel %vm4096, %v4076, %v4111
        %v4113 = vsel %vm4098, %v4077, %v4112
        %v4114 = vsel %vm4086, %v4079, %v4078
        %v4115 = vsel %vm4088, %v4080, %v4114
        %v4116 = vsel %vm4090, %v4081, %v4115
        %v4117 = vsel %vm4092, %v4082, %v4116
        %v4118 = vsel %vm4094, %v4083, %v4117
        %v4119 = vsel %vm4096, %v4084, %v4118
        %v4120 = vsel %vm4098, %v4085, %v4119
        %v4121 = vpack.c.b16 %v4099, %v4099
        %v4122 = vpack.c.b16 %v4106, %v4106
        %v4123 = vpack.c.b16 %v4113, %v4113
        %v4124 = vpack.c.b16 %v4120, %v4120
        %4129 = vst [vmem:[%s304] sm:$0xf] %v4121
        %4130 = vst [vmem:[%s304 + $0x4] sm:$0xf] %v4122
        %4131 = vst [vmem:[%s304 + $0x8] sm:$0xf] %v4123
        %4132 = vst [vmem:[%s304 + $0xc] sm:$0xf] %v4124
        %s4133 = sand.u32 %s191, 1
        %s4134 = scalar_lea.sflag [#allocation3], %s4133
        %s4135 = sand.u32 %s191, 1
        %s4136 = smul.addr %s4135, 16
        %s4137 = scalar_lea.vmem [#allocation2], %s4136
        // Predicated region
        $region49: #{tpu_custom_call.1} parent=47 // pred_check
          %p4138 = pneg %p201
        $region50: #{tpu_custom_call.1} parent=47 // pred_check_branch
          %4140 = sbr.rel (%p4138) target = $region52
        $region51: #{tpu_custom_call.1} parent=47 // pred_region
          %s4141 = smul.u32 4, %s21
          %s4143 = ssub.s32 256, 256
          %4144 = vsyncadd %s4134, %s4143
          %s4145 = smul.addr %s4141, 64
          %s4146 = scalar_lea.hbm %s7, %s4145
          %s4147 = sshll.u32 %s4137, 4
          %s4148 = int_to_ptr.vmem [resolvable:$true] %s4147
          %4153 = dma.vmem_to_hbm [thread:$0]  %s4148, 256, %s4146, %s4134, 64, 64, 4
        $region52: #{tpu_custom_call.1} parent=47 // pred_fallthru
          _
      $region48: #{tpu_custom_call.1} parent=5 // pred_fallthru
        _
      %p4154 = scmp.le.s32.totalorder 2, %s16
      // Predicated region
      $region53: #{tpu_custom_call.1} parent=5 // pred_check
        %p4155 = pneg %p4154
      $region54: #{tpu_custom_call.1} parent=5 // pred_check_branch
        %4157 = sbr.rel (%p4155) target = $region56
      $region55: #{tpu_custom_call.1} parent=5 // pred_region
        %s4158 = ssub.s32 %s16, 2
        // Predicated region
        $region57: #{tpu_custom_call.1} parent=55 // pred_check
          %p4159 = pneg %p207
        $region58: #{tpu_custom_call.1} parent=55 // pred_check_branch
          %4161 = sbr.rel (%p4159) target = $region60
        $region59: #{tpu_custom_call.1} parent=55 // pred_region
          %s4162 = sand.u32 %s192, 1
          %s4163 = scalar_lea.sflag [#allocation3], %s4162
          %s4164 = sand.u32 %s192, 1
          %s4165 = smul.addr %s4164, 16
          %s4166 = scalar_lea.vmem [#allocation2], %s4165
          %4167 = dma.done %s4163, 256
        $region60: #{tpu_custom_call.1} parent=55 // pred_fallthru
          _
      $region56: #{tpu_custom_call.1} parent=5 // pred_fallthru
        _
    $region6: #{tpu_custom_call.1} parent=1 // loop_footer
      %s20 = sadd.s32 1, %s16
    $region7: #{tpu_custom_call.1} parent=1 // loop_footer_branch
      %15 = sbr.rel target = $region3
    $region8: #{tpu_custom_call.1} parent=1 // loop_exit
      _
    %4168 = vsyncpa [#allocation3], 1
    %s4169 = scalar_lea.sflag [#allocation3], 1
    %4170 = vsyncpa %s4169, 1

</llo_original>
